<compile_context>
chip_gen: v7x
topology: tpu7x:2x2x1
jax: 0.10.0
libtpu: 0.0.40
codegen_flags: <defaults>
</compile_context>

<pallas_src>
import functools

import jax
import jax.numpy as jnp
from jax.experimental import pallas as pl
from jax.experimental.pallas import tpu as pltpu

# ---------------------------------------------------------------------------- shapes
H0 = W0 = 48          # input spatial size implied by fc in_features = 12*12*40
H1 = W1 = 24          # after conv1 + 2x2 max-pool
H2 = W2 = 12          # after conv2 + 2x2 max-pool
C1 = 8                # conv1 out channels
C2 = 40               # conv2 out channels
NCLASS = 7
NTAP = 9              # 3x3 taps
NPHASE = 4            # 2x2 pooling phases fused into conv1

WP = 32               # padded row stride of the flat 24x24 (+border) layout
HP = 28               # padded number of rows
IMG = HP * WP         # = 896 lanes per image (multiple of 128)
NEG = -1e30           # filler for unused class lanes (keeps log_softmax exact)


# ---------------------------------------------------------------------------- kernel
def _net_kernel(p1t_ref, maskt_ref, w1t_ref, b1c_ref, w2kt_ref, b2c_ref,
                wft_ref, bfr_ref, o_ref):
    """Whole forward pass for one batch tile, entirely in VMEM.

    p1t_ref : (4, 9, b*896)  conv1 im2col, phase-major; lane = img*896 + hp*32 + wp
    maskt_ref:(1, b*896)     1.0 on valid y1 lanes, 0.0 on the zero border
    w1t_ref : (8, 9)         conv1 weights, column = tap (kh*3+kw)
    b1c_ref : (8, 1)
    w2kt_ref: (40, 72)       conv2 weights, column = tap*8 + cin
    b2c_ref : (40, 1)
    wft_ref : (7, 40, 896)   FC weights; flatten perm + pooled-lane selection
                             folded in (zero at non-pooled lanes)
    bfr_ref : (1, 128)       FC bias in lanes [0:7], -1e30 elsewhere
    o_ref   : (1, b, 128)    log-probabilities in lanes [0:7]
    """
    bt = o_ref.shape[1]
    L = p1t_ref.shape[2]                       # = bt * IMG

    # ---- conv1: one small MXU matmul per pooling phase, phase-max fused --------
    w1t = w1t_ref[...]
    a = jnp.dot(w1t, p1t_ref[0], preferred_element_type=jnp.float32)
    for ph in range(1, NPHASE):
        a = jnp.maximum(
            a, jnp.dot(w1t, p1t_ref[ph], preferred_element_type=jnp.float32))
    # relu(pool(conv)+b) == pool-then-relu of PyTorch (bias const, max/relu
    # monotone).  The mask restores the zero border conv2's SAME padding needs.
    y1t = jnp.maximum(a + b1c_ref[...], 0.0) * maskt_ref[...]      # (8, L)

    # ---- conv2: 9 lane-rolled tap views stacked along sublanes -> one K=72 -----
    # matmul with the (40,72) weight as LHS (no activation transpose needed).
    taps = []
    for t in range(NTAP):
        kh, kw = t // 3, t % 3
        off = kh * WP + kw
        if off == 0:
            taps.append(y1t)
        else:
            taps.append(pltpu.roll(y1t, shift=(L - off) % L, axis=1))
    y72 = jnp.concatenate(taps, axis=0)                            # (72, L)
    zt = jnp.dot(w2kt_ref[...], y72, preferred_element_type=jnp.float32)
    zt = jnp.maximum(zt + b2c_ref[...], 0.0)                       # (40, L)

    # ---- 2x2 max-pool via lane rolls (valid pooled lanes: 64*h' + 2*w') --------
    q = jnp.maximum(zt, pltpu.roll(zt, shift=L - 1, axis=1))
    pz = jnp.maximum(q, pltpu.roll(q, shift=L - WP, axis=1))       # (40, L)
    # Rolls wrap across image boundaries only on lanes whose FC weights are
    # structurally zero (junk rows), so results are unchanged.

    # ---- FC: lane-dense masked reductions over 128-aligned per-image slices ----
    row_i = jax.lax.broadcasted_iota(jnp.int32, (bt, 128), 0)
    col_i = jax.lax.broadcasted_iota(jnp.int32, (bt, 128), 1)
    logits = jnp.zeros((bt, 128), jnp.float32) + bfr_ref[...]      # bias + filler
    for n in range(NCLASS):
        wf_n = wft_ref[n]                                          # (40, 896)
        for i in range(bt):
            blk = pz[:, i * IMG:(i + 1) * IMG]                     # (40, 896)
            s = jnp.sum(blk * wf_n, axis=1, keepdims=True)         # (40, 1)
            s = jnp.sum(s, axis=0, keepdims=True)                  # (1, 1)
            logits = logits + jnp.where((row_i == i) & (col_i == n), s, 0.0)

    # ---- log_softmax on the whole tile, single full-block store ----------------
    m = jnp.max(logits, axis=1, keepdims=True)
    sh = logits - m
    lse = jnp.log(jnp.sum(jnp.exp(sh), axis=1, keepdims=True))
    o_ref[0] = sh - lse


# ---------------------------------------------------------------------------- call
def _fused_forward(p1t, maskt, w1t, b1c, w2kt, b2c, wft, bfr, *, b_tile):
    lanes = p1t.shape[2]
    num_steps = lanes // (b_tile * IMG)
    out = pl.pallas_call(
        _net_kernel,
        out_shape=jax.ShapeDtypeStruct((num_steps, b_tile, 128), jnp.float32),
        grid=(num_steps,),
        in_specs=[
            pl.BlockSpec((NPHASE, NTAP, b_tile * IMG), lambda g: (0, 0, g)),
            pl.BlockSpec((1, b_tile * IMG), lambda g: (0, 0)),
            pl.BlockSpec((C1, NTAP), lambda g: (0, 0)),
            pl.BlockSpec((C1, 1), lambda g: (0, 0)),
            pl.BlockSpec((C2, NTAP * C1), lambda g: (0, 0)),
            pl.BlockSpec((C2, 1), lambda g: (0, 0)),
            pl.BlockSpec((NCLASS, C2, IMG), lambda g: (0, 0, 0)),
            pl.BlockSpec((1, 128), lambda g: (0, 0)),
        ],
        out_specs=pl.BlockSpec((1, b_tile, 128), lambda g: (g, 0, 0)),
        compiler_params=pltpu.CompilerParams(
            dimension_semantics=("parallel",)),
    )(p1t, maskt, w1t, b1c, w2kt, b2c, wft, bfr)
    return out.reshape(num_steps * b_tile, 128)


# ---------------------------------------------------------------------------- glue
def _conv1_patches_t(x_nchw):
    """(B,1,48,48) -> (4, 9, B*896): transposed, phase-major conv1 im2col.

    Lane index = img*896 + (h+1)*32 + (w+1) for pooled output (h, w); border
    lanes are zero patches.  Phase ph = dh*2 + dw; tap t = kh*3 + kw.
    """
    B = x_nchw.shape[0]
    xp = jnp.pad(x_nchw[:, 0], ((0, 0), (1, 1), (1, 1)))            # (B, 50, 50)
    blocks = []
    for dh in (0, 1):
        for dw in (0, 1):
            taps = []
            for kh in range(3):
                for kw in range(3):
                    taps.append(xp[:, dh + kh: dh + kh + 2 * H1: 2,
                                      dw + kw: dw + kw + 2 * W1: 2])  # (B,24,24)
            t = jnp.stack(taps, axis=1)                              # (B,9,24,24)
            t = jnp.pad(t, ((0, 0), (0, 0),
                            (1, HP - 1 - H1), (1, WP - 1 - W1)))      # (B,9,28,32)
            blocks.append(t.reshape(B, NTAP, IMG))
    p = jnp.stack(blocks, axis=0)                                    # (4,B,9,896)
    return jnp.transpose(p, (0, 2, 1, 3)).reshape(NPHASE, NTAP, B * IMG)


def init_params(key, num_class=NCLASS):
    """Random params in the PyTorch layer layouts (uniform +/- 1/sqrt(fan_in))."""
    ks = jax.random.split(key, 6)

    def unif(k, shape, fan_in):
        bound = 1.0 / jnp.sqrt(jnp.float32(fan_in))
        return jax.random.uniform(k, shape, jnp.float32, -bound, bound)

    return dict(
        conv1_w=unif(ks[0], (C1, 1, 3, 3), 9),
        conv1_b=unif(ks[1], (C1,), 9),
        conv2_w=unif(ks[2], (C2, C1, 3, 3), 9 * C1),
        conv2_b=unif(ks[3], (C2,), 9 * C1),
        fc_w=unif(ks[4], (NCLASS, H2 * W2 * C2), H2 * W2 * C2),
        fc_b=unif(ks[5], (NCLASS,), H2 * W2 * C2),
    )


def prepare_params(p):
    """One-time repack of PyTorch-layout weights into the fused kernel's layouts."""
    w1t = p["conv1_w"].reshape(C1, NTAP)                            # (8, 9)
    b1c = p["conv1_b"].reshape(C1, 1)
    # conv2: (co, ci, kh, kw) -> (co, kh, kw, ci) -> (40, 72); col = tap*8 + ci
    w2kt = jnp.transpose(p["conv2_w"], (0, 2, 3, 1)).reshape(C2, NTAP * C1)
    b2c = p["conv2_b"].reshape(C2, 1)
    # FC: fold the PyTorch NCHW flatten and the pooled-lane selection into wft.
    wf = p["fc_w"].reshape(NCLASS, C2, H2, W2)                      # [n, c, h', w']
    big = jnp.zeros((NCLASS, C2, HP, WP), jnp.float32)
    big = big.at[:, :, 0:2 * H2:2, 0:2 * W2:2].set(wf)
    wft = big.reshape(NCLASS, C2, IMG)                              # (7, 40, 896)
    bfr = jnp.full((1, 128), NEG, jnp.float32).at[0, :NCLASS].set(p["fc_b"])
    mask = jnp.pad(jnp.ones((H1, W1), jnp.float32),
                   ((1, HP - 1 - H1), (1, WP - 1 - W1))).reshape(1, IMG)
    return dict(w1t=w1t, b1c=b1c, w2kt=w2kt, b2c=b2c, wft=wft, bfr=bfr,
                mask=mask)


def net_forward(x_nchw, kp, *, b_tile=None):
    """x_nchw: (B, 1, 48, 48) float32 -> log-probabilities (B, 7)."""
    B = x_nchw.shape[0]
    if b_tile is None:
        # >= 2 parallel grid steps whenever B >= 2 (keeps both v7x TCs busy);
        # grows to 8 to amortise per-step overhead on v5e/v6e.
        b_tile = 1 if B <= 1 else min(8, max(1, (B + 1) // 2))
    b_pad = ((B + b_tile - 1) // b_tile) * b_tile
    if b_pad != B:
        x_nchw = jnp.pad(x_nchw, ((0, b_pad - B), (0, 0), (0, 0), (0, 0)))
    p1t = _conv1_patches_t(x_nchw)
    maskt = jnp.tile(kp["mask"], (1, b_tile))
    out = _fused_forward(p1t, maskt, kp["w1t"], kp["b1c"], kp["w2kt"],
                         kp["b2c"], kp["wft"], kp["bfr"], b_tile=b_tile)
    return out[:B, :NCLASS]


# ------------------------------------------------------------------- pure-JAX check
def reference_forward(x, p):
    hi = jax.lax.Precision.HIGHEST
    dn = ("NCHW", "OIHW", "NCHW")
    y = jax.lax.conv_general_dilated(x, p["conv1_w"], (1, 1), "SAME",
                                     dimension_numbers=dn, precision=hi)
    y = y + p["conv1_b"].reshape(1, C1, 1, 1)
    y = jax.lax.reduce_window(y, -jnp.inf, jax.lax.max,
                              (1, 1, 2, 2), (1, 1, 2, 2), "VALID")
    y = jnp.maximum(y, 0.0)
    y = jax.lax.conv_general_dilated(y, p["conv2_w"], (1, 1), "SAME",
                                     dimension_numbers=dn, precision=hi)
    y = y + p["conv2_b"].reshape(1, C2, 1, 1)
    y = jax.lax.reduce_window(y, -jnp.inf, jax.lax.max,
                              (1, 1, 2, 2), (1, 1, 2, 2), "VALID")
    y = jnp.maximum(y, 0.0)
    feat = y.reshape(y.shape[0], -1)                                # NCHW flatten
    logits = jnp.dot(feat, p["fc_w"].T, precision=hi) + p["fc_b"]
    return jax.nn.log_softmax(logits, axis=1)


if __name__ == "__main__":
    key = jax.random.PRNGKey(0)
    pkey, xkey = jax.random.split(key)
    raw = init_params(pkey)
    kparams = prepare_params(raw)
    x = jax.random.normal(xkey, (2, 1, H0, W0), jnp.float32)

    fwd = jax.jit(functools.partial(net_forward))   # B=2 -> b_tile=1, 2 grid steps
    out = fwd(x, kparams)
    jax.block_until_ready(out)

    assert out.shape == (2, NCLASS)
    # rows of log_softmax must exponentiate-sum to 1
    assert bool(jnp.allclose(jnp.sum(jnp.exp(out), axis=1), 1.0, atol=1e-4))
    # match the pure-JAX reference of the PyTorch forward pass
    ref = reference_forward(x, raw)
    assert bool(jnp.allclose(out, ref, atol=2e-3, rtol=2e-3))
    print("KERNEL_OK")
</pallas_src>

<mosaic_0001>
module attributes {stable_mosaic.version = 11 : i64} {
  func.func @_net_kernel(%arg0: i32, %arg1: memref<4x9x896xf32, #tpu.memory_space<vmem>>, %arg2: memref<1x896xf32, #tpu.memory_space<vmem>>, %arg3: memref<8x9xf32, #tpu.memory_space<vmem>>, %arg4: memref<8x1xf32, #tpu.memory_space<vmem>>, %arg5: memref<40x72xf32, #tpu.memory_space<vmem>>, %arg6: memref<40x1xf32, #tpu.memory_space<vmem>>, %arg7: memref<7x40x896xf32, #tpu.memory_space<vmem>>, %arg8: memref<1x128xf32, #tpu.memory_space<vmem>>, %arg9: memref<1x1x128xf32, #tpu.memory_space<vmem>>) attributes {dimension_semantics = [#tpu.dimension_semantics<parallel>], iteration_bounds = array<i64: 2>, scalar_prefetch = 0 : i64, scratch_operands = 0 : i64, tpu.core_type = #tpu.core_type<tc>, window_params = [{transform_indices = @transform_0, window_bounds = array<i64: 4, 9, 896>}, {pipeline_mode = #tpu.pipeline_mode<synchronous>, transform_indices = @transform_1, window_bounds = array<i64: 1, 896>}, {pipeline_mode = #tpu.pipeline_mode<synchronous>, transform_indices = @transform_2, window_bounds = array<i64: 8, 9>}, {pipeline_mode = #tpu.pipeline_mode<synchronous>, transform_indices = @transform_3, window_bounds = array<i64: 8, 1>}, {pipeline_mode = #tpu.pipeline_mode<synchronous>, transform_indices = @transform_4, window_bounds = array<i64: 40, 72>}, {pipeline_mode = #tpu.pipeline_mode<synchronous>, transform_indices = @transform_5, window_bounds = array<i64: 40, 1>}, {pipeline_mode = #tpu.pipeline_mode<synchronous>, transform_indices = @transform_6, window_bounds = array<i64: 7, 40, 896>}, {pipeline_mode = #tpu.pipeline_mode<synchronous>, transform_indices = @transform_7, window_bounds = array<i64: 1, 128>}, {transform_indices = @transform_8, window_bounds = array<i64: 1, 1, 128>}]} {
    %c0 = arith.constant 0 : index
    %c0_0 = arith.constant 0 : index
    %0 = vector.load %arg3[%c0, %c0_0] : memref<8x9xf32, #tpu.memory_space<vmem>>, vector<8x9xf32>
    %c0_1 = arith.constant 0 : index
    %c0_2 = arith.constant 0 : index
    %c0_3 = arith.constant 0 : index
    %1 = vector.load %arg1[%c0_1, %c0_2, %c0_3] : memref<4x9x896xf32, #tpu.memory_space<vmem>>, vector<1x9x896xf32>
    %2 = vector.shape_cast %1 : vector<1x9x896xf32> to vector<9x896xf32>
    %cst = arith.constant dense<0.000000e+00> : vector<8x896xf32>
    %3 = tpu.matmul %0, %2, %cst {dimension_numbers = #tpu.dot_dimension_numbers<[1], [0], [0], [1], [0, 0, 1, 1], [], []>} : vector<8x9xf32>, vector<9x896xf32>, vector<8x896xf32> -> vector<8x896xf32>
    %c1 = arith.constant 1 : index
    %c0_4 = arith.constant 0 : index
    %c0_5 = arith.constant 0 : index
    %4 = vector.load %arg1[%c1, %c0_4, %c0_5] : memref<4x9x896xf32, #tpu.memory_space<vmem>>, vector<1x9x896xf32>
    %5 = vector.shape_cast %4 : vector<1x9x896xf32> to vector<9x896xf32>
    %cst_6 = arith.constant dense<0.000000e+00> : vector<8x896xf32>
    %6 = tpu.matmul %0, %5, %cst_6 {dimension_numbers = #tpu.dot_dimension_numbers<[1], [0], [0], [1], [0, 0, 1, 1], [], []>} : vector<8x9xf32>, vector<9x896xf32>, vector<8x896xf32> -> vector<8x896xf32>
    %7 = arith.maximumf %3, %6 : vector<8x896xf32>
    %c2 = arith.constant 2 : index
    %c0_7 = arith.constant 0 : index
    %c0_8 = arith.constant 0 : index
    %8 = vector.load %arg1[%c2, %c0_7, %c0_8] : memref<4x9x896xf32, #tpu.memory_space<vmem>>, vector<1x9x896xf32>
    %9 = vector.shape_cast %8 : vector<1x9x896xf32> to vector<9x896xf32>
    %cst_9 = arith.constant dense<0.000000e+00> : vector<8x896xf32>
    %10 = tpu.matmul %0, %9, %cst_9 {dimension_numbers = #tpu.dot_dimension_numbers<[1], [0], [0], [1], [0, 0, 1, 1], [], []>} : vector<8x9xf32>, vector<9x896xf32>, vector<8x896xf32> -> vector<8x896xf32>
    %11 = arith.maximumf %7, %10 : vector<8x896xf32>
    %c3 = arith.constant 3 : index
    %c0_10 = arith.constant 0 : index
    %c0_11 = arith.constant 0 : index
    %12 = vector.load %arg1[%c3, %c0_10, %c0_11] : memref<4x9x896xf32, #tpu.memory_space<vmem>>, vector<1x9x896xf32>
    %13 = vector.shape_cast %12 : vector<1x9x896xf32> to vector<9x896xf32>
    %cst_12 = arith.constant dense<0.000000e+00> : vector<8x896xf32>
    %14 = tpu.matmul %0, %13, %cst_12 {dimension_numbers = #tpu.dot_dimension_numbers<[1], [0], [0], [1], [0, 0, 1, 1], [], []>} : vector<8x9xf32>, vector<9x896xf32>, vector<8x896xf32> -> vector<8x896xf32>
    %15 = arith.maximumf %11, %14 : vector<8x896xf32>
    %c0_13 = arith.constant 0 : index
    %c0_14 = arith.constant 0 : index
    %16 = vector.load %arg4[%c0_13, %c0_14] : memref<8x1xf32, #tpu.memory_space<vmem>>, vector<8x1xf32>
    %17 = vector.broadcast %16 : vector<8x1xf32> to vector<8x896xf32>
    %18 = arith.addf %15, %17 : vector<8x896xf32>
    %cst_15 = arith.constant 0.000000e+00 : f32
    %19 = vector.broadcast %cst_15 : f32 to vector<8x896xf32>
    %20 = arith.maximumf %18, %19 : vector<8x896xf32>
    %c0_16 = arith.constant 0 : index
    %c0_17 = arith.constant 0 : index
    %21 = vector.load %arg2[%c0_16, %c0_17] : memref<1x896xf32, #tpu.memory_space<vmem>>, vector<1x896xf32>
    %22 = vector.broadcast %21 : vector<1x896xf32> to vector<8x896xf32>
    %23 = arith.mulf %20, %22 : vector<8x896xf32>
    %c895_i32 = arith.constant 895 : i32
    %24 = tpu.dynamic_rotate %23 by %c895_i32 dim 1 : vector<8x896xf32>, i32 -> vector<8x896xf32>
    %c894_i32 = arith.constant 894 : i32
    %25 = tpu.dynamic_rotate %23 by %c894_i32 dim 1 : vector<8x896xf32>, i32 -> vector<8x896xf32>
    %c864_i32 = arith.constant 864 : i32
    %26 = tpu.dynamic_rotate %23 by %c864_i32 dim 1 : vector<8x896xf32>, i32 -> vector<8x896xf32>
    %c863_i32 = arith.constant 863 : i32
    %27 = tpu.dynamic_rotate %23 by %c863_i32 dim 1 : vector<8x896xf32>, i32 -> vector<8x896xf32>
    %c862_i32 = arith.constant 862 : i32
    %28 = tpu.dynamic_rotate %23 by %c862_i32 dim 1 : vector<8x896xf32>, i32 -> vector<8x896xf32>
    %c832_i32 = arith.constant 832 : i32
    %29 = tpu.dynamic_rotate %23 by %c832_i32 dim 1 : vector<8x896xf32>, i32 -> vector<8x896xf32>
    %c831_i32 = arith.constant 831 : i32
    %30 = tpu.dynamic_rotate %23 by %c831_i32 dim 1 : vector<8x896xf32>, i32 -> vector<8x896xf32>
    %c830_i32 = arith.constant 830 : i32
    %31 = tpu.dynamic_rotate %23 by %c830_i32 dim 1 : vector<8x896xf32>, i32 -> vector<8x896xf32>
    %32 = tpu.concatenate %23, %24, %25, %26, %27, %28, %29, %30, %31 in 0 : vector<8x896xf32>, vector<8x896xf32>, vector<8x896xf32>, vector<8x896xf32>, vector<8x896xf32>, vector<8x896xf32>, vector<8x896xf32>, vector<8x896xf32>, vector<8x896xf32> -> vector<72x896xf32>
    %c0_18 = arith.constant 0 : index
    %c0_19 = arith.constant 0 : index
    %33 = vector.load %arg5[%c0_18, %c0_19] : memref<40x72xf32, #tpu.memory_space<vmem>>, vector<40x72xf32>
    %cst_20 = arith.constant dense<0.000000e+00> : vector<40x896xf32>
    %34 = tpu.matmul %33, %32, %cst_20 {dimension_numbers = #tpu.dot_dimension_numbers<[1], [0], [0], [1], [0, 0, 1, 1], [], []>} : vector<40x72xf32>, vector<72x896xf32>, vector<40x896xf32> -> vector<40x896xf32>
    %c0_21 = arith.constant 0 : index
    %c0_22 = arith.constant 0 : index
    %35 = vector.load %arg6[%c0_21, %c0_22] : memref<40x1xf32, #tpu.memory_space<vmem>>, vector<40x1xf32>
    %36 = vector.broadcast %35 : vector<40x1xf32> to vector<40x896xf32>
    %37 = arith.addf %34, %36 : vector<40x896xf32>
    %cst_23 = arith.constant 0.000000e+00 : f32
    %38 = vector.broadcast %cst_23 : f32 to vector<40x896xf32>
    %39 = arith.maximumf %37, %38 : vector<40x896xf32>
    %c895_i32_24 = arith.constant 895 : i32
    %40 = tpu.dynamic_rotate %39 by %c895_i32_24 dim 1 : vector<40x896xf32>, i32 -> vector<40x896xf32>
    %41 = arith.maximumf %39, %40 : vector<40x896xf32>
    %c864_i32_25 = arith.constant 864 : i32
    %42 = tpu.dynamic_rotate %41 by %c864_i32_25 dim 1 : vector<40x896xf32>, i32 -> vector<40x896xf32>
    %43 = arith.maximumf %41, %42 : vector<40x896xf32>
    %44 = tpu.iota {dimensions = array<i32: 0>} : vector<1x128xi32>
    %45 = tpu.iota {dimensions = array<i32: 1>} : vector<1x128xi32>
    %cst_26 = arith.constant 0.000000e+00 : f32
    %46 = vector.broadcast %cst_26 : f32 to vector<1x128xf32>
    %c0_27 = arith.constant 0 : index
    %c0_28 = arith.constant 0 : index
    %47 = vector.load %arg8[%c0_27, %c0_28] : memref<1x128xf32, #tpu.memory_space<vmem>>, vector<1x128xf32>
    %48 = arith.addf %46, %47 : vector<1x128xf32>
    %c0_29 = arith.constant 0 : index
    %c0_30 = arith.constant 0 : index
    %c0_31 = arith.constant 0 : index
    %49 = vector.load %arg7[%c0_29, %c0_30, %c0_31] : memref<7x40x896xf32, #tpu.memory_space<vmem>>, vector<1x40x896xf32>
    %50 = vector.shape_cast %49 : vector<1x40x896xf32> to vector<40x896xf32>
    %51 = arith.mulf %43, %50 : vector<40x896xf32>
    %cst_32 = arith.constant dense<0.000000e+00> : vector<40xf32>
    %52 = vector.multi_reduction <add>, %51, %cst_32 [1] : vector<40x896xf32> to vector<40xf32>
    %53 = vector.shape_cast %52 : vector<40xf32> to vector<40x1xf32>
    %cst_33 = arith.constant dense<0.000000e+00> : vector<1xf32>
    %54 = vector.multi_reduction <add>, %53, %cst_33 [0] : vector<40x1xf32> to vector<1xf32>
    %55 = vector.shape_cast %54 : vector<1xf32> to vector<1x1xf32>
    %c0_i32 = arith.constant 0 : i32
    %56 = vector.broadcast %c0_i32 : i32 to vector<1x128xi32>
    %57 = arith.cmpi eq, %44, %56 : vector<1x128xi32>
    %c0_i32_34 = arith.constant 0 : i32
    %58 = vector.broadcast %c0_i32_34 : i32 to vector<1x128xi32>
    %59 = arith.cmpi eq, %45, %58 : vector<1x128xi32>
    %60 = arith.andi %57, %59 : vector<1x128xi1>
    %cst_35 = arith.constant 0.000000e+00 : f32
    %61 = vector.shape_cast %55 : vector<1x1xf32> to vector<1x1xf32>
    %62 = vector.broadcast %61 : vector<1x1xf32> to vector<1x128xf32>
    %63 = vector.broadcast %cst_35 : f32 to vector<1x128xf32>
    %64 = arith.select %60, %62, %63 : vector<1x128xi1>, vector<1x128xf32>
    %65 = arith.addf %48, %64 : vector<1x128xf32>
    %c1_36 = arith.constant 1 : index
    %c0_37 = arith.constant 0 : index
    %c0_38 = arith.constant 0 : index
    %66 = vector.load %arg7[%c1_36, %c0_37, %c0_38] : memref<7x40x896xf32, #tpu.memory_space<vmem>>, vector<1x40x896xf32>
    %67 = vector.shape_cast %66 : vector<1x40x896xf32> to vector<40x896xf32>
    %68 = arith.mulf %43, %67 : vector<40x896xf32>
    %cst_39 = arith.constant dense<0.000000e+00> : vector<40xf32>
    %69 = vector.multi_reduction <add>, %68, %cst_39 [1] : vector<40x896xf32> to vector<40xf32>
    %70 = vector.shape_cast %69 : vector<40xf32> to vector<40x1xf32>
    %cst_40 = arith.constant dense<0.000000e+00> : vector<1xf32>
    %71 = vector.multi_reduction <add>, %70, %cst_40 [0] : vector<40x1xf32> to vector<1xf32>
    %72 = vector.shape_cast %71 : vector<1xf32> to vector<1x1xf32>
    %c0_i32_41 = arith.constant 0 : i32
    %73 = vector.broadcast %c0_i32_41 : i32 to vector<1x128xi32>
    %74 = arith.cmpi eq, %44, %73 : vector<1x128xi32>
    %c1_i32 = arith.constant 1 : i32
    %75 = vector.broadcast %c1_i32 : i32 to vector<1x128xi32>
    %76 = arith.cmpi eq, %45, %75 : vector<1x128xi32>
    %77 = arith.andi %74, %76 : vector<1x128xi1>
    %cst_42 = arith.constant 0.000000e+00 : f32
    %78 = vector.shape_cast %72 : vector<1x1xf32> to vector<1x1xf32>
    %79 = vector.broadcast %78 : vector<1x1xf32> to vector<1x128xf32>
    %80 = vector.broadcast %cst_42 : f32 to vector<1x128xf32>
    %81 = arith.select %77, %79, %80 : vector<1x128xi1>, vector<1x128xf32>
    %82 = arith.addf %65, %81 : vector<1x128xf32>
    %c2_43 = arith.constant 2 : index
    %c0_44 = arith.constant 0 : index
    %c0_45 = arith.constant 0 : index
    %83 = vector.load %arg7[%c2_43, %c0_44, %c0_45] : memref<7x40x896xf32, #tpu.memory_space<vmem>>, vector<1x40x896xf32>
    %84 = vector.shape_cast %83 : vector<1x40x896xf32> to vector<40x896xf32>
    %85 = arith.mulf %43, %84 : vector<40x896xf32>
    %cst_46 = arith.constant dense<0.000000e+00> : vector<40xf32>
    %86 = vector.multi_reduction <add>, %85, %cst_46 [1] : vector<40x896xf32> to vector<40xf32>
    %87 = vector.shape_cast %86 : vector<40xf32> to vector<40x1xf32>
    %cst_47 = arith.constant dense<0.000000e+00> : vector<1xf32>
    %88 = vector.multi_reduction <add>, %87, %cst_47 [0] : vector<40x1xf32> to vector<1xf32>
    %89 = vector.shape_cast %88 : vector<1xf32> to vector<1x1xf32>
    %c0_i32_48 = arith.constant 0 : i32
    %90 = vector.broadcast %c0_i32_48 : i32 to vector<1x128xi32>
    %91 = arith.cmpi eq, %44, %90 : vector<1x128xi32>
    %c2_i32 = arith.constant 2 : i32
    %92 = vector.broadcast %c2_i32 : i32 to vector<1x128xi32>
    %93 = arith.cmpi eq, %45, %92 : vector<1x128xi32>
    %94 = arith.andi %91, %93 : vector<1x128xi1>
    %cst_49 = arith.constant 0.000000e+00 : f32
    %95 = vector.shape_cast %89 : vector<1x1xf32> to vector<1x1xf32>
    %96 = vector.broadcast %95 : vector<1x1xf32> to vector<1x128xf32>
    %97 = vector.broadcast %cst_49 : f32 to vector<1x128xf32>
    %98 = arith.select %94, %96, %97 : vector<1x128xi1>, vector<1x128xf32>
    %99 = arith.addf %82, %98 : vector<1x128xf32>
    %c3_50 = arith.constant 3 : index
    %c0_51 = arith.constant 0 : index
    %c0_52 = arith.constant 0 : index
    %100 = vector.load %arg7[%c3_50, %c0_51, %c0_52] : memref<7x40x896xf32, #tpu.memory_space<vmem>>, vector<1x40x896xf32>
    %101 = vector.shape_cast %100 : vector<1x40x896xf32> to vector<40x896xf32>
    %102 = arith.mulf %43, %101 : vector<40x896xf32>
    %cst_53 = arith.constant dense<0.000000e+00> : vector<40xf32>
    %103 = vector.multi_reduction <add>, %102, %cst_53 [1] : vector<40x896xf32> to vector<40xf32>
    %104 = vector.shape_cast %103 : vector<40xf32> to vector<40x1xf32>
    %cst_54 = arith.constant dense<0.000000e+00> : vector<1xf32>
    %105 = vector.multi_reduction <add>, %104, %cst_54 [0] : vector<40x1xf32> to vector<1xf32>
    %106 = vector.shape_cast %105 : vector<1xf32> to vector<1x1xf32>
    %c0_i32_55 = arith.constant 0 : i32
    %107 = vector.broadcast %c0_i32_55 : i32 to vector<1x128xi32>
    %108 = arith.cmpi eq, %44, %107 : vector<1x128xi32>
    %c3_i32 = arith.constant 3 : i32
    %109 = vector.broadcast %c3_i32 : i32 to vector<1x128xi32>
    %110 = arith.cmpi eq, %45, %109 : vector<1x128xi32>
    %111 = arith.andi %108, %110 : vector<1x128xi1>
    %cst_56 = arith.constant 0.000000e+00 : f32
    %112 = vector.shape_cast %106 : vector<1x1xf32> to vector<1x1xf32>
    %113 = vector.broadcast %112 : vector<1x1xf32> to vector<1x128xf32>
    %114 = vector.broadcast %cst_56 : f32 to vector<1x128xf32>
    %115 = arith.select %111, %113, %114 : vector<1x128xi1>, vector<1x128xf32>
    %116 = arith.addf %99, %115 : vector<1x128xf32>
    %c4 = arith.constant 4 : index
    %c0_57 = arith.constant 0 : index
    %c0_58 = arith.constant 0 : index
    %117 = vector.load %arg7[%c4, %c0_57, %c0_58] : memref<7x40x896xf32, #tpu.memory_space<vmem>>, vector<1x40x896xf32>
    %118 = vector.shape_cast %117 : vector<1x40x896xf32> to vector<40x896xf32>
    %119 = arith.mulf %43, %118 : vector<40x896xf32>
    %cst_59 = arith.constant dense<0.000000e+00> : vector<40xf32>
    %120 = vector.multi_reduction <add>, %119, %cst_59 [1] : vector<40x896xf32> to vector<40xf32>
    %121 = vector.shape_cast %120 : vector<40xf32> to vector<40x1xf32>
    %cst_60 = arith.constant dense<0.000000e+00> : vector<1xf32>
    %122 = vector.multi_reduction <add>, %121, %cst_60 [0] : vector<40x1xf32> to vector<1xf32>
    %123 = vector.shape_cast %122 : vector<1xf32> to vector<1x1xf32>
    %c0_i32_61 = arith.constant 0 : i32
    %124 = vector.broadcast %c0_i32_61 : i32 to vector<1x128xi32>
    %125 = arith.cmpi eq, %44, %124 : vector<1x128xi32>
    %c4_i32 = arith.constant 4 : i32
    %126 = vector.broadcast %c4_i32 : i32 to vector<1x128xi32>
    %127 = arith.cmpi eq, %45, %126 : vector<1x128xi32>
    %128 = arith.andi %125, %127 : vector<1x128xi1>
    %cst_62 = arith.constant 0.000000e+00 : f32
    %129 = vector.shape_cast %123 : vector<1x1xf32> to vector<1x1xf32>
    %130 = vector.broadcast %129 : vector<1x1xf32> to vector<1x128xf32>
    %131 = vector.broadcast %cst_62 : f32 to vector<1x128xf32>
    %132 = arith.select %128, %130, %131 : vector<1x128xi1>, vector<1x128xf32>
    %133 = arith.addf %116, %132 : vector<1x128xf32>
    %c5 = arith.constant 5 : index
    %c0_63 = arith.constant 0 : index
    %c0_64 = arith.constant 0 : index
    %134 = vector.load %arg7[%c5, %c0_63, %c0_64] : memref<7x40x896xf32, #tpu.memory_space<vmem>>, vector<1x40x896xf32>
    %135 = vector.shape_cast %134 : vector<1x40x896xf32> to vector<40x896xf32>
    %136 = arith.mulf %43, %135 : vector<40x896xf32>
    %cst_65 = arith.constant dense<0.000000e+00> : vector<40xf32>
    %137 = vector.multi_reduction <add>, %136, %cst_65 [1] : vector<40x896xf32> to vector<40xf32>
    %138 = vector.shape_cast %137 : vector<40xf32> to vector<40x1xf32>
    %cst_66 = arith.constant dense<0.000000e+00> : vector<1xf32>
    %139 = vector.multi_reduction <add>, %138, %cst_66 [0] : vector<40x1xf32> to vector<1xf32>
    %140 = vector.shape_cast %139 : vector<1xf32> to vector<1x1xf32>
    %c0_i32_67 = arith.constant 0 : i32
    %141 = vector.broadcast %c0_i32_67 : i32 to vector<1x128xi32>
    %142 = arith.cmpi eq, %44, %141 : vector<1x128xi32>
    %c5_i32 = arith.constant 5 : i32
    %143 = vector.broadcast %c5_i32 : i32 to vector<1x128xi32>
    %144 = arith.cmpi eq, %45, %143 : vector<1x128xi32>
    %145 = arith.andi %142, %144 : vector<1x128xi1>
    %cst_68 = arith.constant 0.000000e+00 : f32
    %146 = vector.shape_cast %140 : vector<1x1xf32> to vector<1x1xf32>
    %147 = vector.broadcast %146 : vector<1x1xf32> to vector<1x128xf32>
    %148 = vector.broadcast %cst_68 : f32 to vector<1x128xf32>
    %149 = arith.select %145, %147, %148 : vector<1x128xi1>, vector<1x128xf32>
    %150 = arith.addf %133, %149 : vector<1x128xf32>
    %c6 = arith.constant 6 : index
    %c0_69 = arith.constant 0 : index
    %c0_70 = arith.constant 0 : index
    %151 = vector.load %arg7[%c6, %c0_69, %c0_70] : memref<7x40x896xf32, #tpu.memory_space<vmem>>, vector<1x40x896xf32>
    %152 = vector.shape_cast %151 : vector<1x40x896xf32> to vector<40x896xf32>
    %153 = arith.mulf %43, %152 : vector<40x896xf32>
    %cst_71 = arith.constant dense<0.000000e+00> : vector<40xf32>
    %154 = vector.multi_reduction <add>, %153, %cst_71 [1] : vector<40x896xf32> to vector<40xf32>
    %155 = vector.shape_cast %154 : vector<40xf32> to vector<40x1xf32>
    %cst_72 = arith.constant dense<0.000000e+00> : vector<1xf32>
    %156 = vector.multi_reduction <add>, %155, %cst_72 [0] : vector<40x1xf32> to vector<1xf32>
    %157 = vector.shape_cast %156 : vector<1xf32> to vector<1x1xf32>
    %c0_i32_73 = arith.constant 0 : i32
    %158 = vector.broadcast %c0_i32_73 : i32 to vector<1x128xi32>
    %159 = arith.cmpi eq, %44, %158 : vector<1x128xi32>
    %c6_i32 = arith.constant 6 : i32
    %160 = vector.broadcast %c6_i32 : i32 to vector<1x128xi32>
    %161 = arith.cmpi eq, %45, %160 : vector<1x128xi32>
    %162 = arith.andi %159, %161 : vector<1x128xi1>
    %cst_74 = arith.constant 0.000000e+00 : f32
    %163 = vector.shape_cast %157 : vector<1x1xf32> to vector<1x1xf32>
    %164 = vector.broadcast %163 : vector<1x1xf32> to vector<1x128xf32>
    %165 = vector.broadcast %cst_74 : f32 to vector<1x128xf32>
    %166 = arith.select %162, %164, %165 : vector<1x128xi1>, vector<1x128xf32>
    %167 = arith.addf %150, %166 : vector<1x128xf32>
    %cst_75 = arith.constant dense<0xFF800000> : vector<1xf32>
    %168 = vector.multi_reduction <maximumf>, %167, %cst_75 [1] : vector<1x128xf32> to vector<1xf32>
    %169 = vector.shape_cast %168 : vector<1xf32> to vector<1x1xf32>
    %170 = vector.broadcast %169 : vector<1x1xf32> to vector<1x128xf32>
    %171 = arith.subf %167, %170 : vector<1x128xf32>
    %172 = math.exp %171 : vector<1x128xf32>
    %cst_76 = arith.constant dense<0.000000e+00> : vector<1xf32>
    %173 = vector.multi_reduction <add>, %172, %cst_76 [1] : vector<1x128xf32> to vector<1xf32>
    %174 = vector.shape_cast %173 : vector<1xf32> to vector<1x1xf32>
    %175 = math.log %174 : vector<1x1xf32>
    %176 = vector.broadcast %175 : vector<1x1xf32> to vector<1x128xf32>
    %177 = arith.subf %171, %176 : vector<1x128xf32>
    %c0_77 = arith.constant 0 : index
    %c0_78 = arith.constant 0 : index
    %c0_79 = arith.constant 0 : index
    %178 = vector.load %arg9[%c0_77, %c0_78, %c0_79] : memref<1x1x128xf32, #tpu.memory_space<vmem>>, vector<1x1x128xf32>
    %179 = vector.shape_cast %178 : vector<1x1x128xf32> to vector<1x128xf32>
    %180 = vector.shape_cast %177 : vector<1x128xf32> to vector<1x1x128xf32>
    tpu.vector_store %arg9[%c0_77, %c0_78, %c0_79], %180 {strides = array<i32>} : memref<1x1x128xf32, #tpu.memory_space<vmem>>, vector<1x1x128xf32>,
    return
  }
  func.func @transform_0(%arg0: i32) -> (i32, i32, i32) {
    %c0_i32 = arith.constant 0 : i32
    %c0_i32_0 = arith.constant 0 : i32
    %c0_i32_1 = arith.constant 0 : i32
    return %c0_i32, %c0_i32_0, %arg0 : i32, i32, i32
  }
  func.func @transform_1(%arg0: i32) -> (i32, i32) {
    %c0_i32 = arith.constant 0 : i32
    %c0_i32_0 = arith.constant 0 : i32
    %c0_i32_1 = arith.constant 0 : i32
    return %c0_i32, %c0_i32_0 : i32, i32
  }
  func.func @transform_2(%arg0: i32) -> (i32, i32) {
    %c0_i32 = arith.constant 0 : i32
    %c0_i32_0 = arith.constant 0 : i32
    %c0_i32_1 = arith.constant 0 : i32
    return %c0_i32, %c0_i32_0 : i32, i32
  }
  func.func @transform_3(%arg0: i32) -> (i32, i32) {
    %c0_i32 = arith.constant 0 : i32
    %c0_i32_0 = arith.constant 0 : i32
    %c0_i32_1 = arith.constant 0 : i32
    return %c0_i32, %c0_i32_0 : i32, i32
  }
  func.func @transform_4(%arg0: i32) -> (i32, i32) {
    %c0_i32 = arith.constant 0 : i32
    %c0_i32_0 = arith.constant 0 : i32
    %c0_i32_1 = arith.constant 0 : i32
    return %c0_i32, %c0_i32_0 : i32, i32
  }
  func.func @transform_5(%arg0: i32) -> (i32, i32) {
    %c0_i32 = arith.constant 0 : i32
    %c0_i32_0 = arith.constant 0 : i32
    %c0_i32_1 = arith.constant 0 : i32
    return %c0_i32, %c0_i32_0 : i32, i32
  }
  func.func @transform_6(%arg0: i32) -> (i32, i32, i32) {
    %c0_i32 = arith.constant 0 : i32
    %c0_i32_0 = arith.constant 0 : i32
    %c0_i32_1 = arith.constant 0 : i32
    %c0_i32_2 = arith.constant 0 : i32
    return %c0_i32, %c0_i32_0, %c0_i32_1 : i32, i32, i32
  }
  func.func @transform_7(%arg0: i32) -> (i32, i32) {
    %c0_i32 = arith.constant 0 : i32
    %c0_i32_0 = arith.constant 0 : i32
    %c0_i32_1 = arith.constant 0 : i32
    return %c0_i32, %c0_i32_0 : i32, i32
  }
  func.func @transform_8(%arg0: i32) -> (i32, i32, i32) {
    %c0_i32 = arith.constant 0 : i32
    %c0_i32_0 = arith.constant 0 : i32
    %c0_i32_1 = arith.constant 0 : i32
    return %arg0, %c0_i32, %c0_i32_0 : i32, i32, i32
  }
}

</mosaic_0001>

<llo_original>
// kernel: net_forward.1
$region0: #{net_forward.1}
  #allocation0 [shape = 'u32[]', space=smem, size = 0x4, offset = 0x4, fixed_abs, tag = 'smem constant byte address 0x4 - core index']
  #allocation1 [shape = 'u32[144,128]{1,0:T(1,128)}', space=vmem, size = 0x12000, scoped, tag = 'internal scratch']
  %s0 = inlined_call_operand.vmem [shape: f32[4,9,1792], index: 0, kind: input, shape index: {}]
  %s1 = inlined_call_operand.vmem [shape: f32[1,896], index: 1, kind: input, shape index: {}]
  %s2 = inlined_call_operand.vmem [shape: f32[8,9], index: 2, kind: input, shape index: {}]
  %s3 = inlined_call_operand.vmem [shape: f32[8,1], index: 3, kind: input, shape index: {}]
  %s4 = inlined_call_operand.vmem [shape: f32[40,72], index: 4, kind: input, shape index: {}]
  %s5 = inlined_call_operand.vmem [shape: f32[40,1], index: 5, kind: input, shape index: {}]
  %s6 = inlined_call_operand.vmem [shape: f32[7,40,896], index: 6, kind: input, shape index: {}]
  %s7 = inlined_call_operand.vmem [shape: f32[1,128], index: 7, kind: input, shape index: {}]
  %s8 = inlined_call_operand.hbm [shape: f32[2,1,128], index: 8, kind: output, shape index: {}]
  %s9 = sld [smem:[#allocation0]]
  $region88: #{net_forward.1} parent=0
    _
  %s11 = ssub.s32 1, %s9
  %s12 = scalar_select 0, %s11, %s9
  $region1: #{net_forward.1} parent=0
    #allocation2 [shape = 'u8[458752]{0}', space=vmem, size = 0x70000, scoped, tag = 'input window, operand 0']
    #allocation3 [shape = 'u8[1024]{0}', space=vmem, size = 0x400, scoped, tag = 'output window, operand 0']
    #allocation4 [shape = 's32[2]{0}', space=sflag, size = 0x8, scoped, tag = 'scoped memory for net_forward.1']
    %13 = vsyncpa [#allocation4], 0
    %s14 = scalar_lea.sflag [#allocation4], 1
    %15 = vsyncpa %s14, 0
    loop: start=0, step=1, limit=4
    $region2: #{net_forward.1} parent=1 // loop_pre_header
      _
    $region3: #{net_forward.1} parent=1 // loop_header
      %s17 = sphi 0, %s21
      %p18 = scmp.ge.s32.totalorder %s17, 4
      %s27 = sphi 0, %s29
      %s30 = sphi 0, %s27
      %s31 = sphi 0, %s30
      %s47 = sphi 0, %s31
      %s51 = sphi 0, %s51
      %s53 = sphi 0, %s51
      %s54 = sphi 0, %s53
      %s68 = sphi 0, %s54
      %s72 = sphi 0, %s72
      %s74 = sphi 0, %s72
      %s75 = sphi 0, %s74
      %s89 = sphi 0, %s75
      %s93 = sphi 0, %s93
      %s95 = sphi 0, %s93
      %s96 = sphi 0, %s95
      %s110 = sphi 0, %s96
      %s114 = sphi 0, %s114
      %s116 = sphi 0, %s114
      %s117 = sphi 0, %s116
      %s131 = sphi 0, %s117
      %s135 = sphi 0, %s135
      %s137 = sphi 0, %s135
      %s138 = sphi 0, %s137
      %s152 = sphi 0, %s138
      %s156 = sphi 0, %s156
      %s158 = sphi 0, %s156
      %s159 = sphi 0, %s158
      %s173 = sphi 0, %s159
      %s177 = sphi 0, %s177
      %s179 = sphi 0, %s177
      %s180 = sphi 0, %s179
      %s194 = sphi 0, %s180
      %s200 = sphi 0, %s202
      %s203 = sphi 0, %s200
      %s204 = sphi 0, %s203
      %s220 = sphi 0, %s204
    $region4: #{net_forward.1} parent=1 // loop_header_branch
      %20 = sbr.rel (%p18) target = $region8
    $region5: #{net_forward.1} parent=1 // loop_body
      %s22 = ssub.s32 %s17, 1
      %s23 = ssub.s32 %s17, 2
      %s24 = sadd.s32 %s17, 1
      %s25 = ssub.s32 %s17, %s24
      %p26 = scmp.eq.s32.totalorder %s25, 0
      %s28 = sadd.s32 %s27, 1
      %s29 = scalar_select %p26, %s27, %s28
      %p32 = pneg %p26
      %p33 = scmp.eq.s32.totalorder %s17, 1
      %p34 = por %p32, %p33
      %p35 = scmp.ne.s32.totalorder %s27, %s30
      %p36 = scmp.eq.s32.totalorder %s17, 0
      %p37 = por %p35, %p36
      %p38 = scmp.ne.s32.totalorder %s27, %s30
      %p39 = scmp.eq.s32.totalorder %s22, 1
      %p40 = por %p38, %p39
      %p41 = scmp.ne.s32.totalorder %s30, %s31
      %p42 = scmp.eq.s32.totalorder %s22, 0
      %p43 = por %p41, %p42
      %p44 = scmp.ne.s32.totalorder %s30, %s31
      %p45 = scmp.eq.s32.totalorder %s23, 1
      %p46 = por %p44, %p45
      %p48 = scmp.ne.s32.totalorder %s31, %s47
      %p49 = scmp.eq.s32.totalorder %s23, 0
      %p50 = por %p48, %p49
      %s52 = sadd.s32 %s51, 1
      %p55 = scmp.eq.s32.totalorder %s17, 1
      %p56 = scmp.ne.s32.totalorder %s51, %s53
      %p57 = scmp.eq.s32.totalorder %s17, 0
      %p58 = por %p56, %p57
      %p59 = scmp.ne.s32.totalorder %s51, %s53
      %p60 = scmp.eq.s32.totalorder %s22, 1
      %p61 = por %p59, %p60
      %p62 = scmp.ne.s32.totalorder %s53, %s54
      %p63 = scmp.eq.s32.totalorder %s22, 0
      %p64 = por %p62, %p63
      %p65 = scmp.ne.s32.totalorder %s53, %s54
      %p66 = scmp.eq.s32.totalorder %s23, 1
      %p67 = por %p65, %p66
      %p69 = scmp.ne.s32.totalorder %s54, %s68
      %p70 = scmp.eq.s32.totalorder %s23, 0
      %p71 = por %p69, %p70
      %s73 = sadd.s32 %s72, 1
      %p76 = scmp.eq.s32.totalorder %s17, 1
      %p77 = scmp.ne.s32.totalorder %s72, %s74
      %p78 = scmp.eq.s32.totalorder %s17, 0
      %p79 = por %p77, %p78
      %p80 = scmp.ne.s32.totalorder %s72, %s74
      %p81 = scmp.eq.s32.totalorder %s22, 1
      %p82 = por %p80, %p81
      %p83 = scmp.ne.s32.totalorder %s74, %s75
      %p84 = scmp.eq.s32.totalorder %s22, 0
      %p85 = por %p83, %p84
      %p86 = scmp.ne.s32.totalorder %s74, %s75
      %p87 = scmp.eq.s32.totalorder %s23, 1
      %p88 = por %p86, %p87
      %p90 = scmp.ne.s32.totalorder %s75, %s89
      %p91 = scmp.eq.s32.totalorder %s23, 0
      %p92 = por %p90, %p91
      %s94 = sadd.s32 %s93, 1
      %p97 = scmp.eq.s32.totalorder %s17, 1
      %p98 = scmp.ne.s32.totalorder %s93, %s95
      %p99 = scmp.eq.s32.totalorder %s17, 0
      %p100 = por %p98, %p99
      %p101 = scmp.ne.s32.totalorder %s93, %s95
      %p102 = scmp.eq.s32.totalorder %s22, 1
      %p103 = por %p101, %p102
      %p104 = scmp.ne.s32.totalorder %s95, %s96
      %p105 = scmp.eq.s32.totalorder %s22, 0
      %p106 = por %p104, %p105
      %p107 = scmp.ne.s32.totalorder %s95, %s96
      %p108 = scmp.eq.s32.totalorder %s23, 1
      %p109 = por %p107, %p108
      %p111 = scmp.ne.s32.totalorder %s96, %s110
      %p112 = scmp.eq.s32.totalorder %s23, 0
      %p113 = por %p111, %p112
      %s115 = sadd.s32 %s114, 1
      %p118 = scmp.eq.s32.totalorder %s17, 1
      %p119 = scmp.ne.s32.totalorder %s114, %s116
      %p120 = scmp.eq.s32.totalorder %s17, 0
      %p121 = por %p119, %p120
      %p122 = scmp.ne.s32.totalorder %s114, %s116
      %p123 = scmp.eq.s32.totalorder %s22, 1
      %p124 = por %p122, %p123
      %p125 = scmp.ne.s32.totalorder %s116, %s117
      %p126 = scmp.eq.s32.totalorder %s22, 0
      %p127 = por %p125, %p126
      %p128 = scmp.ne.s32.totalorder %s116, %s117
      %p129 = scmp.eq.s32.totalorder %s23, 1
      %p130 = por %p128, %p129
      %p132 = scmp.ne.s32.totalorder %s117, %s131
      %p133 = scmp.eq.s32.totalorder %s23, 0
      %p134 = por %p132, %p133
      %s136 = sadd.s32 %s135, 1
      %p139 = scmp.eq.s32.totalorder %s17, 1
      %p140 = scmp.ne.s32.totalorder %s135, %s137
      %p141 = scmp.eq.s32.totalorder %s17, 0
      %p142 = por %p140, %p141
      %p143 = scmp.ne.s32.totalorder %s135, %s137
      %p144 = scmp.eq.s32.totalorder %s22, 1
      %p145 = por %p143, %p144
      %p146 = scmp.ne.s32.totalorder %s137, %s138
      %p147 = scmp.eq.s32.totalorder %s22, 0
      %p148 = por %p146, %p147
      %p149 = scmp.ne.s32.totalorder %s137, %s138
      %p150 = scmp.eq.s32.totalorder %s23, 1
      %p151 = por %p149, %p150
      %p153 = scmp.ne.s32.totalorder %s138, %s152
      %p154 = scmp.eq.s32.totalorder %s23, 0
      %p155 = por %p153, %p154
      %s157 = sadd.s32 %s156, 1
      %p160 = scmp.eq.s32.totalorder %s17, 1
      %p161 = scmp.ne.s32.totalorder %s156, %s158
      %p162 = scmp.eq.s32.totalorder %s17, 0
      %p163 = por %p161, %p162
      %p164 = scmp.ne.s32.totalorder %s156, %s158
      %p165 = scmp.eq.s32.totalorder %s22, 1
      %p166 = por %p164, %p165
      %p167 = scmp.ne.s32.totalorder %s158, %s159
      %p168 = scmp.eq.s32.totalorder %s22, 0
      %p169 = por %p167, %p168
      %p170 = scmp.ne.s32.totalorder %s158, %s159
      %p171 = scmp.eq.s32.totalorder %s23, 1
      %p172 = por %p170, %p171
      %p174 = scmp.ne.s32.totalorder %s159, %s173
      %p175 = scmp.eq.s32.totalorder %s23, 0
      %p176 = por %p174, %p175
      %s178 = sadd.s32 %s177, 1
      %p181 = scmp.eq.s32.totalorder %s17, 1
      %p182 = scmp.ne.s32.totalorder %s177, %s179
      %p183 = scmp.eq.s32.totalorder %s17, 0
      %p184 = por %p182, %p183
      %p185 = scmp.ne.s32.totalorder %s177, %s179
      %p186 = scmp.eq.s32.totalorder %s22, 1
      %p187 = por %p185, %p186
      %p188 = scmp.ne.s32.totalorder %s179, %s180
      %p189 = scmp.eq.s32.totalorder %s22, 0
      %p190 = por %p188, %p189
      %p191 = scmp.ne.s32.totalorder %s179, %s180
      %p192 = scmp.eq.s32.totalorder %s23, 1
      %p193 = por %p191, %p192
      %p195 = scmp.ne.s32.totalorder %s180, %s194
      %p196 = scmp.eq.s32.totalorder %s23, 0
      %p197 = por %p195, %p196
      %s198 = ssub.s32 %s17, %s24
      %p199 = scmp.eq.s32.totalorder %s198, 0
      %s201 = sadd.s32 %s200, 1
      %s202 = scalar_select %p199, %s200, %s201
      %p205 = pneg %p199
      %p206 = scmp.eq.s32.totalorder %s17, 1
      %p207 = por %p205, %p206
      %p208 = scmp.ne.s32.totalorder %s200, %s203
      %p209 = scmp.eq.s32.totalorder %s17, 0
      %p210 = por %p208, %p209
      %p211 = scmp.ne.s32.totalorder %s200, %s203
      %p212 = scmp.eq.s32.totalorder %s22, 1
      %p213 = por %p211, %p212
      %p214 = scmp.ne.s32.totalorder %s203, %s204
      %p215 = scmp.eq.s32.totalorder %s22, 0
      %p216 = por %p214, %p215
      %p217 = scmp.ne.s32.totalorder %s203, %s204
      %p218 = scmp.eq.s32.totalorder %s23, 1
      %p219 = por %p217, %p218
      %p221 = scmp.ne.s32.totalorder %s204, %s220
      %p222 = scmp.eq.s32.totalorder %s23, 0
      %p223 = por %p221, %p222
      %p224 = scmp.le.s32.totalorder 1, %s17
      %p225 = scmp.lt.s32.totalorder %s17, 3
      %p226 = pnand %p224, %p225
      %p227 = pneg %p226
      // Predicated region
      $region9: #{net_forward.1} parent=5 // pred_check
        _
      $region10: #{net_forward.1} parent=5 // pred_check_branch
        %229 = sbr.rel (%p226) target = $region12
      $region11: #{net_forward.1} parent=5 // pred_region
        %s230 = ssub.s32 %s17, 1
        // Predicated region
        $region13: #{net_forward.1} parent=11 // pred_check
          %p231 = pneg %p64
        $region14: #{net_forward.1} parent=11 // pred_check_branch
          %233 = sbr.rel (%p231) target = $region16
        $region15: #{net_forward.1} parent=11 // pred_region
          _
        $region16: #{net_forward.1} parent=11 // pred_fallthru
          _
        // Predicated region
        $region17: #{net_forward.1} parent=11 // pred_check
          %p234 = pneg %p85
        $region18: #{net_forward.1} parent=11 // pred_check_branch
          %236 = sbr.rel (%p234) target = $region20
        $region19: #{net_forward.1} parent=11 // pred_region
          _
        $region20: #{net_forward.1} parent=11 // pred_fallthru
          _
        // Predicated region
        $region21: #{net_forward.1} parent=11 // pred_check
          %p237 = pneg %p106
        $region22: #{net_forward.1} parent=11 // pred_check_branch
          %239 = sbr.rel (%p237) target = $region24
        $region23: #{net_forward.1} parent=11 // pred_region
          _
        $region24: #{net_forward.1} parent=11 // pred_fallthru
          _
        // Predicated region
        $region25: #{net_forward.1} parent=11 // pred_check
          %p240 = pneg %p127
        $region26: #{net_forward.1} parent=11 // pred_check_branch
          %242 = sbr.rel (%p240) target = $region28
        $region27: #{net_forward.1} parent=11 // pred_region
          _
        $region28: #{net_forward.1} parent=11 // pred_fallthru
          _
        // Predicated region
        $region29: #{net_forward.1} parent=11 // pred_check
          %p243 = pneg %p148
        $region30: #{net_forward.1} parent=11 // pred_check_branch
          %245 = sbr.rel (%p243) target = $region32
        $region31: #{net_forward.1} parent=11 // pred_region
          _
        $region32: #{net_forward.1} parent=11 // pred_fallthru
          _
        // Predicated region
        $region33: #{net_forward.1} parent=11 // pred_check
          %p246 = pneg %p169
        $region34: #{net_forward.1} parent=11 // pred_check_branch
          %248 = sbr.rel (%p246) target = $region36
        $region35: #{net_forward.1} parent=11 // pred_region
          _
        $region36: #{net_forward.1} parent=11 // pred_fallthru
          _
        // Predicated region
        $region37: #{net_forward.1} parent=11 // pred_check
          %p249 = pneg %p190
        $region38: #{net_forward.1} parent=11 // pred_check_branch
          %251 = sbr.rel (%p249) target = $region40
        $region39: #{net_forward.1} parent=11 // pred_region
          _
        $region40: #{net_forward.1} parent=11 // pred_fallthru
          _
      $region12: #{net_forward.1} parent=5 // pred_fallthru
        _
      %p252 = scmp.lt.s32.totalorder %s17, 2
      // Predicated region
      $region41: #{net_forward.1} parent=5 // pred_check
        %p253 = pneg %p252
      $region42: #{net_forward.1} parent=5 // pred_check_branch
        %255 = sbr.rel (%p253) target = $region44
      $region43: #{net_forward.1} parent=5 // pred_region
        // Predicated region
        $region45: #{net_forward.1} parent=43 // pred_check
          %p256 = pneg %p37
        $region46: #{net_forward.1} parent=43 // pred_check_branch
          %258 = sbr.rel (%p256) target = $region48
        $region47: #{net_forward.1} parent=43 // pred_region
          %s259 = sand.u32 %s27, 1
          %s260 = sand.u32 %s27, 1
          %s261 = smul.addr %s260, 448
          %s262 = scalar_lea.vmem [#allocation2], %s261
          %s263 = smul.u32 7, %s17
          %s264 = smul.addr %s263, 8
          %s265 = scalar_lea.vmem %s0, %s264
          // Predicated region
          $region49: #{net_forward.1} parent=47 // pred_check
            _
          $region50: #{net_forward.1} parent=47 // pred_check_branch
            %267 = sbr.rel (0) target = $region52
          $region51: #{net_forward.1} parent=47 // pred_region
            // Predicated region
            $region53: #{net_forward.1} parent=51 // pred_check
              _
            $region54: #{net_forward.1} parent=51 // pred_check_branch
              %269 = sbr.rel (0) target = $region56
            $region55: #{net_forward.1} parent=51 // pred_region
              loop: start=0, step=1, limit=1
              $region57: #{net_forward.1} parent=55 // loop_pre_header
                _
              $region58: #{net_forward.1} parent=55 // loop_header
                %s271 = sphi 0, %s275
                %p272 = scmp.ge.s32.totalorder %s271, 1
                %s276 = sphi %s265, %s265
                %s277 = sphi %s262, %s262
              $region59: #{net_forward.1} parent=55 // loop_header_branch
                %274 = sbr.rel (%p272) target = $region63
              $region60: #{net_forward.1} parent=55 // loop_body
                %v278 = vld [vmem:[%s276] sm:$0xff]
                %279 = vst [vmem:[%s277] sm:$0xff] %v278
                %v280 = vld [vmem:[%s276 + $0x8] sm:$0xff]
                %281 = vst [vmem:[%s277 + $0x8] sm:$0xff] %v280
                %v282 = vld [vmem:[%s276 + $0x10] sm:$0xff]
                %283 = vst [vmem:[%s277 + $0x10] sm:$0xff] %v282
                %v284 = vld [vmem:[%s276 + $0x18] sm:$0xff]
                %285 = vst [vmem:[%s277 + $0x18] sm:$0xff] %v284
                %v286 = vld [vmem:[%s276 + $0x20] sm:$0xff]
                %287 = vst [vmem:[%s277 + $0x20] sm:$0xff] %v286
                %v288 = vld [vmem:[%s276 + $0x28] sm:$0xff]
                %289 = vst [vmem:[%s277 + $0x28] sm:$0xff] %v288
                %v290 = vld [vmem:[%s276 + $0x30] sm:$0xff]
                %291 = vst [vmem:[%s277 + $0x30] sm:$0xff] %v290
                %v292 = vld [vmem:[%s276 + $0x70] sm:$0xff]
                %293 = vst [vmem:[%s277 + $0x38] sm:$0xff] %v292
                %v294 = vld [vmem:[%s276 + $0x78] sm:$0xff]
                %295 = vst [vmem:[%s277 + $0x40] sm:$0xff] %v294
                %v296 = vld [vmem:[%s276 + $0x80] sm:$0xff]
                %297 = vst [vmem:[%s277 + $0x48] sm:$0xff] %v296
                %v298 = vld [vmem:[%s276 + $0x88] sm:$0xff]
                %299 = vst [vmem:[%s277 + $0x50] sm:$0xff] %v298
                %v300 = vld [vmem:[%s276 + $0x90] sm:$0xff]
                %301 = vst [vmem:[%s277 + $0x58] sm:$0xff] %v300
                %v302 = vld [vmem:[%s276 + $0x98] sm:$0xff]
                %303 = vst [vmem:[%s277 + $0x60] sm:$0xff] %v302
                %v304 = vld [vmem:[%s276 + $0xa0] sm:$0xff]
                %305 = vst [vmem:[%s277 + $0x68] sm:$0xff] %v304
                %v306 = vld [vmem:[%s276 + $0xe0] sm:$0xff]
                %307 = vst [vmem:[%s277 + $0x70] sm:$0xff] %v306
                %v308 = vld [vmem:[%s276 + $0xe8] sm:$0xff]
                %309 = vst [vmem:[%s277 + $0x78] sm:$0xff] %v308
                %v310 = vld [vmem:[%s276 + $0xf0] sm:$0xff]
                %311 = vst [vmem:[%s277 + $0x80] sm:$0xff] %v310
                %v312 = vld [vmem:[%s276 + $0xf8] sm:$0xff]
                %313 = vst [vmem:[%s277 + $0x88] sm:$0xff] %v312
                %v314 = vld [vmem:[%s276 + $0x100] sm:$0xff]
                %315 = vst [vmem:[%s277 + $0x90] sm:$0xff] %v314
                %v316 = vld [vmem:[%s276 + $0x108] sm:$0xff]
                %317 = vst [vmem:[%s277 + $0x98] sm:$0xff] %v316
                %v318 = vld [vmem:[%s276 + $0x110] sm:$0xff]
                %319 = vst [vmem:[%s277 + $0xa0] sm:$0xff] %v318
                %v320 = vld [vmem:[%s276 + $0x150] sm:$0xff]
                %321 = vst [vmem:[%s277 + $0xa8] sm:$0xff] %v320
                %v322 = vld [vmem:[%s276 + $0x158] sm:$0xff]
                %323 = vst [vmem:[%s277 + $0xb0] sm:$0xff] %v322
                %v324 = vld [vmem:[%s276 + $0x160] sm:$0xff]
                %325 = vst [vmem:[%s277 + $0xb8] sm:$0xff] %v324
                %v326 = vld [vmem:[%s276 + $0x168] sm:$0xff]
                %327 = vst [vmem:[%s277 + $0xc0] sm:$0xff] %v326
                %v328 = vld [vmem:[%s276 + $0x170] sm:$0xff]
                %329 = vst [vmem:[%s277 + $0xc8] sm:$0xff] %v328
                %v330 = vld [vmem:[%s276 + $0x178] sm:$0xff]
                %331 = vst [vmem:[%s277 + $0xd0] sm:$0xff] %v330
                %v332 = vld [vmem:[%s276 + $0x180] sm:$0xff]
                %333 = vst [vmem:[%s277 + $0xd8] sm:$0xff] %v332
                %v334 = vld [vmem:[%s276 + $0x1c0] sm:$0xff]
                %335 = vst [vmem:[%s277 + $0xe0] sm:$0xff] %v334
                %v336 = vld [vmem:[%s276 + $0x1c8] sm:$0xff]
                %337 = vst [vmem:[%s277 + $0xe8] sm:$0xff] %v336
                %v338 = vld [vmem:[%s276 + $0x1d0] sm:$0xff]
                %339 = vst [vmem:[%s277 + $0xf0] sm:$0xff] %v338
                %v340 = vld [vmem:[%s276 + $0x1d8] sm:$0xff]
                %341 = vst [vmem:[%s277 + $0xf8] sm:$0xff] %v340
                %v342 = vld [vmem:[%s276 + $0x1e0] sm:$0xff]
                %343 = vst [vmem:[%s277 + $0x100] sm:$0xff] %v342
                %v344 = vld [vmem:[%s276 + $0x1e8] sm:$0xff]
                %345 = vst [vmem:[%s277 + $0x108] sm:$0xff] %v344
                %v346 = vld [vmem:[%s276 + $0x1f0] sm:$0xff]
                %347 = vst [vmem:[%s277 + $0x110] sm:$0xff] %v346
                %v348 = vld [vmem:[%s276 + $0x230] sm:$0xff]
                %349 = vst [vmem:[%s277 + $0x118] sm:$0xff] %v348
                %v350 = vld [vmem:[%s276 + $0x238] sm:$0xff]
                %351 = vst [vmem:[%s277 + $0x120] sm:$0xff] %v350
                %v352 = vld [vmem:[%s276 + $0x240] sm:$0xff]
                %353 = vst [vmem:[%s277 + $0x128] sm:$0xff] %v352
                %v354 = vld [vmem:[%s276 + $0x248] sm:$0xff]
                %355 = vst [vmem:[%s277 + $0x130] sm:$0xff] %v354
                %v356 = vld [vmem:[%s276 + $0x250] sm:$0xff]
                %357 = vst [vmem:[%s277 + $0x138] sm:$0xff] %v356
                %v358 = vld [vmem:[%s276 + $0x258] sm:$0xff]
                %359 = vst [vmem:[%s277 + $0x140] sm:$0xff] %v358
                %v360 = vld [vmem:[%s276 + $0x260] sm:$0xff]
                %361 = vst [vmem:[%s277 + $0x148] sm:$0xff] %v360
                %v362 = vld [vmem:[%s276 + $0x2a0] sm:$0xff]
                %363 = vst [vmem:[%s277 + $0x150] sm:$0xff] %v362
                %v364 = vld [vmem:[%s276 + $0x2a8] sm:$0xff]
                %365 = vst [vmem:[%s277 + $0x158] sm:$0xff] %v364
                %v366 = vld [vmem:[%s276 + $0x2b0] sm:$0xff]
                %367 = vst [vmem:[%s277 + $0x160] sm:$0xff] %v366
                %v368 = vld [vmem:[%s276 + $0x2b8] sm:$0xff]
                %369 = vst [vmem:[%s277 + $0x168] sm:$0xff] %v368
                %v370 = vld [vmem:[%s276 + $0x2c0] sm:$0xff]
                %371 = vst [vmem:[%s277 + $0x170] sm:$0xff] %v370
                %v372 = vld [vmem:[%s276 + $0x2c8] sm:$0xff]
                %373 = vst [vmem:[%s277 + $0x178] sm:$0xff] %v372
                %v374 = vld [vmem:[%s276 + $0x2d0] sm:$0xff]
                %375 = vst [vmem:[%s277 + $0x180] sm:$0xff] %v374
                %v376 = vld [vmem:[%s276 + $0x310] sm:$0xff]
                %377 = vst [vmem:[%s277 + $0x188] sm:$0xff] %v376
                %v378 = vld [vmem:[%s276 + $0x318] sm:$0xff]
                %379 = vst [vmem:[%s277 + $0x190] sm:$0xff] %v378
                %v380 = vld [vmem:[%s276 + $0x320] sm:$0xff]
                %381 = vst [vmem:[%s277 + $0x198] sm:$0xff] %v380
                %v382 = vld [vmem:[%s276 + $0x328] sm:$0xff]
                %383 = vst [vmem:[%s277 + $0x1a0] sm:$0xff] %v382
                %v384 = vld [vmem:[%s276 + $0x330] sm:$0xff]
                %385 = vst [vmem:[%s277 + $0x1a8] sm:$0xff] %v384
                %v386 = vld [vmem:[%s276 + $0x338] sm:$0xff]
                %387 = vst [vmem:[%s277 + $0x1b0] sm:$0xff] %v386
                %v388 = vld [vmem:[%s276 + $0x340] sm:$0xff]
                %389 = vst [vmem:[%s277 + $0x1b8] sm:$0xff] %v388
              $region61: #{net_forward.1} parent=55 // loop_footer
                %s275 = sadd.s32 1, %s271
              $region62: #{net_forward.1} parent=55 // loop_footer_branch
                %270 = sbr.rel target = $region58
              $region63: #{net_forward.1} parent=55 // loop_exit
                _
            $region56: #{net_forward.1} parent=51 // pred_fallthru
              _
            // Predicated region
            $region64: #{net_forward.1} parent=51 // pred_check
              _
            $region65: #{net_forward.1} parent=51 // pred_check_branch
              %391 = sbr.rel target = $region67
            $region66: #{net_forward.1} parent=51 // pred_region
              _
            $region67: #{net_forward.1} parent=51 // pred_fallthru
              _
          $region52: #{net_forward.1} parent=47 // pred_fallthru
            _
          %392 = vnop
        $region48: #{net_forward.1} parent=43 // pred_fallthru
          _
      $region44: #{net_forward.1} parent=5 // pred_fallthru
        _
      %p393 = scmp.le.s32.totalorder 1, %s17
      %p394 = scmp.lt.s32.totalorder %s17, 3
      %p395 = pnand %p393, %p394
      %p396 = pneg %p395
      // Predicated region
      $region68: #{net_forward.1} parent=5 // pred_check
        _
      $region69: #{net_forward.1} parent=5 // pred_check_branch
        %398 = sbr.rel (%p395) target = $region71
      $region70: #{net_forward.1} parent=5 // pred_region
        %s399 = ssub.s32 %s17, 1
        %s400 = sand.u32 %s30, 1
        %s401 = sand.u32 %s30, 1
        %s402 = smul.addr %s401, 448
        %s403 = scalar_lea.vmem [#allocation2], %s402
        // Predicated region
        $region72: #{net_forward.1} parent=70 // pred_check
          %p404 = pneg %p43
        $region73: #{net_forward.1} parent=70 // pred_check_branch
          %406 = sbr.rel (%p404) target = $region75
        $region74: #{net_forward.1} parent=70 // pred_region
          _
        $region75: #{net_forward.1} parent=70 // pred_fallthru
          _
        %s407 = sand.u32 %s30, 1
        %s408 = sand.u32 %s30, 1
        %s409 = smul.addr %s408, 448
        %s410 = scalar_lea.vmem [#allocation2], %s409
        %p411 = pneg %p43
        %p412 = pneg %p40
        %p413 = pneg %p64
        %p414 = pneg %p61
        %p415 = pneg %p85
        %p416 = pneg %p82
        %p417 = pneg %p106
        %p418 = pneg %p103
        %p419 = pneg %p127
        %p420 = pneg %p124
        %p421 = pneg %p148
        %p422 = pneg %p145
        %p423 = pneg %p169
        %p424 = pneg %p166
        %p425 = pneg %p190
        %p426 = pneg %p187
        %p427 = pneg %p216
        %p428 = pneg %p213
        %s429 = sand.u32 %s203, 1
        %s430 = scalar_lea.sflag [#allocation4], %s429
        %s431 = sand.u32 %s203, 1
        %s432 = scalar_lea.vmem [#allocation3], %s431
        %s433 = smul.u32 7, %s22
        %v434 = vld [vmem:[%s2] sm:$0xff]
        %v435 = vld [vmem:[%s403] sm:$0xff]
        %v436 = vld [vmem:[%s403 + $0x8] sm:$0xff]
        %v437 = vld [vmem:[%s403 + $0x10] sm:$0xff]
        %v438 = vld [vmem:[%s403 + $0x18] sm:$0xff]
        %v439 = vld [vmem:[%s403 + $0x20] sm:$0xff]
        %v440 = vld [vmem:[%s403 + $0x28] sm:$0xff]
        %v441 = vld [vmem:[%s403 + $0x30] sm:$0xff]
        %v442 = vld [vmem:[%s403 + $0x38] sm:$0x1]
        %v443 = vld [vmem:[%s403 + $0x40] sm:$0x1]
        %v444 = vld [vmem:[%s403 + $0x48] sm:$0x1]
        %v445 = vld [vmem:[%s403 + $0x50] sm:$0x1]
        %v446 = vld [vmem:[%s403 + $0x58] sm:$0x1]
        %v447 = vld [vmem:[%s403 + $0x60] sm:$0x1]
        %v448 = vld [vmem:[%s403 + $0x68] sm:$0x1]
        %vm449 = vcmask 72704
        %v451 = vsel %vm449, %v434, 0
        %vm453 = vcmask 1040384
        %v455 = vsel %vm453, %v442, 0
        %v458 = vsel %vm453, %v443, 0
        %v461 = vsel %vm453, %v444, 0
        %v464 = vsel %vm453, %v445, 0
        %v467 = vsel %vm453, %v446, 0
        %v470 = vsel %vm453, %v447, 0
        %v473 = vsel %vm453, %v448, 0
        %475 = vmatprep.subr.mxu0 %v436
        %476 = vmatpush1.msra.mxu0 %v435
        %477 = vmatprep.subr.mxu0 %v458
        %478 = vmatpush1.msra.mxu0 %v455
        %479 = vmatprep.subr.mxu0 0.0
        %480 = vmatpush1.msra.mxu0 0.0
        %481 = vmatprep.subr.mxu0 0.0
        %482 = vmatpush1.msra.mxu0 0.0
        %483 = vmatprep.subr.mxu0 0.0
        %484 = vmatpush1.msra.mxu0 0.0
        %485 = vmatprep.subr.mxu0 0.0
        %486 = vmatpush1.msra.mxu0 0.0
        %487 = vmatprep.subr.mxu0 0.0
        %488 = vmatpush1.msra.mxu0 0.0
        %489 = vmatprep.subr.mxu0 0.0
        %490 = vmatpush1.msra.mxu0 0.0
        %491 = vmatprep.subr.mxu0 0.0
        %492 = vmatpush1.msra.mxu0 0.0
        %493 = vmatprep.subr.mxu0 0.0
        %494 = vmatpush1.msra.mxu0 0.0
        %495 = vmatprep.subr.mxu0 0.0
        %496 = vmatpush1.msra.mxu0 0.0
        %497 = vmatprep.subr.mxu0 0.0
        %498 = vmatpush1.msra.mxu0 0.0
        %499 = vmatprep.subr.mxu0 0.0
        %500 = vmatpush1.msra.mxu0 0.0
        %501 = vmatprep.subr.mxu0 0.0
        %502 = vmatpush1.msra.mxu0 0.0
        %503 = vmatprep.subr.mxu0 0.0
        %504 = vmatpush1.msra.mxu0 0.0
        %505 = vmatprep.subr.mxu0 0.0
        %506 = vmatpush1.msra.mxu0 0.0
        %507 = vmatprep.subr.mxu0 0.0
        %508 = vmatpush1.msra.mxu0 0.0
        %509 = vmatprep.subr.mxu0 0.0
        %510 = vmatpush1.msra.mxu0 0.0
        %511 = vmatprep.subr.mxu0 0.0
        %512 = vmatpush1.msra.mxu0 0.0
        %513 = vmatprep.subr.mxu0 0.0
        %514 = vmatpush1.msra.mxu0 0.0
        %515 = vmatprep.subr.mxu0 0.0
        %516 = vmatpush1.msra.mxu0 0.0
        %517 = vmatprep.subr.mxu0 0.0
        %518 = vmatpush1.msra.mxu0 0.0
        %519 = vmatprep.subr.mxu0 0.0
        %520 = vmatpush1.msra.mxu0 0.0
        %521 = vmatprep.subr.mxu0 0.0
        %522 = vmatpush1.msra.mxu0 0.0
        %523 = vmatprep.subr.mxu0 0.0
        %524 = vmatpush1.msra.mxu0 0.0
        %525 = vmatprep.subr.mxu0 0.0
        %526 = vmatpush1.msra.mxu0 0.0
        %527 = vmatprep.subr.mxu0 0.0
        %528 = vmatpush1.msra.mxu0 0.0
        %529 = vmatprep.subr.mxu0 0.0
        %530 = vmatpush1.msra.mxu0 0.0
        %531 = vmatprep.subr.mxu0 0.0
        %532 = vmatpush1.msra.mxu0 0.0
        %533 = vmatprep.subr.mxu0 0.0
        %534 = vmatpush1.msra.mxu0 0.0
        %535 = vmatprep.subr.mxu0 0.0
        %536 = vmatpush1.msra.mxu0 0.0
        %537 = vmatprep.subr.mxu0 0.0
        %538 = vmatpush1.msra.mxu0 0.0
        %539 = vmatprep.mubr.f32.mxu0 0.0
        %540 = vmatmul.mubr.f32.gmra.mrb[0].mxu0 %v451
        %v541 = vpop.f32.mrb[0].mxu0
        %v542 = vadd.f32 0.0, %v541
        %v543 = vpop.f32.mrb[0].mxu0
        %v544 = vadd.f32 0.0, %v543
        %545 = vdwg.mxu0
        %546 = vmatprep.subr.mxu0 %v438
        %547 = vmatpush1.msra.mxu0 %v437
        %548 = vmatprep.subr.mxu0 %v464
        %549 = vmatpush1.msra.mxu0 %v461
        %550 = vmatprep.subr.mxu0 0.0
        %551 = vmatpush1.msra.mxu0 0.0
        %552 = vmatprep.subr.mxu0 0.0
        %553 = vmatpush1.msra.mxu0 0.0
        %554 = vmatprep.subr.mxu0 0.0
        %555 = vmatpush1.msra.mxu0 0.0
        %556 = vmatprep.subr.mxu0 0.0
        %557 = vmatpush1.msra.mxu0 0.0
        %558 = vmatprep.subr.mxu0 0.0
        %559 = vmatpush1.msra.mxu0 0.0
        %560 = vmatprep.subr.mxu0 0.0
        %561 = vmatpush1.msra.mxu0 0.0
        %562 = vmatprep.subr.mxu0 0.0
        %563 = vmatpush1.msra.mxu0 0.0
        %564 = vmatprep.subr.mxu0 0.0
        %565 = vmatpush1.msra.mxu0 0.0
        %566 = vmatprep.subr.mxu0 0.0
        %567 = vmatpush1.msra.mxu0 0.0
        %568 = vmatprep.subr.mxu0 0.0
        %569 = vmatpush1.msra.mxu0 0.0
        %570 = vmatprep.subr.mxu0 0.0
        %571 = vmatpush1.msra.mxu0 0.0
        %572 = vmatprep.subr.mxu0 0.0
        %573 = vmatpush1.msra.mxu0 0.0
        %574 = vmatprep.subr.mxu0 0.0
        %575 = vmatpush1.msra.mxu0 0.0
        %576 = vmatprep.subr.mxu0 0.0
        %577 = vmatpush1.msra.mxu0 0.0
        %578 = vmatprep.subr.mxu0 0.0
        %579 = vmatpush1.msra.mxu0 0.0
        %580 = vmatprep.subr.mxu0 0.0
        %581 = vmatpush1.msra.mxu0 0.0
        %582 = vmatprep.subr.mxu0 0.0
        %583 = vmatpush1.msra.mxu0 0.0
        %584 = vmatprep.subr.mxu0 0.0
        %585 = vmatpush1.msra.mxu0 0.0
        %586 = vmatprep.subr.mxu0 0.0
        %587 = vmatpush1.msra.mxu0 0.0
        %588 = vmatprep.subr.mxu0 0.0
        %589 = vmatpush1.msra.mxu0 0.0
        %590 = vmatprep.subr.mxu0 0.0
        %591 = vmatpush1.msra.mxu0 0.0
        %592 = vmatprep.subr.mxu0 0.0
        %593 = vmatpush1.msra.mxu0 0.0
        %594 = vmatprep.subr.mxu0 0.0
        %595 = vmatpush1.msra.mxu0 0.0
        %596 = vmatprep.subr.mxu0 0.0
        %597 = vmatpush1.msra.mxu0 0.0
        %598 = vmatprep.subr.mxu0 0.0
        %599 = vmatpush1.msra.mxu0 0.0
        %600 = vmatprep.subr.mxu0 0.0
        %601 = vmatpush1.msra.mxu0 0.0
        %602 = vmatprep.subr.mxu0 0.0
        %603 = vmatpush1.msra.mxu0 0.0
        %604 = vmatprep.subr.mxu0 0.0
        %605 = vmatpush1.msra.mxu0 0.0
        %606 = vmatprep.subr.mxu0 0.0
        %607 = vmatpush1.msra.mxu0 0.0
        %608 = vmatprep.subr.mxu0 0.0
        %609 = vmatpush1.msra.mxu0 0.0
        %610 = vmatprep.mubr.f32.mxu0 0.0
        %611 = vmatmul.mubr.f32.gmra.mrb[0].mxu0 %v451
        %v612 = vpop.f32.mrb[0].mxu0
        %v613 = vadd.f32 0.0, %v612
        %v614 = vpop.f32.mrb[0].mxu0
        %v615 = vadd.f32 0.0, %v614
        %616 = vdwg.mxu0
        %617 = vmatprep.subr.mxu0 %v440
        %618 = vmatpush1.msra.mxu0 %v439
        %619 = vmatprep.subr.mxu0 %v470
        %620 = vmatpush1.msra.mxu0 %v467
        %621 = vmatprep.subr.mxu0 0.0
        %622 = vmatpush1.msra.mxu0 0.0
        %623 = vmatprep.subr.mxu0 0.0
        %624 = vmatpush1.msra.mxu0 0.0
        %625 = vmatprep.subr.mxu0 0.0
        %626 = vmatpush1.msra.mxu0 0.0
        %627 = vmatprep.subr.mxu0 0.0
        %628 = vmatpush1.msra.mxu0 0.0
        %629 = vmatprep.subr.mxu0 0.0
        %630 = vmatpush1.msra.mxu0 0.0
        %631 = vmatprep.subr.mxu0 0.0
        %632 = vmatpush1.msra.mxu0 0.0
        %633 = vmatprep.subr.mxu0 0.0
        %634 = vmatpush1.msra.mxu0 0.0
        %635 = vmatprep.subr.mxu0 0.0
        %636 = vmatpush1.msra.mxu0 0.0
        %637 = vmatprep.subr.mxu0 0.0
        %638 = vmatpush1.msra.mxu0 0.0
        %639 = vmatprep.subr.mxu0 0.0
        %640 = vmatpush1.msra.mxu0 0.0
        %641 = vmatprep.subr.mxu0 0.0
        %642 = vmatpush1.msra.mxu0 0.0
        %643 = vmatprep.subr.mxu0 0.0
        %644 = vmatpush1.msra.mxu0 0.0
        %645 = vmatprep.subr.mxu0 0.0
        %646 = vmatpush1.msra.mxu0 0.0
        %647 = vmatprep.subr.mxu0 0.0
        %648 = vmatpush1.msra.mxu0 0.0
        %649 = vmatprep.subr.mxu0 0.0
        %650 = vmatpush1.msra.mxu0 0.0
        %651 = vmatprep.subr.mxu0 0.0
        %652 = vmatpush1.msra.mxu0 0.0
        %653 = vmatprep.subr.mxu0 0.0
        %654 = vmatpush1.msra.mxu0 0.0
        %655 = vmatprep.subr.mxu0 0.0
        %656 = vmatpush1.msra.mxu0 0.0
        %657 = vmatprep.subr.mxu0 0.0
        %658 = vmatpush1.msra.mxu0 0.0
        %659 = vmatprep.subr.mxu0 0.0
        %660 = vmatpush1.msra.mxu0 0.0
        %661 = vmatprep.subr.mxu0 0.0
        %662 = vmatpush1.msra.mxu0 0.0
        %663 = vmatprep.subr.mxu0 0.0
        %664 = vmatpush1.msra.mxu0 0.0
        %665 = vmatprep.subr.mxu0 0.0
        %666 = vmatpush1.msra.mxu0 0.0
        %667 = vmatprep.subr.mxu0 0.0
        %668 = vmatpush1.msra.mxu0 0.0
        %669 = vmatprep.subr.mxu0 0.0
        %670 = vmatpush1.msra.mxu0 0.0
        %671 = vmatprep.subr.mxu0 0.0
        %672 = vmatpush1.msra.mxu0 0.0
        %673 = vmatprep.subr.mxu0 0.0
        %674 = vmatpush1.msra.mxu0 0.0
        %675 = vmatprep.subr.mxu0 0.0
        %676 = vmatpush1.msra.mxu0 0.0
        %677 = vmatprep.subr.mxu0 0.0
        %678 = vmatpush1.msra.mxu0 0.0
        %679 = vmatprep.subr.mxu0 0.0
        %680 = vmatpush1.msra.mxu0 0.0
        %681 = vmatprep.mubr.f32.mxu0 0.0
        %682 = vmatmul.mubr.f32.gmra.mrb[0].mxu0 %v451
        %v683 = vpop.f32.mrb[0].mxu0
        %v684 = vadd.f32 0.0, %v683
        %v685 = vpop.f32.mrb[0].mxu0
        %v686 = vadd.f32 0.0, %v685
        %687 = vdwg.mxu0
        %688 = vmatprep.subr.mxu0 0.0
        %689 = vmatpush1.msra.mxu0 %v441
        %690 = vmatprep.subr.mxu0 0.0
        %691 = vmatpush1.msra.mxu0 %v473
        %692 = vmatprep.subr.mxu0 0.0
        %693 = vmatpush1.msra.mxu0 0.0
        %694 = vmatprep.subr.mxu0 0.0
        %695 = vmatpush1.msra.mxu0 0.0
        %696 = vmatprep.subr.mxu0 0.0
        %697 = vmatpush1.msra.mxu0 0.0
        %698 = vmatprep.subr.mxu0 0.0
        %699 = vmatpush1.msra.mxu0 0.0
        %700 = vmatprep.subr.mxu0 0.0
        %701 = vmatpush1.msra.mxu0 0.0
        %702 = vmatprep.subr.mxu0 0.0
        %703 = vmatpush1.msra.mxu0 0.0
        %704 = vmatprep.subr.mxu0 0.0
        %705 = vmatpush1.msra.mxu0 0.0
        %706 = vmatprep.subr.mxu0 0.0
        %707 = vmatpush1.msra.mxu0 0.0
        %708 = vmatprep.subr.mxu0 0.0
        %709 = vmatpush1.msra.mxu0 0.0
        %710 = vmatprep.subr.mxu0 0.0
        %711 = vmatpush1.msra.mxu0 0.0
        %712 = vmatprep.subr.mxu0 0.0
        %713 = vmatpush1.msra.mxu0 0.0
        %714 = vmatprep.subr.mxu0 0.0
        %715 = vmatpush1.msra.mxu0 0.0
        %716 = vmatprep.subr.mxu0 0.0
        %717 = vmatpush1.msra.mxu0 0.0
        %718 = vmatprep.subr.mxu0 0.0
        %719 = vmatpush1.msra.mxu0 0.0
        %720 = vmatprep.subr.mxu0 0.0
        %721 = vmatpush1.msra.mxu0 0.0
        %722 = vmatprep.subr.mxu0 0.0
        %723 = vmatpush1.msra.mxu0 0.0
        %724 = vmatprep.subr.mxu0 0.0
        %725 = vmatpush1.msra.mxu0 0.0
        %726 = vmatprep.subr.mxu0 0.0
        %727 = vmatpush1.msra.mxu0 0.0
        %728 = vmatprep.subr.mxu0 0.0
        %729 = vmatpush1.msra.mxu0 0.0
        %730 = vmatprep.subr.mxu0 0.0
        %731 = vmatpush1.msra.mxu0 0.0
        %732 = vmatprep.subr.mxu0 0.0
        %733 = vmatpush1.msra.mxu0 0.0
        %734 = vmatprep.subr.mxu0 0.0
        %735 = vmatpush1.msra.mxu0 0.0
        %736 = vmatprep.subr.mxu0 0.0
        %737 = vmatpush1.msra.mxu0 0.0
        %738 = vmatprep.subr.mxu0 0.0
        %739 = vmatpush1.msra.mxu0 0.0
        %740 = vmatprep.subr.mxu0 0.0
        %741 = vmatpush1.msra.mxu0 0.0
        %742 = vmatprep.subr.mxu0 0.0
        %743 = vmatpush1.msra.mxu0 0.0
        %744 = vmatprep.subr.mxu0 0.0
        %745 = vmatpush1.msra.mxu0 0.0
        %746 = vmatprep.subr.mxu0 0.0
        %747 = vmatpush1.msra.mxu0 0.0
        %748 = vmatprep.subr.mxu0 0.0
        %749 = vmatpush1.msra.mxu0 0.0
        %750 = vmatprep.subr.mxu0 0.0
        %751 = vmatpush1.msra.mxu0 0.0
        %752 = vmatprep.mubr.f32.mxu0 0.0
        %753 = vmatmul.mubr.f32.gmra.mrb[0].mxu0 %v451
        %v754 = vpop.f32.mrb[0].mxu0
        %v755 = vadd.f32 0.0, %v754
        %v756 = vpop.f32.mrb[0].mxu0
        %757 = vdwg.mxu0
        %s758 = scalar_lea.vmem %s403, 112 [#allocation2]
        %v759 = vld [vmem:[%s758] sm:$0xff]
        %v760 = vld [vmem:[%s758 + $0x8] sm:$0xff]
        %v761 = vld [vmem:[%s758 + $0x10] sm:$0xff]
        %v762 = vld [vmem:[%s758 + $0x18] sm:$0xff]
        %v763 = vld [vmem:[%s758 + $0x20] sm:$0xff]
        %v764 = vld [vmem:[%s758 + $0x28] sm:$0xff]
        %v765 = vld [vmem:[%s758 + $0x30] sm:$0xff]
        %v766 = vld [vmem:[%s758 + $0x38] sm:$0x1]
        %v767 = vld [vmem:[%s758 + $0x40] sm:$0x1]
        %v768 = vld [vmem:[%s758 + $0x48] sm:$0x1]
        %v769 = vld [vmem:[%s758 + $0x50] sm:$0x1]
        %v770 = vld [vmem:[%s758 + $0x58] sm:$0x1]
        %v771 = vld [vmem:[%s758 + $0x60] sm:$0x1]
        %v772 = vld [vmem:[%s758 + $0x68] sm:$0x1]
        %v774 = vsel %vm453, %v766, 0
        %v777 = vsel %vm453, %v767, 0
        %v780 = vsel %vm453, %v768, 0
        %v783 = vsel %vm453, %v769, 0
        %v786 = vsel %vm453, %v770, 0
        %v789 = vsel %vm453, %v771, 0
        %v792 = vsel %vm453, %v772, 0
        %794 = vmatprep.subr.mxu0 %v760
        %795 = vmatpush1.msra.mxu0 %v759
        %796 = vmatprep.subr.mxu0 %v777
        %797 = vmatpush1.msra.mxu0 %v774
        %798 = vmatprep.subr.mxu0 0.0
        %799 = vmatpush1.msra.mxu0 0.0
        %800 = vmatprep.subr.mxu0 0.0
        %801 = vmatpush1.msra.mxu0 0.0
        %802 = vmatprep.subr.mxu0 0.0
        %803 = vmatpush1.msra.mxu0 0.0
        %804 = vmatprep.subr.mxu0 0.0
        %805 = vmatpush1.msra.mxu0 0.0
        %806 = vmatprep.subr.mxu0 0.0
        %807 = vmatpush1.msra.mxu0 0.0
        %808 = vmatprep.subr.mxu0 0.0
        %809 = vmatpush1.msra.mxu0 0.0
        %810 = vmatprep.subr.mxu0 0.0
        %811 = vmatpush1.msra.mxu0 0.0
        %812 = vmatprep.subr.mxu0 0.0
        %813 = vmatpush1.msra.mxu0 0.0
        %814 = vmatprep.subr.mxu0 0.0
        %815 = vmatpush1.msra.mxu0 0.0
        %816 = vmatprep.subr.mxu0 0.0
        %817 = vmatpush1.msra.mxu0 0.0
        %818 = vmatprep.subr.mxu0 0.0
        %819 = vmatpush1.msra.mxu0 0.0
        %820 = vmatprep.subr.mxu0 0.0
        %821 = vmatpush1.msra.mxu0 0.0
        %822 = vmatprep.subr.mxu0 0.0
        %823 = vmatpush1.msra.mxu0 0.0
        %824 = vmatprep.subr.mxu0 0.0
        %825 = vmatpush1.msra.mxu0 0.0
        %826 = vmatprep.subr.mxu0 0.0
        %827 = vmatpush1.msra.mxu0 0.0
        %828 = vmatprep.subr.mxu0 0.0
        %829 = vmatpush1.msra.mxu0 0.0
        %830 = vmatprep.subr.mxu0 0.0
        %831 = vmatpush1.msra.mxu0 0.0
        %832 = vmatprep.subr.mxu0 0.0
        %833 = vmatpush1.msra.mxu0 0.0
        %834 = vmatprep.subr.mxu0 0.0
        %835 = vmatpush1.msra.mxu0 0.0
        %836 = vmatprep.subr.mxu0 0.0
        %837 = vmatpush1.msra.mxu0 0.0
        %838 = vmatprep.subr.mxu0 0.0
        %839 = vmatpush1.msra.mxu0 0.0
        %840 = vmatprep.subr.mxu0 0.0
        %841 = vmatpush1.msra.mxu0 0.0
        %842 = vmatprep.subr.mxu0 0.0
        %843 = vmatpush1.msra.mxu0 0.0
        %844 = vmatprep.subr.mxu0 0.0
        %845 = vmatpush1.msra.mxu0 0.0
        %846 = vmatprep.subr.mxu0 0.0
        %847 = vmatpush1.msra.mxu0 0.0
        %848 = vmatprep.subr.mxu0 0.0
        %849 = vmatpush1.msra.mxu0 0.0
        %850 = vmatprep.subr.mxu0 0.0
        %851 = vmatpush1.msra.mxu0 0.0
        %852 = vmatprep.subr.mxu0 0.0
        %853 = vmatpush1.msra.mxu0 0.0
        %854 = vmatprep.subr.mxu0 0.0
        %855 = vmatpush1.msra.mxu0 0.0
        %856 = vmatprep.subr.mxu0 0.0
        %857 = vmatpush1.msra.mxu0 0.0
        %858 = vmatprep.mubr.f32.mxu0 0.0
        %859 = vmatmul.mubr.f32.gmra.mrb[0].mxu0 %v451
        %v860 = vpop.f32.mrb[0].mxu0
        %v861 = vadd.f32 0.0, %v860
        %v862 = vpop.f32.mrb[0].mxu0
        %v863 = vadd.f32 0.0, %v862
        %864 = vdwg.mxu0
        %865 = vmatprep.subr.mxu0 %v762
        %866 = vmatpush1.msra.mxu0 %v761
        %867 = vmatprep.subr.mxu0 %v783
        %868 = vmatpush1.msra.mxu0 %v780
        %869 = vmatprep.subr.mxu0 0.0
        %870 = vmatpush1.msra.mxu0 0.0
        %871 = vmatprep.subr.mxu0 0.0
        %872 = vmatpush1.msra.mxu0 0.0
        %873 = vmatprep.subr.mxu0 0.0
        %874 = vmatpush1.msra.mxu0 0.0
        %875 = vmatprep.subr.mxu0 0.0
        %876 = vmatpush1.msra.mxu0 0.0
        %877 = vmatprep.subr.mxu0 0.0
        %878 = vmatpush1.msra.mxu0 0.0
        %879 = vmatprep.subr.mxu0 0.0
        %880 = vmatpush1.msra.mxu0 0.0
        %881 = vmatprep.subr.mxu0 0.0
        %882 = vmatpush1.msra.mxu0 0.0
        %883 = vmatprep.subr.mxu0 0.0
        %884 = vmatpush1.msra.mxu0 0.0
        %885 = vmatprep.subr.mxu0 0.0
        %886 = vmatpush1.msra.mxu0 0.0
        %887 = vmatprep.subr.mxu0 0.0
        %888 = vmatpush1.msra.mxu0 0.0
        %889 = vmatprep.subr.mxu0 0.0
        %890 = vmatpush1.msra.mxu0 0.0
        %891 = vmatprep.subr.mxu0 0.0
        %892 = vmatpush1.msra.mxu0 0.0
        %893 = vmatprep.subr.mxu0 0.0
        %894 = vmatpush1.msra.mxu0 0.0
        %895 = vmatprep.subr.mxu0 0.0
        %896 = vmatpush1.msra.mxu0 0.0
        %897 = vmatprep.subr.mxu0 0.0
        %898 = vmatpush1.msra.mxu0 0.0
        %899 = vmatprep.subr.mxu0 0.0
        %900 = vmatpush1.msra.mxu0 0.0
        %901 = vmatprep.subr.mxu0 0.0
        %902 = vmatpush1.msra.mxu0 0.0
        %903 = vmatprep.subr.mxu0 0.0
        %904 = vmatpush1.msra.mxu0 0.0
        %905 = vmatprep.subr.mxu0 0.0
        %906 = vmatpush1.msra.mxu0 0.0
        %907 = vmatprep.subr.mxu0 0.0
        %908 = vmatpush1.msra.mxu0 0.0
        %909 = vmatprep.subr.mxu0 0.0
        %910 = vmatpush1.msra.mxu0 0.0
        %911 = vmatprep.subr.mxu0 0.0
        %912 = vmatpush1.msra.mxu0 0.0
        %913 = vmatprep.subr.mxu0 0.0
        %914 = vmatpush1.msra.mxu0 0.0
        %915 = vmatprep.subr.mxu0 0.0
        %916 = vmatpush1.msra.mxu0 0.0
        %917 = vmatprep.subr.mxu0 0.0
        %918 = vmatpush1.msra.mxu0 0.0
        %919 = vmatprep.subr.mxu0 0.0
        %920 = vmatpush1.msra.mxu0 0.0
        %921 = vmatprep.subr.mxu0 0.0
        %922 = vmatpush1.msra.mxu0 0.0
        %923 = vmatprep.subr.mxu0 0.0
        %924 = vmatpush1.msra.mxu0 0.0
        %925 = vmatprep.subr.mxu0 0.0
        %926 = vmatpush1.msra.mxu0 0.0
        %927 = vmatprep.subr.mxu0 0.0
        %928 = vmatpush1.msra.mxu0 0.0
        %929 = vmatprep.mubr.f32.mxu0 0.0
        %930 = vmatmul.mubr.f32.gmra.mrb[0].mxu0 %v451
        %v931 = vpop.f32.mrb[0].mxu0
        %v932 = vadd.f32 0.0, %v931
        %v933 = vpop.f32.mrb[0].mxu0
        %v934 = vadd.f32 0.0, %v933
        %935 = vdwg.mxu0
        %936 = vmatprep.subr.mxu0 %v764
        %937 = vmatpush1.msra.mxu0 %v763
        %938 = vmatprep.subr.mxu0 %v789
        %939 = vmatpush1.msra.mxu0 %v786
        %940 = vmatprep.subr.mxu0 0.0
        %941 = vmatpush1.msra.mxu0 0.0
        %942 = vmatprep.subr.mxu0 0.0
        %943 = vmatpush1.msra.mxu0 0.0
        %944 = vmatprep.subr.mxu0 0.0
        %945 = vmatpush1.msra.mxu0 0.0
        %946 = vmatprep.subr.mxu0 0.0
        %947 = vmatpush1.msra.mxu0 0.0
        %948 = vmatprep.subr.mxu0 0.0
        %949 = vmatpush1.msra.mxu0 0.0
        %950 = vmatprep.subr.mxu0 0.0
        %951 = vmatpush1.msra.mxu0 0.0
        %952 = vmatprep.subr.mxu0 0.0
        %953 = vmatpush1.msra.mxu0 0.0
        %954 = vmatprep.subr.mxu0 0.0
        %955 = vmatpush1.msra.mxu0 0.0
        %956 = vmatprep.subr.mxu0 0.0
        %957 = vmatpush1.msra.mxu0 0.0
        %958 = vmatprep.subr.mxu0 0.0
        %959 = vmatpush1.msra.mxu0 0.0
        %960 = vmatprep.subr.mxu0 0.0
        %961 = vmatpush1.msra.mxu0 0.0
        %962 = vmatprep.subr.mxu0 0.0
        %963 = vmatpush1.msra.mxu0 0.0
        %964 = vmatprep.subr.mxu0 0.0
        %965 = vmatpush1.msra.mxu0 0.0
        %966 = vmatprep.subr.mxu0 0.0
        %967 = vmatpush1.msra.mxu0 0.0
        %968 = vmatprep.subr.mxu0 0.0
        %969 = vmatpush1.msra.mxu0 0.0
        %970 = vmatprep.subr.mxu0 0.0
        %971 = vmatpush1.msra.mxu0 0.0
        %972 = vmatprep.subr.mxu0 0.0
        %973 = vmatpush1.msra.mxu0 0.0
        %974 = vmatprep.subr.mxu0 0.0
        %975 = vmatpush1.msra.mxu0 0.0
        %976 = vmatprep.subr.mxu0 0.0
        %977 = vmatpush1.msra.mxu0 0.0
        %978 = vmatprep.subr.mxu0 0.0
        %979 = vmatpush1.msra.mxu0 0.0
        %980 = vmatprep.subr.mxu0 0.0
        %981 = vmatpush1.msra.mxu0 0.0
        %982 = vmatprep.subr.mxu0 0.0
        %983 = vmatpush1.msra.mxu0 0.0
        %984 = vmatprep.subr.mxu0 0.0
        %985 = vmatpush1.msra.mxu0 0.0
        %986 = vmatprep.subr.mxu0 0.0
        %987 = vmatpush1.msra.mxu0 0.0
        %988 = vmatprep.subr.mxu0 0.0
        %989 = vmatpush1.msra.mxu0 0.0
        %990 = vmatprep.subr.mxu0 0.0
        %991 = vmatpush1.msra.mxu0 0.0
        %992 = vmatprep.subr.mxu0 0.0
        %993 = vmatpush1.msra.mxu0 0.0
        %994 = vmatprep.subr.mxu0 0.0
        %995 = vmatpush1.msra.mxu0 0.0
        %996 = vmatprep.subr.mxu0 0.0
        %997 = vmatpush1.msra.mxu0 0.0
        %998 = vmatprep.subr.mxu0 0.0
        %999 = vmatpush1.msra.mxu0 0.0
        %1000 = vmatprep.mubr.f32.mxu0 0.0
        %1001 = vmatmul.mubr.f32.gmra.mrb[0].mxu0 %v451
        %v1002 = vpop.f32.mrb[0].mxu0
        %v1003 = vadd.f32 0.0, %v1002
        %v1004 = vpop.f32.mrb[0].mxu0
        %v1005 = vadd.f32 0.0, %v1004
        %1006 = vdwg.mxu0
        %1007 = vmatprep.subr.mxu0 0.0
        %1008 = vmatpush1.msra.mxu0 %v765
        %1009 = vmatprep.subr.mxu0 0.0
        %1010 = vmatpush1.msra.mxu0 %v792
        %1011 = vmatprep.subr.mxu0 0.0
        %1012 = vmatpush1.msra.mxu0 0.0
        %1013 = vmatprep.subr.mxu0 0.0
        %1014 = vmatpush1.msra.mxu0 0.0
        %1015 = vmatprep.subr.mxu0 0.0
        %1016 = vmatpush1.msra.mxu0 0.0
        %1017 = vmatprep.subr.mxu0 0.0
        %1018 = vmatpush1.msra.mxu0 0.0
        %1019 = vmatprep.subr.mxu0 0.0
        %1020 = vmatpush1.msra.mxu0 0.0
        %1021 = vmatprep.subr.mxu0 0.0
        %1022 = vmatpush1.msra.mxu0 0.0
        %1023 = vmatprep.subr.mxu0 0.0
        %1024 = vmatpush1.msra.mxu0 0.0
        %1025 = vmatprep.subr.mxu0 0.0
        %1026 = vmatpush1.msra.mxu0 0.0
        %1027 = vmatprep.subr.mxu0 0.0
        %1028 = vmatpush1.msra.mxu0 0.0
        %1029 = vmatprep.subr.mxu0 0.0
        %1030 = vmatpush1.msra.mxu0 0.0
        %1031 = vmatprep.subr.mxu0 0.0
        %1032 = vmatpush1.msra.mxu0 0.0
        %1033 = vmatprep.subr.mxu0 0.0
        %1034 = vmatpush1.msra.mxu0 0.0
        %1035 = vmatprep.subr.mxu0 0.0
        %1036 = vmatpush1.msra.mxu0 0.0
        %1037 = vmatprep.subr.mxu0 0.0
        %1038 = vmatpush1.msra.mxu0 0.0
        %1039 = vmatprep.subr.mxu0 0.0
        %1040 = vmatpush1.msra.mxu0 0.0
        %1041 = vmatprep.subr.mxu0 0.0
        %1042 = vmatpush1.msra.mxu0 0.0
        %1043 = vmatprep.subr.mxu0 0.0
        %1044 = vmatpush1.msra.mxu0 0.0
        %1045 = vmatprep.subr.mxu0 0.0
        %1046 = vmatpush1.msra.mxu0 0.0
        %1047 = vmatprep.subr.mxu0 0.0
        %1048 = vmatpush1.msra.mxu0 0.0
        %1049 = vmatprep.subr.mxu0 0.0
        %1050 = vmatpush1.msra.mxu0 0.0
        %1051 = vmatprep.subr.mxu0 0.0
        %1052 = vmatpush1.msra.mxu0 0.0
        %1053 = vmatprep.subr.mxu0 0.0
        %1054 = vmatpush1.msra.mxu0 0.0
        %1055 = vmatprep.subr.mxu0 0.0
        %1056 = vmatpush1.msra.mxu0 0.0
        %1057 = vmatprep.subr.mxu0 0.0
        %1058 = vmatpush1.msra.mxu0 0.0
        %1059 = vmatprep.subr.mxu0 0.0
        %1060 = vmatpush1.msra.mxu0 0.0
        %1061 = vmatprep.subr.mxu0 0.0
        %1062 = vmatpush1.msra.mxu0 0.0
        %1063 = vmatprep.subr.mxu0 0.0
        %1064 = vmatpush1.msra.mxu0 0.0
        %1065 = vmatprep.subr.mxu0 0.0
        %1066 = vmatpush1.msra.mxu0 0.0
        %1067 = vmatprep.subr.mxu0 0.0
        %1068 = vmatpush1.msra.mxu0 0.0
        %1069 = vmatprep.subr.mxu0 0.0
        %1070 = vmatpush1.msra.mxu0 0.0
        %1071 = vmatprep.mubr.f32.mxu0 0.0
        %1072 = vmatmul.mubr.f32.gmra.mrb[0].mxu0 %v451
        %v1073 = vpop.f32.mrb[0].mxu0
        %v1074 = vadd.f32 0.0, %v1073
        %v1075 = vpop.f32.mrb[0].mxu0
        %1076 = vdwg.mxu0
        %v1077 = vmax.f32 %v542, %v861
        %v1078 = vmax.f32 %v544, %v863
        %v1079 = vmax.f32 %v613, %v932
        %v1080 = vmax.f32 %v615, %v934
        %v1081 = vmax.f32 %v684, %v1003
        %v1082 = vmax.f32 %v686, %v1005
        %v1083 = vmax.f32 %v755, %v1074
        %s1084 = scalar_lea.vmem %s403, 224 [#allocation2]
        %v1085 = vld [vmem:[%s1084] sm:$0xff]
        %v1086 = vld [vmem:[%s1084 + $0x8] sm:$0xff]
        %v1087 = vld [vmem:[%s1084 + $0x10] sm:$0xff]
        %v1088 = vld [vmem:[%s1084 + $0x18] sm:$0xff]
        %v1089 = vld [vmem:[%s1084 + $0x20] sm:$0xff]
        %v1090 = vld [vmem:[%s1084 + $0x28] sm:$0xff]
        %v1091 = vld [vmem:[%s1084 + $0x30] sm:$0xff]
        %v1092 = vld [vmem:[%s1084 + $0x38] sm:$0x1]
        %v1093 = vld [vmem:[%s1084 + $0x40] sm:$0x1]
        %v1094 = vld [vmem:[%s1084 + $0x48] sm:$0x1]
        %v1095 = vld [vmem:[%s1084 + $0x50] sm:$0x1]
        %v1096 = vld [vmem:[%s1084 + $0x58] sm:$0x1]
        %v1097 = vld [vmem:[%s1084 + $0x60] sm:$0x1]
        %v1098 = vld [vmem:[%s1084 + $0x68] sm:$0x1]
        %v1100 = vsel %vm453, %v1092, 0
        %v1103 = vsel %vm453, %v1093, 0
        %v1106 = vsel %vm453, %v1094, 0
        %v1109 = vsel %vm453, %v1095, 0
        %v1112 = vsel %vm453, %v1096, 0
        %v1115 = vsel %vm453, %v1097, 0
        %v1118 = vsel %vm453, %v1098, 0
        %1120 = vmatprep.subr.mxu0 %v1086
        %1121 = vmatpush1.msra.mxu0 %v1085
        %1122 = vmatprep.subr.mxu0 %v1103
        %1123 = vmatpush1.msra.mxu0 %v1100
        %1124 = vmatprep.subr.mxu0 0.0
        %1125 = vmatpush1.msra.mxu0 0.0
        %1126 = vmatprep.subr.mxu0 0.0
        %1127 = vmatpush1.msra.mxu0 0.0
        %1128 = vmatprep.subr.mxu0 0.0
        %1129 = vmatpush1.msra.mxu0 0.0
        %1130 = vmatprep.subr.mxu0 0.0
        %1131 = vmatpush1.msra.mxu0 0.0
        %1132 = vmatprep.subr.mxu0 0.0
        %1133 = vmatpush1.msra.mxu0 0.0
        %1134 = vmatprep.subr.mxu0 0.0
        %1135 = vmatpush1.msra.mxu0 0.0
        %1136 = vmatprep.subr.mxu0 0.0
        %1137 = vmatpush1.msra.mxu0 0.0
        %1138 = vmatprep.subr.mxu0 0.0
        %1139 = vmatpush1.msra.mxu0 0.0
        %1140 = vmatprep.subr.mxu0 0.0
        %1141 = vmatpush1.msra.mxu0 0.0
        %1142 = vmatprep.subr.mxu0 0.0
        %1143 = vmatpush1.msra.mxu0 0.0
        %1144 = vmatprep.subr.mxu0 0.0
        %1145 = vmatpush1.msra.mxu0 0.0
        %1146 = vmatprep.subr.mxu0 0.0
        %1147 = vmatpush1.msra.mxu0 0.0
        %1148 = vmatprep.subr.mxu0 0.0
        %1149 = vmatpush1.msra.mxu0 0.0
        %1150 = vmatprep.subr.mxu0 0.0
        %1151 = vmatpush1.msra.mxu0 0.0
        %1152 = vmatprep.subr.mxu0 0.0
        %1153 = vmatpush1.msra.mxu0 0.0
        %1154 = vmatprep.subr.mxu0 0.0
        %1155 = vmatpush1.msra.mxu0 0.0
        %1156 = vmatprep.subr.mxu0 0.0
        %1157 = vmatpush1.msra.mxu0 0.0
        %1158 = vmatprep.subr.mxu0 0.0
        %1159 = vmatpush1.msra.mxu0 0.0
        %1160 = vmatprep.subr.mxu0 0.0
        %1161 = vmatpush1.msra.mxu0 0.0
        %1162 = vmatprep.subr.mxu0 0.0
        %1163 = vmatpush1.msra.mxu0 0.0
        %1164 = vmatprep.subr.mxu0 0.0
        %1165 = vmatpush1.msra.mxu0 0.0
        %1166 = vmatprep.subr.mxu0 0.0
        %1167 = vmatpush1.msra.mxu0 0.0
        %1168 = vmatprep.subr.mxu0 0.0
        %1169 = vmatpush1.msra.mxu0 0.0
        %1170 = vmatprep.subr.mxu0 0.0
        %1171 = vmatpush1.msra.mxu0 0.0
        %1172 = vmatprep.subr.mxu0 0.0
        %1173 = vmatpush1.msra.mxu0 0.0
        %1174 = vmatprep.subr.mxu0 0.0
        %1175 = vmatpush1.msra.mxu0 0.0
        %1176 = vmatprep.subr.mxu0 0.0
        %1177 = vmatpush1.msra.mxu0 0.0
        %1178 = vmatprep.subr.mxu0 0.0
        %1179 = vmatpush1.msra.mxu0 0.0
        %1180 = vmatprep.subr.mxu0 0.0
        %1181 = vmatpush1.msra.mxu0 0.0
        %1182 = vmatprep.subr.mxu0 0.0
        %1183 = vmatpush1.msra.mxu0 0.0
        %1184 = vmatprep.mubr.f32.mxu0 0.0
        %1185 = vmatmul.mubr.f32.gmra.mrb[0].mxu0 %v451
        %v1186 = vpop.f32.mrb[0].mxu0
        %v1187 = vadd.f32 0.0, %v1186
        %v1188 = vpop.f32.mrb[0].mxu0
        %v1189 = vadd.f32 0.0, %v1188
        %1190 = vdwg.mxu0
        %1191 = vmatprep.subr.mxu0 %v1088
        %1192 = vmatpush1.msra.mxu0 %v1087
        %1193 = vmatprep.subr.mxu0 %v1109
        %1194 = vmatpush1.msra.mxu0 %v1106
        %1195 = vmatprep.subr.mxu0 0.0
        %1196 = vmatpush1.msra.mxu0 0.0
        %1197 = vmatprep.subr.mxu0 0.0
        %1198 = vmatpush1.msra.mxu0 0.0
        %1199 = vmatprep.subr.mxu0 0.0
        %1200 = vmatpush1.msra.mxu0 0.0
        %1201 = vmatprep.subr.mxu0 0.0
        %1202 = vmatpush1.msra.mxu0 0.0
        %1203 = vmatprep.subr.mxu0 0.0
        %1204 = vmatpush1.msra.mxu0 0.0
        %1205 = vmatprep.subr.mxu0 0.0
        %1206 = vmatpush1.msra.mxu0 0.0
        %1207 = vmatprep.subr.mxu0 0.0
        %1208 = vmatpush1.msra.mxu0 0.0
        %1209 = vmatprep.subr.mxu0 0.0
        %1210 = vmatpush1.msra.mxu0 0.0
        %1211 = vmatprep.subr.mxu0 0.0
        %1212 = vmatpush1.msra.mxu0 0.0
        %1213 = vmatprep.subr.mxu0 0.0
        %1214 = vmatpush1.msra.mxu0 0.0
        %1215 = vmatprep.subr.mxu0 0.0
        %1216 = vmatpush1.msra.mxu0 0.0
        %1217 = vmatprep.subr.mxu0 0.0
        %1218 = vmatpush1.msra.mxu0 0.0
        %1219 = vmatprep.subr.mxu0 0.0
        %1220 = vmatpush1.msra.mxu0 0.0
        %1221 = vmatprep.subr.mxu0 0.0
        %1222 = vmatpush1.msra.mxu0 0.0
        %1223 = vmatprep.subr.mxu0 0.0
        %1224 = vmatpush1.msra.mxu0 0.0
        %1225 = vmatprep.subr.mxu0 0.0
        %1226 = vmatpush1.msra.mxu0 0.0
        %1227 = vmatprep.subr.mxu0 0.0
        %1228 = vmatpush1.msra.mxu0 0.0
        %1229 = vmatprep.subr.mxu0 0.0
        %1230 = vmatpush1.msra.mxu0 0.0
        %1231 = vmatprep.subr.mxu0 0.0
        %1232 = vmatpush1.msra.mxu0 0.0
        %1233 = vmatprep.subr.mxu0 0.0
        %1234 = vmatpush1.msra.mxu0 0.0
        %1235 = vmatprep.subr.mxu0 0.0
        %1236 = vmatpush1.msra.mxu0 0.0
        %1237 = vmatprep.subr.mxu0 0.0
        %1238 = vmatpush1.msra.mxu0 0.0
        %1239 = vmatprep.subr.mxu0 0.0
        %1240 = vmatpush1.msra.mxu0 0.0
        %1241 = vmatprep.subr.mxu0 0.0
        %1242 = vmatpush1.msra.mxu0 0.0
        %1243 = vmatprep.subr.mxu0 0.0
        %1244 = vmatpush1.msra.mxu0 0.0
        %1245 = vmatprep.subr.mxu0 0.0
        %1246 = vmatpush1.msra.mxu0 0.0
        %1247 = vmatprep.subr.mxu0 0.0
        %1248 = vmatpush1.msra.mxu0 0.0
        %1249 = vmatprep.subr.mxu0 0.0
        %1250 = vmatpush1.msra.mxu0 0.0
        %1251 = vmatprep.subr.mxu0 0.0
        %1252 = vmatpush1.msra.mxu0 0.0
        %1253 = vmatprep.subr.mxu0 0.0
        %1254 = vmatpush1.msra.mxu0 0.0
        %1255 = vmatprep.mubr.f32.mxu0 0.0
        %1256 = vmatmul.mubr.f32.gmra.mrb[0].mxu0 %v451
        %v1257 = vpop.f32.mrb[0].mxu0
        %v1258 = vadd.f32 0.0, %v1257
        %v1259 = vpop.f32.mrb[0].mxu0
        %v1260 = vadd.f32 0.0, %v1259
        %1261 = vdwg.mxu0
        %1262 = vmatprep.subr.mxu0 %v1090
        %1263 = vmatpush1.msra.mxu0 %v1089
        %1264 = vmatprep.subr.mxu0 %v1115
        %1265 = vmatpush1.msra.mxu0 %v1112
        %1266 = vmatprep.subr.mxu0 0.0
        %1267 = vmatpush1.msra.mxu0 0.0
        %1268 = vmatprep.subr.mxu0 0.0
        %1269 = vmatpush1.msra.mxu0 0.0
        %1270 = vmatprep.subr.mxu0 0.0
        %1271 = vmatpush1.msra.mxu0 0.0
        %1272 = vmatprep.subr.mxu0 0.0
        %1273 = vmatpush1.msra.mxu0 0.0
        %1274 = vmatprep.subr.mxu0 0.0
        %1275 = vmatpush1.msra.mxu0 0.0
        %1276 = vmatprep.subr.mxu0 0.0
        %1277 = vmatpush1.msra.mxu0 0.0
        %1278 = vmatprep.subr.mxu0 0.0
        %1279 = vmatpush1.msra.mxu0 0.0
        %1280 = vmatprep.subr.mxu0 0.0
        %1281 = vmatpush1.msra.mxu0 0.0
        %1282 = vmatprep.subr.mxu0 0.0
        %1283 = vmatpush1.msra.mxu0 0.0
        %1284 = vmatprep.subr.mxu0 0.0
        %1285 = vmatpush1.msra.mxu0 0.0
        %1286 = vmatprep.subr.mxu0 0.0
        %1287 = vmatpush1.msra.mxu0 0.0
        %1288 = vmatprep.subr.mxu0 0.0
        %1289 = vmatpush1.msra.mxu0 0.0
        %1290 = vmatprep.subr.mxu0 0.0
        %1291 = vmatpush1.msra.mxu0 0.0
        %1292 = vmatprep.subr.mxu0 0.0
        %1293 = vmatpush1.msra.mxu0 0.0
        %1294 = vmatprep.subr.mxu0 0.0
        %1295 = vmatpush1.msra.mxu0 0.0
        %1296 = vmatprep.subr.mxu0 0.0
        %1297 = vmatpush1.msra.mxu0 0.0
        %1298 = vmatprep.subr.mxu0 0.0
        %1299 = vmatpush1.msra.mxu0 0.0
        %1300 = vmatprep.subr.mxu0 0.0
        %1301 = vmatpush1.msra.mxu0 0.0
        %1302 = vmatprep.subr.mxu0 0.0
        %1303 = vmatpush1.msra.mxu0 0.0
        %1304 = vmatprep.subr.mxu0 0.0
        %1305 = vmatpush1.msra.mxu0 0.0
        %1306 = vmatprep.subr.mxu0 0.0
        %1307 = vmatpush1.msra.mxu0 0.0
        %1308 = vmatprep.subr.mxu0 0.0
        %1309 = vmatpush1.msra.mxu0 0.0
        %1310 = vmatprep.subr.mxu0 0.0
        %1311 = vmatpush1.msra.mxu0 0.0
        %1312 = vmatprep.subr.mxu0 0.0
        %1313 = vmatpush1.msra.mxu0 0.0
        %1314 = vmatprep.subr.mxu0 0.0
        %1315 = vmatpush1.msra.mxu0 0.0
        %1316 = vmatprep.subr.mxu0 0.0
        %1317 = vmatpush1.msra.mxu0 0.0
        %1318 = vmatprep.subr.mxu0 0.0
        %1319 = vmatpush1.msra.mxu0 0.0
        %1320 = vmatprep.subr.mxu0 0.0
        %1321 = vmatpush1.msra.mxu0 0.0
        %1322 = vmatprep.subr.mxu0 0.0
        %1323 = vmatpush1.msra.mxu0 0.0
        %1324 = vmatprep.subr.mxu0 0.0
        %1325 = vmatpush1.msra.mxu0 0.0
        %1326 = vmatprep.mubr.f32.mxu0 0.0
        %1327 = vmatmul.mubr.f32.gmra.mrb[0].mxu0 %v451
        %v1328 = vpop.f32.mrb[0].mxu0
        %v1329 = vadd.f32 0.0, %v1328
        %v1330 = vpop.f32.mrb[0].mxu0
        %v1331 = vadd.f32 0.0, %v1330
        %1332 = vdwg.mxu0
        %1333 = vmatprep.subr.mxu0 0.0
        %1334 = vmatpush1.msra.mxu0 %v1091
        %1335 = vmatprep.subr.mxu0 0.0
        %1336 = vmatpush1.msra.mxu0 %v1118
        %1337 = vmatprep.subr.mxu0 0.0
        %1338 = vmatpush1.msra.mxu0 0.0
        %1339 = vmatprep.subr.mxu0 0.0
        %1340 = vmatpush1.msra.mxu0 0.0
        %1341 = vmatprep.subr.mxu0 0.0
        %1342 = vmatpush1.msra.mxu0 0.0
        %1343 = vmatprep.subr.mxu0 0.0
        %1344 = vmatpush1.msra.mxu0 0.0
        %1345 = vmatprep.subr.mxu0 0.0
        %1346 = vmatpush1.msra.mxu0 0.0
        %1347 = vmatprep.subr.mxu0 0.0
        %1348 = vmatpush1.msra.mxu0 0.0
        %1349 = vmatprep.subr.mxu0 0.0
        %1350 = vmatpush1.msra.mxu0 0.0
        %1351 = vmatprep.subr.mxu0 0.0
        %1352 = vmatpush1.msra.mxu0 0.0
        %1353 = vmatprep.subr.mxu0 0.0
        %1354 = vmatpush1.msra.mxu0 0.0
        %1355 = vmatprep.subr.mxu0 0.0
        %1356 = vmatpush1.msra.mxu0 0.0
        %1357 = vmatprep.subr.mxu0 0.0
        %1358 = vmatpush1.msra.mxu0 0.0
        %1359 = vmatprep.subr.mxu0 0.0
        %1360 = vmatpush1.msra.mxu0 0.0
        %1361 = vmatprep.subr.mxu0 0.0
        %1362 = vmatpush1.msra.mxu0 0.0
        %1363 = vmatprep.subr.mxu0 0.0
        %1364 = vmatpush1.msra.mxu0 0.0
        %1365 = vmatprep.subr.mxu0 0.0
        %1366 = vmatpush1.msra.mxu0 0.0
        %1367 = vmatprep.subr.mxu0 0.0
        %1368 = vmatpush1.msra.mxu0 0.0
        %1369 = vmatprep.subr.mxu0 0.0
        %1370 = vmatpush1.msra.mxu0 0.0
        %1371 = vmatprep.subr.mxu0 0.0
        %1372 = vmatpush1.msra.mxu0 0.0
        %1373 = vmatprep.subr.mxu0 0.0
        %1374 = vmatpush1.msra.mxu0 0.0
        %1375 = vmatprep.subr.mxu0 0.0
        %1376 = vmatpush1.msra.mxu0 0.0
        %1377 = vmatprep.subr.mxu0 0.0
        %1378 = vmatpush1.msra.mxu0 0.0
        %1379 = vmatprep.subr.mxu0 0.0
        %1380 = vmatpush1.msra.mxu0 0.0
        %1381 = vmatprep.subr.mxu0 0.0
        %1382 = vmatpush1.msra.mxu0 0.0
        %1383 = vmatprep.subr.mxu0 0.0
        %1384 = vmatpush1.msra.mxu0 0.0
        %1385 = vmatprep.subr.mxu0 0.0
        %1386 = vmatpush1.msra.mxu0 0.0
        %1387 = vmatprep.subr.mxu0 0.0
        %1388 = vmatpush1.msra.mxu0 0.0
        %1389 = vmatprep.subr.mxu0 0.0
        %1390 = vmatpush1.msra.mxu0 0.0
        %1391 = vmatprep.subr.mxu0 0.0
        %1392 = vmatpush1.msra.mxu0 0.0
        %1393 = vmatprep.subr.mxu0 0.0
        %1394 = vmatpush1.msra.mxu0 0.0
        %1395 = vmatprep.subr.mxu0 0.0
        %1396 = vmatpush1.msra.mxu0 0.0
        %1397 = vmatprep.mubr.f32.mxu0 0.0
        %1398 = vmatmul.mubr.f32.gmra.mrb[0].mxu0 %v451
        %v1399 = vpop.f32.mrb[0].mxu0
        %v1400 = vadd.f32 0.0, %v1399
        %v1401 = vpop.f32.mrb[0].mxu0
        %1402 = vdwg.mxu0
        %v1403 = vmax.f32 %v1077, %v1187
        %v1404 = vmax.f32 %v1078, %v1189
        %v1405 = vmax.f32 %v1079, %v1258
        %v1406 = vmax.f32 %v1080, %v1260
        %v1407 = vmax.f32 %v1081, %v1329
        %v1408 = vmax.f32 %v1082, %v1331
        %v1409 = vmax.f32 %v1083, %v1400
        %s1410 = scalar_lea.vmem %s403, 336 [#allocation2]
        %v1411 = vld [vmem:[%s1410] sm:$0xff]
        %v1412 = vld [vmem:[%s1410 + $0x8] sm:$0xff]
        %v1413 = vld [vmem:[%s1410 + $0x10] sm:$0xff]
        %v1414 = vld [vmem:[%s1410 + $0x18] sm:$0xff]
        %v1415 = vld [vmem:[%s1410 + $0x20] sm:$0xff]
        %v1416 = vld [vmem:[%s1410 + $0x28] sm:$0xff]
        %v1417 = vld [vmem:[%s1410 + $0x30] sm:$0xff]
        %v1418 = vld [vmem:[%s1410 + $0x38] sm:$0x1]
        %v1419 = vld [vmem:[%s1410 + $0x40] sm:$0x1]
        %v1420 = vld [vmem:[%s1410 + $0x48] sm:$0x1]
        %v1421 = vld [vmem:[%s1410 + $0x50] sm:$0x1]
        %v1422 = vld [vmem:[%s1410 + $0x58] sm:$0x1]
        %v1423 = vld [vmem:[%s1410 + $0x60] sm:$0x1]
        %v1424 = vld [vmem:[%s1410 + $0x68] sm:$0x1]
        %v1426 = vsel %vm453, %v1418, 0
        %v1429 = vsel %vm453, %v1419, 0
        %v1432 = vsel %vm453, %v1420, 0
        %v1435 = vsel %vm453, %v1421, 0
        %v1438 = vsel %vm453, %v1422, 0
        %v1441 = vsel %vm453, %v1423, 0
        %v1444 = vsel %vm453, %v1424, 0
        %1446 = vmatprep.subr.mxu0 %v1412
        %1447 = vmatpush1.msra.mxu0 %v1411
        %1448 = vmatprep.subr.mxu0 %v1429
        %1449 = vmatpush1.msra.mxu0 %v1426
        %1450 = vmatprep.subr.mxu0 0.0
        %1451 = vmatpush1.msra.mxu0 0.0
        %1452 = vmatprep.subr.mxu0 0.0
        %1453 = vmatpush1.msra.mxu0 0.0
        %1454 = vmatprep.subr.mxu0 0.0
        %1455 = vmatpush1.msra.mxu0 0.0
        %1456 = vmatprep.subr.mxu0 0.0
        %1457 = vmatpush1.msra.mxu0 0.0
        %1458 = vmatprep.subr.mxu0 0.0
        %1459 = vmatpush1.msra.mxu0 0.0
        %1460 = vmatprep.subr.mxu0 0.0
        %1461 = vmatpush1.msra.mxu0 0.0
        %1462 = vmatprep.subr.mxu0 0.0
        %1463 = vmatpush1.msra.mxu0 0.0
        %1464 = vmatprep.subr.mxu0 0.0
        %1465 = vmatpush1.msra.mxu0 0.0
        %1466 = vmatprep.subr.mxu0 0.0
        %1467 = vmatpush1.msra.mxu0 0.0
        %1468 = vmatprep.subr.mxu0 0.0
        %1469 = vmatpush1.msra.mxu0 0.0
        %1470 = vmatprep.subr.mxu0 0.0
        %1471 = vmatpush1.msra.mxu0 0.0
        %1472 = vmatprep.subr.mxu0 0.0
        %1473 = vmatpush1.msra.mxu0 0.0
        %1474 = vmatprep.subr.mxu0 0.0
        %1475 = vmatpush1.msra.mxu0 0.0
        %1476 = vmatprep.subr.mxu0 0.0
        %1477 = vmatpush1.msra.mxu0 0.0
        %1478 = vmatprep.subr.mxu0 0.0
        %1479 = vmatpush1.msra.mxu0 0.0
        %1480 = vmatprep.subr.mxu0 0.0
        %1481 = vmatpush1.msra.mxu0 0.0
        %1482 = vmatprep.subr.mxu0 0.0
        %1483 = vmatpush1.msra.mxu0 0.0
        %1484 = vmatprep.subr.mxu0 0.0
        %1485 = vmatpush1.msra.mxu0 0.0
        %1486 = vmatprep.subr.mxu0 0.0
        %1487 = vmatpush1.msra.mxu0 0.0
        %1488 = vmatprep.subr.mxu0 0.0
        %1489 = vmatpush1.msra.mxu0 0.0
        %1490 = vmatprep.subr.mxu0 0.0
        %1491 = vmatpush1.msra.mxu0 0.0
        %1492 = vmatprep.subr.mxu0 0.0
        %1493 = vmatpush1.msra.mxu0 0.0
        %1494 = vmatprep.subr.mxu0 0.0
        %1495 = vmatpush1.msra.mxu0 0.0
        %1496 = vmatprep.subr.mxu0 0.0
        %1497 = vmatpush1.msra.mxu0 0.0
        %1498 = vmatprep.subr.mxu0 0.0
        %1499 = vmatpush1.msra.mxu0 0.0
        %1500 = vmatprep.subr.mxu0 0.0
        %1501 = vmatpush1.msra.mxu0 0.0
        %1502 = vmatprep.subr.mxu0 0.0
        %1503 = vmatpush1.msra.mxu0 0.0
        %1504 = vmatprep.subr.mxu0 0.0
        %1505 = vmatpush1.msra.mxu0 0.0
        %1506 = vmatprep.subr.mxu0 0.0
        %1507 = vmatpush1.msra.mxu0 0.0
        %1508 = vmatprep.subr.mxu0 0.0
        %1509 = vmatpush1.msra.mxu0 0.0
        %1510 = vmatprep.mubr.f32.mxu0 0.0
        %1511 = vmatmul.mubr.f32.gmra.mrb[0].mxu0 %v451
        %v1512 = vpop.f32.mrb[0].mxu0
        %v1513 = vadd.f32 0.0, %v1512
        %v1514 = vpop.f32.mrb[0].mxu0
        %v1515 = vadd.f32 0.0, %v1514
        %1516 = vdwg.mxu0
        %1517 = vmatprep.subr.mxu0 %v1414
        %1518 = vmatpush1.msra.mxu0 %v1413
        %1519 = vmatprep.subr.mxu0 %v1435
        %1520 = vmatpush1.msra.mxu0 %v1432
        %1521 = vmatprep.subr.mxu0 0.0
        %1522 = vmatpush1.msra.mxu0 0.0
        %1523 = vmatprep.subr.mxu0 0.0
        %1524 = vmatpush1.msra.mxu0 0.0
        %1525 = vmatprep.subr.mxu0 0.0
        %1526 = vmatpush1.msra.mxu0 0.0
        %1527 = vmatprep.subr.mxu0 0.0
        %1528 = vmatpush1.msra.mxu0 0.0
        %1529 = vmatprep.subr.mxu0 0.0
        %1530 = vmatpush1.msra.mxu0 0.0
        %1531 = vmatprep.subr.mxu0 0.0
        %1532 = vmatpush1.msra.mxu0 0.0
        %1533 = vmatprep.subr.mxu0 0.0
        %1534 = vmatpush1.msra.mxu0 0.0
        %1535 = vmatprep.subr.mxu0 0.0
        %1536 = vmatpush1.msra.mxu0 0.0
        %1537 = vmatprep.subr.mxu0 0.0
        %1538 = vmatpush1.msra.mxu0 0.0
        %1539 = vmatprep.subr.mxu0 0.0
        %1540 = vmatpush1.msra.mxu0 0.0
        %1541 = vmatprep.subr.mxu0 0.0
        %1542 = vmatpush1.msra.mxu0 0.0
        %1543 = vmatprep.subr.mxu0 0.0
        %1544 = vmatpush1.msra.mxu0 0.0
        %1545 = vmatprep.subr.mxu0 0.0
        %1546 = vmatpush1.msra.mxu0 0.0
        %1547 = vmatprep.subr.mxu0 0.0
        %1548 = vmatpush1.msra.mxu0 0.0
        %1549 = vmatprep.subr.mxu0 0.0
        %1550 = vmatpush1.msra.mxu0 0.0
        %1551 = vmatprep.subr.mxu0 0.0
        %1552 = vmatpush1.msra.mxu0 0.0
        %1553 = vmatprep.subr.mxu0 0.0
        %1554 = vmatpush1.msra.mxu0 0.0
        %1555 = vmatprep.subr.mxu0 0.0
        %1556 = vmatpush1.msra.mxu0 0.0
        %1557 = vmatprep.subr.mxu0 0.0
        %1558 = vmatpush1.msra.mxu0 0.0
        %1559 = vmatprep.subr.mxu0 0.0
        %1560 = vmatpush1.msra.mxu0 0.0
        %1561 = vmatprep.subr.mxu0 0.0
        %1562 = vmatpush1.msra.mxu0 0.0
        %1563 = vmatprep.subr.mxu0 0.0
        %1564 = vmatpush1.msra.mxu0 0.0
        %1565 = vmatprep.subr.mxu0 0.0
        %1566 = vmatpush1.msra.mxu0 0.0
        %1567 = vmatprep.subr.mxu0 0.0
        %1568 = vmatpush1.msra.mxu0 0.0
        %1569 = vmatprep.subr.mxu0 0.0
        %1570 = vmatpush1.msra.mxu0 0.0
        %1571 = vmatprep.subr.mxu0 0.0
        %1572 = vmatpush1.msra.mxu0 0.0
        %1573 = vmatprep.subr.mxu0 0.0
        %1574 = vmatpush1.msra.mxu0 0.0
        %1575 = vmatprep.subr.mxu0 0.0
        %1576 = vmatpush1.msra.mxu0 0.0
        %1577 = vmatprep.subr.mxu0 0.0
        %1578 = vmatpush1.msra.mxu0 0.0
        %1579 = vmatprep.subr.mxu0 0.0
        %1580 = vmatpush1.msra.mxu0 0.0
        %1581 = vmatprep.mubr.f32.mxu0 0.0
        %1582 = vmatmul.mubr.f32.gmra.mrb[0].mxu0 %v451
        %v1583 = vpop.f32.mrb[0].mxu0
        %v1584 = vadd.f32 0.0, %v1583
        %v1585 = vpop.f32.mrb[0].mxu0
        %v1586 = vadd.f32 0.0, %v1585
        %1587 = vdwg.mxu0
        %1588 = vmatprep.subr.mxu0 %v1416
        %1589 = vmatpush1.msra.mxu0 %v1415
        %1590 = vmatprep.subr.mxu0 %v1441
        %1591 = vmatpush1.msra.mxu0 %v1438
        %1592 = vmatprep.subr.mxu0 0.0
        %1593 = vmatpush1.msra.mxu0 0.0
        %1594 = vmatprep.subr.mxu0 0.0
        %1595 = vmatpush1.msra.mxu0 0.0
        %1596 = vmatprep.subr.mxu0 0.0
        %1597 = vmatpush1.msra.mxu0 0.0
        %1598 = vmatprep.subr.mxu0 0.0
        %1599 = vmatpush1.msra.mxu0 0.0
        %1600 = vmatprep.subr.mxu0 0.0
        %1601 = vmatpush1.msra.mxu0 0.0
        %1602 = vmatprep.subr.mxu0 0.0
        %1603 = vmatpush1.msra.mxu0 0.0
        %1604 = vmatprep.subr.mxu0 0.0
        %1605 = vmatpush1.msra.mxu0 0.0
        %1606 = vmatprep.subr.mxu0 0.0
        %1607 = vmatpush1.msra.mxu0 0.0
        %1608 = vmatprep.subr.mxu0 0.0
        %1609 = vmatpush1.msra.mxu0 0.0
        %1610 = vmatprep.subr.mxu0 0.0
        %1611 = vmatpush1.msra.mxu0 0.0
        %1612 = vmatprep.subr.mxu0 0.0
        %1613 = vmatpush1.msra.mxu0 0.0
        %1614 = vmatprep.subr.mxu0 0.0
        %1615 = vmatpush1.msra.mxu0 0.0
        %1616 = vmatprep.subr.mxu0 0.0
        %1617 = vmatpush1.msra.mxu0 0.0
        %1618 = vmatprep.subr.mxu0 0.0
        %1619 = vmatpush1.msra.mxu0 0.0
        %1620 = vmatprep.subr.mxu0 0.0
        %1621 = vmatpush1.msra.mxu0 0.0
        %1622 = vmatprep.subr.mxu0 0.0
        %1623 = vmatpush1.msra.mxu0 0.0
        %1624 = vmatprep.subr.mxu0 0.0
        %1625 = vmatpush1.msra.mxu0 0.0
        %1626 = vmatprep.subr.mxu0 0.0
        %1627 = vmatpush1.msra.mxu0 0.0
        %1628 = vmatprep.subr.mxu0 0.0
        %1629 = vmatpush1.msra.mxu0 0.0
        %1630 = vmatprep.subr.mxu0 0.0
        %1631 = vmatpush1.msra.mxu0 0.0
        %1632 = vmatprep.subr.mxu0 0.0
        %1633 = vmatpush1.msra.mxu0 0.0
        %1634 = vmatprep.subr.mxu0 0.0
        %1635 = vmatpush1.msra.mxu0 0.0
        %1636 = vmatprep.subr.mxu0 0.0
        %1637 = vmatpush1.msra.mxu0 0.0
        %1638 = vmatprep.subr.mxu0 0.0
        %1639 = vmatpush1.msra.mxu0 0.0
        %1640 = vmatprep.subr.mxu0 0.0
        %1641 = vmatpush1.msra.mxu0 0.0
        %1642 = vmatprep.subr.mxu0 0.0
        %1643 = vmatpush1.msra.mxu0 0.0
        %1644 = vmatprep.subr.mxu0 0.0
        %1645 = vmatpush1.msra.mxu0 0.0
        %1646 = vmatprep.subr.mxu0 0.0
        %1647 = vmatpush1.msra.mxu0 0.0
        %1648 = vmatprep.subr.mxu0 0.0
        %1649 = vmatpush1.msra.mxu0 0.0
        %1650 = vmatprep.subr.mxu0 0.0
        %1651 = vmatpush1.msra.mxu0 0.0
        %1652 = vmatprep.mubr.f32.mxu0 0.0
        %1653 = vmatmul.mubr.f32.gmra.mrb[0].mxu0 %v451
        %v1654 = vpop.f32.mrb[0].mxu0
        %v1655 = vadd.f32 0.0, %v1654
        %v1656 = vpop.f32.mrb[0].mxu0
        %v1657 = vadd.f32 0.0, %v1656
        %1658 = vdwg.mxu0
        %1659 = vmatprep.subr.mxu0 0.0
        %1660 = vmatpush1.msra.mxu0 %v1417
        %1661 = vmatprep.subr.mxu0 0.0
        %1662 = vmatpush1.msra.mxu0 %v1444
        %1663 = vmatprep.subr.mxu0 0.0
        %1664 = vmatpush1.msra.mxu0 0.0
        %1665 = vmatprep.subr.mxu0 0.0
        %1666 = vmatpush1.msra.mxu0 0.0
        %1667 = vmatprep.subr.mxu0 0.0
        %1668 = vmatpush1.msra.mxu0 0.0
        %1669 = vmatprep.subr.mxu0 0.0
        %1670 = vmatpush1.msra.mxu0 0.0
        %1671 = vmatprep.subr.mxu0 0.0
        %1672 = vmatpush1.msra.mxu0 0.0
        %1673 = vmatprep.subr.mxu0 0.0
        %1674 = vmatpush1.msra.mxu0 0.0
        %1675 = vmatprep.subr.mxu0 0.0
        %1676 = vmatpush1.msra.mxu0 0.0
        %1677 = vmatprep.subr.mxu0 0.0
        %1678 = vmatpush1.msra.mxu0 0.0
        %1679 = vmatprep.subr.mxu0 0.0
        %1680 = vmatpush1.msra.mxu0 0.0
        %1681 = vmatprep.subr.mxu0 0.0
        %1682 = vmatpush1.msra.mxu0 0.0
        %1683 = vmatprep.subr.mxu0 0.0
        %1684 = vmatpush1.msra.mxu0 0.0
        %1685 = vmatprep.subr.mxu0 0.0
        %1686 = vmatpush1.msra.mxu0 0.0
        %1687 = vmatprep.subr.mxu0 0.0
        %1688 = vmatpush1.msra.mxu0 0.0
        %1689 = vmatprep.subr.mxu0 0.0
        %1690 = vmatpush1.msra.mxu0 0.0
        %1691 = vmatprep.subr.mxu0 0.0
        %1692 = vmatpush1.msra.mxu0 0.0
        %1693 = vmatprep.subr.mxu0 0.0
        %1694 = vmatpush1.msra.mxu0 0.0
        %1695 = vmatprep.subr.mxu0 0.0
        %1696 = vmatpush1.msra.mxu0 0.0
        %1697 = vmatprep.subr.mxu0 0.0
        %1698 = vmatpush1.msra.mxu0 0.0
        %1699 = vmatprep.subr.mxu0 0.0
        %1700 = vmatpush1.msra.mxu0 0.0
        %1701 = vmatprep.subr.mxu0 0.0
        %1702 = vmatpush1.msra.mxu0 0.0
        %1703 = vmatprep.subr.mxu0 0.0
        %1704 = vmatpush1.msra.mxu0 0.0
        %1705 = vmatprep.subr.mxu0 0.0
        %1706 = vmatpush1.msra.mxu0 0.0
        %1707 = vmatprep.subr.mxu0 0.0
        %1708 = vmatpush1.msra.mxu0 0.0
        %1709 = vmatprep.subr.mxu0 0.0
        %1710 = vmatpush1.msra.mxu0 0.0
        %1711 = vmatprep.subr.mxu0 0.0
        %1712 = vmatpush1.msra.mxu0 0.0
        %1713 = vmatprep.subr.mxu0 0.0
        %1714 = vmatpush1.msra.mxu0 0.0
        %1715 = vmatprep.subr.mxu0 0.0
        %1716 = vmatpush1.msra.mxu0 0.0
        %1717 = vmatprep.subr.mxu0 0.0
        %1718 = vmatpush1.msra.mxu0 0.0
        %1719 = vmatprep.subr.mxu0 0.0
        %1720 = vmatpush1.msra.mxu0 0.0
        %1721 = vmatprep.subr.mxu0 0.0
        %1722 = vmatpush1.msra.mxu0 0.0
        %1723 = vmatprep.mubr.f32.mxu0 0.0
        %1724 = vmatmul.mubr.f32.gmra.mrb[0].mxu0 %v451
        %v1725 = vpop.f32.mrb[0].mxu0
        %v1726 = vadd.f32 0.0, %v1725
        %v1727 = vpop.f32.mrb[0].mxu0
        %1728 = vdwg.mxu0
        %v1729 = vmax.f32 %v1403, %v1513
        %v1730 = vmax.f32 %v1404, %v1515
        %v1731 = vmax.f32 %v1405, %v1584
        %v1732 = vmax.f32 %v1406, %v1586
        %v1733 = vmax.f32 %v1407, %v1655
        %v1734 = vmax.f32 %v1408, %v1657
        %v1735 = vmax.f32 %v1409, %v1726
        %v1736 = vld [vmem:[%s3] sm:$0xff]
        %1738 = vset.pattern.permute.xlu0 0
        %1739 = vperm.xlu0 %1738, %v1736
        %v1740 = vpop.permute.xlu0 %1739
        %v1742 = vadd.f32 %v1729, %v1740
        %v1743 = vadd.f32 %v1730, %v1740
        %v1744 = vadd.f32 %v1731, %v1740
        %v1745 = vadd.f32 %v1732, %v1740
        %v1746 = vadd.f32 %v1733, %v1740
        %v1747 = vadd.f32 %v1734, %v1740
        %v1748 = vadd.f32 %v1735, %v1740
        %v1749 = vmax.f32 %v1742, 0.0
        %v1750 = vmax.f32 %v1743, 0.0
        %v1751 = vmax.f32 %v1744, 0.0
        %v1752 = vmax.f32 %v1745, 0.0
        %v1753 = vmax.f32 %v1746, 0.0
        %v1754 = vmax.f32 %v1747, 0.0
        %v1755 = vmax.f32 %v1748, 0.0
        %v1756 = vld [vmem:[%s1] sm:$0xff]
        %v1758 = vlaneseq
        %v1759 = vshrl.u32 %v1758, 7
        %v1760 = vsub.s32 0, %v1759
        %v1761 = vrot.slane %v1756, %v1760
        %v1762 = vlaneseq
        %v1763 = vshrl.u32 %v1762, 7
        %v1764 = vsub.s32 1, %v1763
        %v1765 = vrot.slane %v1756, %v1764
        %v1766 = vlaneseq
        %v1767 = vshrl.u32 %v1766, 7
        %v1768 = vsub.s32 2, %v1767
        %v1769 = vrot.slane %v1756, %v1768
        %v1770 = vlaneseq
        %v1771 = vshrl.u32 %v1770, 7
        %v1772 = vsub.s32 3, %v1771
        %v1773 = vrot.slane %v1756, %v1772
        %v1774 = vlaneseq
        %v1775 = vshrl.u32 %v1774, 7
        %v1776 = vsub.s32 4, %v1775
        %v1777 = vrot.slane %v1756, %v1776
        %v1778 = vlaneseq
        %v1779 = vshrl.u32 %v1778, 7
        %v1780 = vsub.s32 5, %v1779
        %v1781 = vrot.slane %v1756, %v1780
        %v1782 = vlaneseq
        %v1783 = vshrl.u32 %v1782, 7
        %v1784 = vsub.s32 6, %v1783
        %v1785 = vrot.slane %v1756, %v1784
        %v1793 = vmul.f32 %v1749, %v1761
        %v1794 = vmul.f32 %v1750, %v1765
        %v1795 = vmul.f32 %v1751, %v1769
        %v1796 = vmul.f32 %v1752, %v1773
        %v1797 = vmul.f32 %v1753, %v1777
        %v1798 = vmul.f32 %v1754, %v1781
        %v1799 = vmul.f32 %v1755, %v1785
        %1800 = vrot.lane.b32.xlu0 %v1793, 127
        %v1801 = vpop.permute.xlu0 %1800
        %1802 = vrot.lane.b32.xlu0 %v1794, 127
        %v1803 = vpop.permute.xlu0 %1802
        %1804 = vrot.lane.b32.xlu0 %v1795, 127
        %v1805 = vpop.permute.xlu0 %1804
        %1806 = vrot.lane.b32.xlu0 %v1796, 127
        %v1807 = vpop.permute.xlu0 %1806
        %1808 = vrot.lane.b32.xlu0 %v1797, 127
        %v1809 = vpop.permute.xlu0 %1808
        %1810 = vrot.lane.b32.xlu0 %v1798, 127
        %v1811 = vpop.permute.xlu0 %1810
        %1812 = vrot.lane.b32.xlu0 %v1799, 127
        %v1813 = vpop.permute.xlu0 %1812
        %v1814 = vlaneseq
        %v1815 = vand.u32 %v1814, 127
        %vm1816 = vcmp.lt.s32.totalorder %v1815, 127
        %v1817 = vsel %vm1816, %v1811, %v1813
        %v1818 = vsel %vm1816, %v1809, %v1811
        %v1819 = vsel %vm1816, %v1807, %v1809
        %v1820 = vsel %vm1816, %v1805, %v1807
        %v1821 = vsel %vm1816, %v1803, %v1805
        %v1822 = vsel %vm1816, %v1801, %v1803
        %v1823 = vsel %vm1816, %v1813, %v1801
        %1824 = vrot.lane.b32.xlu0 %v1793, 126
        %v1825 = vpop.permute.xlu0 %1824
        %1826 = vrot.lane.b32.xlu0 %v1794, 126
        %v1827 = vpop.permute.xlu0 %1826
        %1828 = vrot.lane.b32.xlu0 %v1795, 126
        %v1829 = vpop.permute.xlu0 %1828
        %1830 = vrot.lane.b32.xlu0 %v1796, 126
        %v1831 = vpop.permute.xlu0 %1830
        %1832 = vrot.lane.b32.xlu0 %v1797, 126
        %v1833 = vpop.permute.xlu0 %1832
        %1834 = vrot.lane.b32.xlu0 %v1798, 126
        %v1835 = vpop.permute.xlu0 %1834
        %1836 = vrot.lane.b32.xlu0 %v1799, 126
        %v1837 = vpop.permute.xlu0 %1836
        %vm1838 = vcmp.lt.s32.totalorder %v1815, 126
        %v1839 = vsel %vm1838, %v1835, %v1837
        %v1840 = vsel %vm1838, %v1833, %v1835
        %v1841 = vsel %vm1838, %v1831, %v1833
        %v1842 = vsel %vm1838, %v1829, %v1831
        %v1843 = vsel %vm1838, %v1827, %v1829
        %v1844 = vsel %vm1838, %v1825, %v1827
        %v1845 = vsel %vm1838, %v1837, %v1825
        %1846 = vrot.lane.b32.xlu0 %v1793, 96
        %v1847 = vpop.permute.xlu0 %1846
        %1848 = vrot.lane.b32.xlu0 %v1794, 96
        %v1849 = vpop.permute.xlu0 %1848
        %1850 = vrot.lane.b32.xlu0 %v1795, 96
        %v1851 = vpop.permute.xlu0 %1850
        %1852 = vrot.lane.b32.xlu0 %v1796, 96
        %v1853 = vpop.permute.xlu0 %1852
        %1854 = vrot.lane.b32.xlu0 %v1797, 96
        %v1855 = vpop.permute.xlu0 %1854
        %1856 = vrot.lane.b32.xlu0 %v1798, 96
        %v1857 = vpop.permute.xlu0 %1856
        %1858 = vrot.lane.b32.xlu0 %v1799, 96
        %v1859 = vpop.permute.xlu0 %1858
        %vm1860 = vcmp.lt.s32.totalorder %v1815, 96
        %v1861 = vsel %vm1860, %v1857, %v1859
        %v1862 = vsel %vm1860, %v1855, %v1857
        %v1863 = vsel %vm1860, %v1853, %v1855
        %v1864 = vsel %vm1860, %v1851, %v1853
        %v1865 = vsel %vm1860, %v1849, %v1851
        %v1866 = vsel %vm1860, %v1847, %v1849
        %v1867 = vsel %vm1860, %v1859, %v1847
        %1868 = vrot.lane.b32.xlu0 %v1793, 95
        %v1869 = vpop.permute.xlu0 %1868
        %1870 = vrot.lane.b32.xlu0 %v1794, 95
        %v1871 = vpop.permute.xlu0 %1870
        %1872 = vrot.lane.b32.xlu0 %v1795, 95
        %v1873 = vpop.permute.xlu0 %1872
        %1874 = vrot.lane.b32.xlu0 %v1796, 95
        %v1875 = vpop.permute.xlu0 %1874
        %1876 = vrot.lane.b32.xlu0 %v1797, 95
        %v1877 = vpop.permute.xlu0 %1876
        %1878 = vrot.lane.b32.xlu0 %v1798, 95
        %v1879 = vpop.permute.xlu0 %1878
        %1880 = vrot.lane.b32.xlu0 %v1799, 95
        %v1881 = vpop.permute.xlu0 %1880
        %vm1882 = vcmp.lt.s32.totalorder %v1815, 95
        %v1883 = vsel %vm1882, %v1879, %v1881
        %v1884 = vsel %vm1882, %v1877, %v1879
        %v1885 = vsel %vm1882, %v1875, %v1877
        %v1886 = vsel %vm1882, %v1873, %v1875
        %v1887 = vsel %vm1882, %v1871, %v1873
        %v1888 = vsel %vm1882, %v1869, %v1871
        %v1889 = vsel %vm1882, %v1881, %v1869
        %1890 = vrot.lane.b32.xlu0 %v1793, 94
        %v1891 = vpop.permute.xlu0 %1890
        %1892 = vrot.lane.b32.xlu0 %v1794, 94
        %v1893 = vpop.permute.xlu0 %1892
        %1894 = vrot.lane.b32.xlu0 %v1795, 94
        %v1895 = vpop.permute.xlu0 %1894
        %1896 = vrot.lane.b32.xlu0 %v1796, 94
        %v1897 = vpop.permute.xlu0 %1896
        %1898 = vrot.lane.b32.xlu0 %v1797, 94
        %v1899 = vpop.permute.xlu0 %1898
        %1900 = vrot.lane.b32.xlu0 %v1798, 94
        %v1901 = vpop.permute.xlu0 %1900
        %1902 = vrot.lane.b32.xlu0 %v1799, 94
        %v1903 = vpop.permute.xlu0 %1902
        %vm1904 = vcmp.lt.s32.totalorder %v1815, 94
        %v1905 = vsel %vm1904, %v1901, %v1903
        %v1906 = vsel %vm1904, %v1899, %v1901
        %v1907 = vsel %vm1904, %v1897, %v1899
        %v1908 = vsel %vm1904, %v1895, %v1897
        %v1909 = vsel %vm1904, %v1893, %v1895
        %v1910 = vsel %vm1904, %v1891, %v1893
        %v1911 = vsel %vm1904, %v1903, %v1891
        %1912 = vrot.lane.b32.xlu0 %v1793, 64
        %v1913 = vpop.permute.xlu0 %1912
        %1914 = vrot.lane.b32.xlu0 %v1794, 64
        %v1915 = vpop.permute.xlu0 %1914
        %1916 = vrot.lane.b32.xlu0 %v1795, 64
        %v1917 = vpop.permute.xlu0 %1916
        %1918 = vrot.lane.b32.xlu0 %v1796, 64
        %v1919 = vpop.permute.xlu0 %1918
        %1920 = vrot.lane.b32.xlu0 %v1797, 64
        %v1921 = vpop.permute.xlu0 %1920
        %1922 = vrot.lane.b32.xlu0 %v1798, 64
        %v1923 = vpop.permute.xlu0 %1922
        %1924 = vrot.lane.b32.xlu0 %v1799, 64
        %v1925 = vpop.permute.xlu0 %1924
        %vm1926 = vcmp.lt.s32.totalorder %v1815, 64
        %v1927 = vsel %vm1926, %v1923, %v1925
        %v1928 = vsel %vm1926, %v1921, %v1923
        %v1929 = vsel %vm1926, %v1919, %v1921
        %v1930 = vsel %vm1926, %v1917, %v1919
        %v1931 = vsel %vm1926, %v1915, %v1917
        %v1932 = vsel %vm1926, %v1913, %v1915
        %v1933 = vsel %vm1926, %v1925, %v1913
        %1934 = vrot.lane.b32.xlu0 %v1793, 63
        %v1935 = vpop.permute.xlu0 %1934
        %1936 = vrot.lane.b32.xlu0 %v1794, 63
        %v1937 = vpop.permute.xlu0 %1936
        %1938 = vrot.lane.b32.xlu0 %v1795, 63
        %v1939 = vpop.permute.xlu0 %1938
        %1940 = vrot.lane.b32.xlu0 %v1796, 63
        %v1941 = vpop.permute.xlu0 %1940
        %1942 = vrot.lane.b32.xlu0 %v1797, 63
        %v1943 = vpop.permute.xlu0 %1942
        %1944 = vrot.lane.b32.xlu0 %v1798, 63
        %v1945 = vpop.permute.xlu0 %1944
        %1946 = vrot.lane.b32.xlu0 %v1799, 63
        %v1947 = vpop.permute.xlu0 %1946
        %vm1948 = vcmp.lt.s32.totalorder %v1815, 63
        %v1949 = vsel %vm1948, %v1945, %v1947
        %v1950 = vsel %vm1948, %v1943, %v1945
        %v1951 = vsel %vm1948, %v1941, %v1943
        %v1952 = vsel %vm1948, %v1939, %v1941
        %v1953 = vsel %vm1948, %v1937, %v1939
        %v1954 = vsel %vm1948, %v1935, %v1937
        %v1955 = vsel %vm1948, %v1947, %v1935
        %1956 = vrot.lane.b32.xlu0 %v1793, 62
        %v1957 = vpop.permute.xlu0 %1956
        %1958 = vrot.lane.b32.xlu0 %v1794, 62
        %v1959 = vpop.permute.xlu0 %1958
        %1960 = vrot.lane.b32.xlu0 %v1795, 62
        %v1961 = vpop.permute.xlu0 %1960
        %1962 = vrot.lane.b32.xlu0 %v1796, 62
        %v1963 = vpop.permute.xlu0 %1962
        %1964 = vrot.lane.b32.xlu0 %v1797, 62
        %v1965 = vpop.permute.xlu0 %1964
        %1966 = vrot.lane.b32.xlu0 %v1798, 62
        %v1967 = vpop.permute.xlu0 %1966
        %1968 = vrot.lane.b32.xlu0 %v1799, 62
        %v1969 = vpop.permute.xlu0 %1968
        %vm1970 = vcmp.lt.s32.totalorder %v1815, 62
        %v1971 = vsel %vm1970, %v1967, %v1969
        %v1972 = vsel %vm1970, %v1965, %v1967
        %v1973 = vsel %vm1970, %v1963, %v1965
        %v1974 = vsel %vm1970, %v1961, %v1963
        %v1975 = vsel %vm1970, %v1959, %v1961
        %v1976 = vsel %vm1970, %v1957, %v1959
        %v1977 = vsel %vm1970, %v1969, %v1957
        %v1978 = vld [vmem:[%s4] sm:$0xff]
        %v1979 = vld [vmem:[%s4 + $0x8] sm:$0xff]
        %v1980 = vld [vmem:[%s4 + $0x10] sm:$0xff]
        %v1981 = vld [vmem:[%s4 + $0x18] sm:$0xff]
        %v1982 = vld [vmem:[%s4 + $0x20] sm:$0xff]
        %v1983 = vld [vmem:[%s5] sm:$0xff]
        %v1984 = vld [vmem:[%s5 + $0x8] sm:$0xff]
        %v1985 = vld [vmem:[%s5 + $0x10] sm:$0xff]
        %v1986 = vld [vmem:[%s5 + $0x18] sm:$0xff]
        %v1987 = vld [vmem:[%s5 + $0x20] sm:$0xff]
        %1989 = vset.pattern.permute.xlu0 0
        %1990 = vperm.xlu0 %1989, %v1983
        %v1991 = vpop.permute.xlu0 %1990
        %1994 = vset.pattern.permute.xlu0 0
        %1995 = vperm.xlu0 %1994, %v1984
        %v1996 = vpop.permute.xlu0 %1995
        %1999 = vset.pattern.permute.xlu0 0
        %2000 = vperm.xlu0 %1999, %v1985
        %v2001 = vpop.permute.xlu0 %2000
        %2004 = vset.pattern.permute.xlu0 0
        %2005 = vperm.xlu0 %2004, %v1986
        %v2006 = vpop.permute.xlu0 %2005
        %2009 = vset.pattern.permute.xlu0 0
        %2010 = vperm.xlu0 %2009, %v1987
        %v2011 = vpop.permute.xlu0 %2010
        %vm2013 = vcmask 588800
        %v2015 = vsel %vm2013, %v1978, 0
        %v2018 = vsel %vm2013, %v1979, 0
        %v2021 = vsel %vm2013, %v1980, 0
        %v2024 = vsel %vm2013, %v1981, 0
        %v2027 = vsel %vm2013, %v1982, 0
        %2029 = vmatprep.subr.mxu0 %v1794
        %2030 = vmatpush1.msra.mxu0 %v1793
        %2031 = vmatprep.subr.mxu0 %v1821
        %2032 = vmatpush1.msra.mxu0 %v1822
        %2033 = vmatprep.subr.mxu0 %v1843
        %2034 = vmatpush1.msra.mxu0 %v1844
        %2035 = vmatprep.subr.mxu0 %v1865
        %2036 = vmatpush1.msra.mxu0 %v1866
        %2037 = vmatprep.subr.mxu0 %v1887
        %2038 = vmatpush1.msra.mxu0 %v1888
        %2039 = vmatprep.subr.mxu0 %v1909
        %2040 = vmatpush1.msra.mxu0 %v1910
        %2041 = vmatprep.subr.mxu0 %v1931
        %2042 = vmatpush1.msra.mxu0 %v1932
        %2043 = vmatprep.subr.mxu0 %v1953
        %2044 = vmatpush1.msra.mxu0 %v1954
        %2045 = vmatprep.subr.mxu0 %v1975
        %2046 = vmatpush1.msra.mxu0 %v1976
        %2047 = vmatprep.subr.mxu0 0.0
        %2048 = vmatpush1.msra.mxu0 0.0
        %2049 = vmatprep.subr.mxu0 0.0
        %2050 = vmatpush1.msra.mxu0 0.0
        %2051 = vmatprep.subr.mxu0 0.0
        %2052 = vmatpush1.msra.mxu0 0.0
        %2053 = vmatprep.subr.mxu0 0.0
        %2054 = vmatpush1.msra.mxu0 0.0
        %2055 = vmatprep.subr.mxu0 0.0
        %2056 = vmatpush1.msra.mxu0 0.0
        %2057 = vmatprep.subr.mxu0 0.0
        %2058 = vmatpush1.msra.mxu0 0.0
        %2059 = vmatprep.subr.mxu0 0.0
        %2060 = vmatpush1.msra.mxu0 0.0
        %2061 = vmatprep.subr.mxu0 0.0
        %2062 = vmatpush1.msra.mxu0 0.0
        %2063 = vmatprep.subr.mxu0 0.0
        %2064 = vmatpush1.msra.mxu0 0.0
        %2065 = vmatprep.subr.mxu0 0.0
        %2066 = vmatpush1.msra.mxu0 0.0
        %2067 = vmatprep.subr.mxu0 0.0
        %2068 = vmatpush1.msra.mxu0 0.0
        %2069 = vmatprep.subr.mxu0 0.0
        %2070 = vmatpush1.msra.mxu0 0.0
        %2071 = vmatprep.subr.mxu0 0.0
        %2072 = vmatpush1.msra.mxu0 0.0
        %2073 = vmatprep.subr.mxu0 0.0
        %2074 = vmatpush1.msra.mxu0 0.0
        %2075 = vmatprep.subr.mxu0 0.0
        %2076 = vmatpush1.msra.mxu0 0.0
        %2077 = vmatprep.subr.mxu0 0.0
        %2078 = vmatpush1.msra.mxu0 0.0
        %2079 = vmatprep.subr.mxu0 0.0
        %2080 = vmatpush1.msra.mxu0 0.0
        %2081 = vmatprep.subr.mxu0 0.0
        %2082 = vmatpush1.msra.mxu0 0.0
        %2083 = vmatprep.subr.mxu0 0.0
        %2084 = vmatpush1.msra.mxu0 0.0
        %2085 = vmatprep.subr.mxu0 0.0
        %2086 = vmatpush1.msra.mxu0 0.0
        %2087 = vmatprep.subr.mxu0 0.0
        %2088 = vmatpush1.msra.mxu0 0.0
        %2089 = vmatprep.subr.mxu0 0.0
        %2090 = vmatpush1.msra.mxu0 0.0
        %2091 = vmatprep.subr.mxu0 0.0
        %2092 = vmatpush1.msra.mxu0 0.0
        %2093 = vmatprep.mubr.f32.mxu0 0.0
        %2094 = vmatmul.mubr.f32.gmra.mrb[0].mxu0 %v2015
        %v2095 = vpop.f32.mrb[0].mxu0
        %v2096 = vadd.f32 %v1991, %v2095
        %v2097 = vpop.f32.mrb[0].mxu0
        %v2098 = vadd.f32 %v1991, %v2097
        %2099 = vmatprep.mubr.f32.mxu0 0.0
        %2100 = vmatmul.mubr.f32.gmra.mrb[0].mxu0 %v2018
        %v2101 = vpop.f32.mrb[0].mxu0
        %v2102 = vadd.f32 %v1996, %v2101
        %v2103 = vpop.f32.mrb[0].mxu0
        %v2104 = vadd.f32 %v1996, %v2103
        %2105 = vmatprep.mubr.f32.mxu0 0.0
        %2106 = vmatmul.mubr.f32.gmra.mrb[0].mxu0 %v2021
        %v2107 = vpop.f32.mrb[0].mxu0
        %v2108 = vadd.f32 %v2001, %v2107
        %v2109 = vpop.f32.mrb[0].mxu0
        %v2110 = vadd.f32 %v2001, %v2109
        %2111 = vmatprep.mubr.f32.mxu0 0.0
        %2112 = vmatmul.mubr.f32.gmra.mrb[0].mxu0 %v2024
        %v2113 = vpop.f32.mrb[0].mxu0
        %v2114 = vadd.f32 %v2006, %v2113
        %v2115 = vpop.f32.mrb[0].mxu0
        %v2116 = vadd.f32 %v2006, %v2115
        %2117 = vmatprep.mubr.f32.mxu0 0.0
        %2118 = vmatmul.mubr.f32.gmra.mrb[0].mxu0 %v2027
        %v2119 = vpop.f32.mrb[0].mxu0
        %v2120 = vadd.f32 %v2011, %v2119
        %v2121 = vpop.f32.mrb[0].mxu0
        %v2122 = vadd.f32 %v2011, %v2121
        %2123 = vdwg.mxu0
        %2124 = vmatprep.subr.mxu0 %v1796
        %2125 = vmatpush1.msra.mxu0 %v1795
        %2126 = vmatprep.subr.mxu0 %v1819
        %2127 = vmatpush1.msra.mxu0 %v1820
        %2128 = vmatprep.subr.mxu0 %v1841
        %2129 = vmatpush1.msra.mxu0 %v1842
        %2130 = vmatprep.subr.mxu0 %v1863
        %2131 = vmatpush1.msra.mxu0 %v1864
        %2132 = vmatprep.subr.mxu0 %v1885
        %2133 = vmatpush1.msra.mxu0 %v1886
        %2134 = vmatprep.subr.mxu0 %v1907
        %2135 = vmatpush1.msra.mxu0 %v1908
        %2136 = vmatprep.subr.mxu0 %v1929
        %2137 = vmatpush1.msra.mxu0 %v1930
        %2138 = vmatprep.subr.mxu0 %v1951
        %2139 = vmatpush1.msra.mxu0 %v1952
        %2140 = vmatprep.subr.mxu0 %v1973
        %2141 = vmatpush1.msra.mxu0 %v1974
        %2142 = vmatprep.subr.mxu0 0.0
        %2143 = vmatpush1.msra.mxu0 0.0
        %2144 = vmatprep.subr.mxu0 0.0
        %2145 = vmatpush1.msra.mxu0 0.0
        %2146 = vmatprep.subr.mxu0 0.0
        %2147 = vmatpush1.msra.mxu0 0.0
        %2148 = vmatprep.subr.mxu0 0.0
        %2149 = vmatpush1.msra.mxu0 0.0
        %2150 = vmatprep.subr.mxu0 0.0
        %2151 = vmatpush1.msra.mxu0 0.0
        %2152 = vmatprep.subr.mxu0 0.0
        %2153 = vmatpush1.msra.mxu0 0.0
        %2154 = vmatprep.subr.mxu0 0.0
        %2155 = vmatpush1.msra.mxu0 0.0
        %2156 = vmatprep.subr.mxu0 0.0
        %2157 = vmatpush1.msra.mxu0 0.0
        %2158 = vmatprep.subr.mxu0 0.0
        %2159 = vmatpush1.msra.mxu0 0.0
        %2160 = vmatprep.subr.mxu0 0.0
        %2161 = vmatpush1.msra.mxu0 0.0
        %2162 = vmatprep.subr.mxu0 0.0
        %2163 = vmatpush1.msra.mxu0 0.0
        %2164 = vmatprep.subr.mxu0 0.0
        %2165 = vmatpush1.msra.mxu0 0.0
        %2166 = vmatprep.subr.mxu0 0.0
        %2167 = vmatpush1.msra.mxu0 0.0
        %2168 = vmatprep.subr.mxu0 0.0
        %2169 = vmatpush1.msra.mxu0 0.0
        %2170 = vmatprep.subr.mxu0 0.0
        %2171 = vmatpush1.msra.mxu0 0.0
        %2172 = vmatprep.subr.mxu0 0.0
        %2173 = vmatpush1.msra.mxu0 0.0
        %2174 = vmatprep.subr.mxu0 0.0
        %2175 = vmatpush1.msra.mxu0 0.0
        %2176 = vmatprep.subr.mxu0 0.0
        %2177 = vmatpush1.msra.mxu0 0.0
        %2178 = vmatprep.subr.mxu0 0.0
        %2179 = vmatpush1.msra.mxu0 0.0
        %2180 = vmatprep.subr.mxu0 0.0
        %2181 = vmatpush1.msra.mxu0 0.0
        %2182 = vmatprep.subr.mxu0 0.0
        %2183 = vmatpush1.msra.mxu0 0.0
        %2184 = vmatprep.subr.mxu0 0.0
        %2185 = vmatpush1.msra.mxu0 0.0
        %2186 = vmatprep.subr.mxu0 0.0
        %2187 = vmatpush1.msra.mxu0 0.0
        %2188 = vmatprep.mubr.f32.mxu0 0.0
        %2189 = vmatmul.mubr.f32.gmra.mrb[0].mxu0 %v2015
        %v2190 = vpop.f32.mrb[0].mxu0
        %v2191 = vadd.f32 %v1991, %v2190
        %v2192 = vpop.f32.mrb[0].mxu0
        %v2193 = vadd.f32 %v1991, %v2192
        %2194 = vmatprep.mubr.f32.mxu0 0.0
        %2195 = vmatmul.mubr.f32.gmra.mrb[0].mxu0 %v2018
        %v2196 = vpop.f32.mrb[0].mxu0
        %v2197 = vadd.f32 %v1996, %v2196
        %v2198 = vpop.f32.mrb[0].mxu0
        %v2199 = vadd.f32 %v1996, %v2198
        %2200 = vmatprep.mubr.f32.mxu0 0.0
        %2201 = vmatmul.mubr.f32.gmra.mrb[0].mxu0 %v2021
        %v2202 = vpop.f32.mrb[0].mxu0
        %v2203 = vadd.f32 %v2001, %v2202
        %v2204 = vpop.f32.mrb[0].mxu0
        %v2205 = vadd.f32 %v2001, %v2204
        %2206 = vmatprep.mubr.f32.mxu0 0.0
        %2207 = vmatmul.mubr.f32.gmra.mrb[0].mxu0 %v2024
        %v2208 = vpop.f32.mrb[0].mxu0
        %v2209 = vadd.f32 %v2006, %v2208
        %v2210 = vpop.f32.mrb[0].mxu0
        %v2211 = vadd.f32 %v2006, %v2210
        %2212 = vmatprep.mubr.f32.mxu0 0.0
        %2213 = vmatmul.mubr.f32.gmra.mrb[0].mxu0 %v2027
        %v2214 = vpop.f32.mrb[0].mxu0
        %v2215 = vadd.f32 %v2011, %v2214
        %v2216 = vpop.f32.mrb[0].mxu0
        %v2217 = vadd.f32 %v2011, %v2216
        %2218 = vdwg.mxu0
        %2219 = vmatprep.subr.mxu0 %v1798
        %2220 = vmatpush1.msra.mxu0 %v1797
        %2221 = vmatprep.subr.mxu0 %v1817
        %2222 = vmatpush1.msra.mxu0 %v1818
        %2223 = vmatprep.subr.mxu0 %v1839
        %2224 = vmatpush1.msra.mxu0 %v1840
        %2225 = vmatprep.subr.mxu0 %v1861
        %2226 = vmatpush1.msra.mxu0 %v1862
        %2227 = vmatprep.subr.mxu0 %v1883
        %2228 = vmatpush1.msra.mxu0 %v1884
        %2229 = vmatprep.subr.mxu0 %v1905
        %2230 = vmatpush1.msra.mxu0 %v1906
        %2231 = vmatprep.subr.mxu0 %v1927
        %2232 = vmatpush1.msra.mxu0 %v1928
        %2233 = vmatprep.subr.mxu0 %v1949
        %2234 = vmatpush1.msra.mxu0 %v1950
        %2235 = vmatprep.subr.mxu0 %v1971
        %2236 = vmatpush1.msra.mxu0 %v1972
        %2237 = vmatprep.subr.mxu0 0.0
        %2238 = vmatpush1.msra.mxu0 0.0
        %2239 = vmatprep.subr.mxu0 0.0
        %2240 = vmatpush1.msra.mxu0 0.0
        %2241 = vmatprep.subr.mxu0 0.0
        %2242 = vmatpush1.msra.mxu0 0.0
        %2243 = vmatprep.subr.mxu0 0.0
        %2244 = vmatpush1.msra.mxu0 0.0
        %2245 = vmatprep.subr.mxu0 0.0
        %2246 = vmatpush1.msra.mxu0 0.0
        %2247 = vmatprep.subr.mxu0 0.0
        %2248 = vmatpush1.msra.mxu0 0.0
        %2249 = vmatprep.subr.mxu0 0.0
        %2250 = vmatpush1.msra.mxu0 0.0
        %2251 = vmatprep.subr.mxu0 0.0
        %2252 = vmatpush1.msra.mxu0 0.0
        %2253 = vmatprep.subr.mxu0 0.0
        %2254 = vmatpush1.msra.mxu0 0.0
        %2255 = vmatprep.subr.mxu0 0.0
        %2256 = vmatpush1.msra.mxu0 0.0
        %2257 = vmatprep.subr.mxu0 0.0
        %2258 = vmatpush1.msra.mxu0 0.0
        %2259 = vmatprep.subr.mxu0 0.0
        %2260 = vmatpush1.msra.mxu0 0.0
        %2261 = vmatprep.subr.mxu0 0.0
        %2262 = vmatpush1.msra.mxu0 0.0
        %2263 = vmatprep.subr.mxu0 0.0
        %2264 = vmatpush1.msra.mxu0 0.0
        %2265 = vmatprep.subr.mxu0 0.0
        %2266 = vmatpush1.msra.mxu0 0.0
        %2267 = vmatprep.subr.mxu0 0.0
        %2268 = vmatpush1.msra.mxu0 0.0
        %2269 = vmatprep.subr.mxu0 0.0
        %2270 = vmatpush1.msra.mxu0 0.0
        %2271 = vmatprep.subr.mxu0 0.0
        %2272 = vmatpush1.msra.mxu0 0.0
        %2273 = vmatprep.subr.mxu0 0.0
        %2274 = vmatpush1.msra.mxu0 0.0
        %2275 = vmatprep.subr.mxu0 0.0
        %2276 = vmatpush1.msra.mxu0 0.0
        %2277 = vmatprep.subr.mxu0 0.0
        %2278 = vmatpush1.msra.mxu0 0.0
        %2279 = vmatprep.subr.mxu0 0.0
        %2280 = vmatpush1.msra.mxu0 0.0
        %2281 = vmatprep.subr.mxu0 0.0
        %2282 = vmatpush1.msra.mxu0 0.0
        %2283 = vmatprep.mubr.f32.mxu0 0.0
        %2284 = vmatmul.mubr.f32.gmra.mrb[0].mxu0 %v2015
        %v2285 = vpop.f32.mrb[0].mxu0
        %v2286 = vadd.f32 %v1991, %v2285
        %v2287 = vpop.f32.mrb[0].mxu0
        %v2288 = vadd.f32 %v1991, %v2287
        %2289 = vmatprep.mubr.f32.mxu0 0.0
        %2290 = vmatmul.mubr.f32.gmra.mrb[0].mxu0 %v2018
        %v2291 = vpop.f32.mrb[0].mxu0
        %v2292 = vadd.f32 %v1996, %v2291
        %v2293 = vpop.f32.mrb[0].mxu0
        %v2294 = vadd.f32 %v1996, %v2293
        %2295 = vmatprep.mubr.f32.mxu0 0.0
        %2296 = vmatmul.mubr.f32.gmra.mrb[0].mxu0 %v2021
        %v2297 = vpop.f32.mrb[0].mxu0
        %v2298 = vadd.f32 %v2001, %v2297
        %v2299 = vpop.f32.mrb[0].mxu0
        %v2300 = vadd.f32 %v2001, %v2299
        %2301 = vmatprep.mubr.f32.mxu0 0.0
        %2302 = vmatmul.mubr.f32.gmra.mrb[0].mxu0 %v2024
        %v2303 = vpop.f32.mrb[0].mxu0
        %v2304 = vadd.f32 %v2006, %v2303
        %v2305 = vpop.f32.mrb[0].mxu0
        %v2306 = vadd.f32 %v2006, %v2305
        %2307 = vmatprep.mubr.f32.mxu0 0.0
        %2308 = vmatmul.mubr.f32.gmra.mrb[0].mxu0 %v2027
        %v2309 = vpop.f32.mrb[0].mxu0
        %v2310 = vadd.f32 %v2011, %v2309
        %v2311 = vpop.f32.mrb[0].mxu0
        %v2312 = vadd.f32 %v2011, %v2311
        %2313 = vdwg.mxu0
        %2314 = vmatprep.subr.mxu0 0.0
        %2315 = vmatpush1.msra.mxu0 %v1799
        %2316 = vmatprep.subr.mxu0 0.0
        %2317 = vmatpush1.msra.mxu0 %v1823
        %2318 = vmatprep.subr.mxu0 0.0
        %2319 = vmatpush1.msra.mxu0 %v1845
        %2320 = vmatprep.subr.mxu0 0.0
        %2321 = vmatpush1.msra.mxu0 %v1867
        %2322 = vmatprep.subr.mxu0 0.0
        %2323 = vmatpush1.msra.mxu0 %v1889
        %2324 = vmatprep.subr.mxu0 0.0
        %2325 = vmatpush1.msra.mxu0 %v1911
        %2326 = vmatprep.subr.mxu0 0.0
        %2327 = vmatpush1.msra.mxu0 %v1933
        %2328 = vmatprep.subr.mxu0 0.0
        %2329 = vmatpush1.msra.mxu0 %v1955
        %2330 = vmatprep.subr.mxu0 0.0
        %2331 = vmatpush1.msra.mxu0 %v1977
        %2332 = vmatprep.subr.mxu0 0.0
        %2333 = vmatpush1.msra.mxu0 0.0
        %2334 = vmatprep.subr.mxu0 0.0
        %2335 = vmatpush1.msra.mxu0 0.0
        %2336 = vmatprep.subr.mxu0 0.0
        %2337 = vmatpush1.msra.mxu0 0.0
        %2338 = vmatprep.subr.mxu0 0.0
        %2339 = vmatpush1.msra.mxu0 0.0
        %2340 = vmatprep.subr.mxu0 0.0
        %2341 = vmatpush1.msra.mxu0 0.0
        %2342 = vmatprep.subr.mxu0 0.0
        %2343 = vmatpush1.msra.mxu0 0.0
        %2344 = vmatprep.subr.mxu0 0.0
        %2345 = vmatpush1.msra.mxu0 0.0
        %2346 = vmatprep.subr.mxu0 0.0
        %2347 = vmatpush1.msra.mxu0 0.0
        %2348 = vmatprep.subr.mxu0 0.0
        %2349 = vmatpush1.msra.mxu0 0.0
        %2350 = vmatprep.subr.mxu0 0.0
        %2351 = vmatpush1.msra.mxu0 0.0
        %2352 = vmatprep.subr.mxu0 0.0
        %2353 = vmatpush1.msra.mxu0 0.0
        %2354 = vmatprep.subr.mxu0 0.0
        %2355 = vmatpush1.msra.mxu0 0.0
        %2356 = vmatprep.subr.mxu0 0.0
        %2357 = vmatpush1.msra.mxu0 0.0
        %2358 = vmatprep.subr.mxu0 0.0
        %2359 = vmatpush1.msra.mxu0 0.0
        %2360 = vmatprep.subr.mxu0 0.0
        %2361 = vmatpush1.msra.mxu0 0.0
        %2362 = vmatprep.subr.mxu0 0.0
        %2363 = vmatpush1.msra.mxu0 0.0
        %2364 = vmatprep.subr.mxu0 0.0
        %2365 = vmatpush1.msra.mxu0 0.0
        %2366 = vmatprep.subr.mxu0 0.0
        %2367 = vmatpush1.msra.mxu0 0.0
        %2368 = vmatprep.subr.mxu0 0.0
        %2369 = vmatpush1.msra.mxu0 0.0
        %2370 = vmatprep.subr.mxu0 0.0
        %2371 = vmatpush1.msra.mxu0 0.0
        %2372 = vmatprep.subr.mxu0 0.0
        %2373 = vmatpush1.msra.mxu0 0.0
        %2374 = vmatprep.subr.mxu0 0.0
        %2375 = vmatpush1.msra.mxu0 0.0
        %2376 = vmatprep.subr.mxu0 0.0
        %2377 = vmatpush1.msra.mxu0 0.0
        %2378 = vmatprep.mubr.f32.mxu0 0.0
        %2379 = vmatmul.mubr.f32.gmra.mrb[0].mxu0 %v2015
        %v2380 = vpop.f32.mrb[0].mxu0
        %v2381 = vadd.f32 %v1991, %v2380
        %v2382 = vpop.f32.mrb[0].mxu0
        %2383 = vmatprep.mubr.f32.mxu0 0.0
        %2384 = vmatmul.mubr.f32.gmra.mrb[0].mxu0 %v2018
        %v2385 = vpop.f32.mrb[0].mxu0
        %v2386 = vadd.f32 %v1996, %v2385
        %v2387 = vpop.f32.mrb[0].mxu0
        %2388 = vmatprep.mubr.f32.mxu0 0.0
        %2389 = vmatmul.mubr.f32.gmra.mrb[0].mxu0 %v2021
        %v2390 = vpop.f32.mrb[0].mxu0
        %v2391 = vadd.f32 %v2001, %v2390
        %v2392 = vpop.f32.mrb[0].mxu0
        %2393 = vmatprep.mubr.f32.mxu0 0.0
        %2394 = vmatmul.mubr.f32.gmra.mrb[0].mxu0 %v2024
        %v2395 = vpop.f32.mrb[0].mxu0
        %v2396 = vadd.f32 %v2006, %v2395
        %v2397 = vpop.f32.mrb[0].mxu0
        %2398 = vmatprep.mubr.f32.mxu0 0.0
        %2399 = vmatmul.mubr.f32.gmra.mrb[0].mxu0 %v2027
        %v2400 = vpop.f32.mrb[0].mxu0
        %v2401 = vadd.f32 %v2011, %v2400
        %v2402 = vpop.f32.mrb[0].mxu0
        %2403 = vdwg.mxu0
        %v2404 = vmax.f32 %v2096, 0.0
        %v2405 = vmax.f32 %v2098, 0.0
        %v2406 = vmax.f32 %v2191, 0.0
        %v2407 = vmax.f32 %v2193, 0.0
        %v2408 = vmax.f32 %v2286, 0.0
        %v2409 = vmax.f32 %v2288, 0.0
        %v2410 = vmax.f32 %v2381, 0.0
        %v2411 = vmax.f32 %v2102, 0.0
        %v2412 = vmax.f32 %v2104, 0.0
        %v2413 = vmax.f32 %v2197, 0.0
        %v2414 = vmax.f32 %v2199, 0.0
        %v2415 = vmax.f32 %v2292, 0.0
        %v2416 = vmax.f32 %v2294, 0.0
        %v2417 = vmax.f32 %v2386, 0.0
        %v2418 = vmax.f32 %v2108, 0.0
        %v2419 = vmax.f32 %v2110, 0.0
        %v2420 = vmax.f32 %v2203, 0.0
        %v2421 = vmax.f32 %v2205, 0.0
        %v2422 = vmax.f32 %v2298, 0.0
        %v2423 = vmax.f32 %v2300, 0.0
        %v2424 = vmax.f32 %v2391, 0.0
        %v2425 = vmax.f32 %v2114, 0.0
        %v2426 = vmax.f32 %v2116, 0.0
        %v2427 = vmax.f32 %v2209, 0.0
        %v2428 = vmax.f32 %v2211, 0.0
        %v2429 = vmax.f32 %v2304, 0.0
        %v2430 = vmax.f32 %v2306, 0.0
        %v2431 = vmax.f32 %v2396, 0.0
        %v2432 = vmax.f32 %v2120, 0.0
        %v2433 = vmax.f32 %v2122, 0.0
        %v2434 = vmax.f32 %v2215, 0.0
        %v2435 = vmax.f32 %v2217, 0.0
        %v2436 = vmax.f32 %v2310, 0.0
        %v2437 = vmax.f32 %v2312, 0.0
        %v2438 = vmax.f32 %v2401, 0.0
        %2439 = vrot.lane.b32.xlu0 %v2404, 127
        %v2440 = vpop.permute.xlu0 %2439
        %2441 = vrot.lane.b32.xlu0 %v2411, 127
        %v2442 = vpop.permute.xlu0 %2441
        %2443 = vrot.lane.b32.xlu0 %v2418, 127
        %v2444 = vpop.permute.xlu0 %2443
        %2445 = vrot.lane.b32.xlu0 %v2425, 127
        %v2446 = vpop.permute.xlu0 %2445
        %2447 = vrot.lane.b32.xlu0 %v2432, 127
        %v2448 = vpop.permute.xlu0 %2447
        %2449 = vrot.lane.b32.xlu0 %v2405, 127
        %v2450 = vpop.permute.xlu0 %2449
        %2451 = vrot.lane.b32.xlu0 %v2412, 127
        %v2452 = vpop.permute.xlu0 %2451
        %2453 = vrot.lane.b32.xlu0 %v2419, 127
        %v2454 = vpop.permute.xlu0 %2453
        %2455 = vrot.lane.b32.xlu0 %v2426, 127
        %v2456 = vpop.permute.xlu0 %2455
        %2457 = vrot.lane.b32.xlu0 %v2433, 127
        %v2458 = vpop.permute.xlu0 %2457
        %2459 = vrot.lane.b32.xlu0 %v2406, 127
        %v2460 = vpop.permute.xlu0 %2459
        %2461 = vrot.lane.b32.xlu0 %v2413, 127
        %v2462 = vpop.permute.xlu0 %2461
        %2463 = vrot.lane.b32.xlu0 %v2420, 127
        %v2464 = vpop.permute.xlu0 %2463
        %2465 = vrot.lane.b32.xlu0 %v2427, 127
        %v2466 = vpop.permute.xlu0 %2465
        %2467 = vrot.lane.b32.xlu0 %v2434, 127
        %v2468 = vpop.permute.xlu0 %2467
        %2469 = vrot.lane.b32.xlu0 %v2407, 127
        %v2470 = vpop.permute.xlu0 %2469
        %2471 = vrot.lane.b32.xlu0 %v2414, 127
        %v2472 = vpop.permute.xlu0 %2471
        %2473 = vrot.lane.b32.xlu0 %v2421, 127
        %v2474 = vpop.permute.xlu0 %2473
        %2475 = vrot.lane.b32.xlu0 %v2428, 127
        %v2476 = vpop.permute.xlu0 %2475
        %2477 = vrot.lane.b32.xlu0 %v2435, 127
        %v2478 = vpop.permute.xlu0 %2477
        %2479 = vrot.lane.b32.xlu0 %v2408, 127
        %v2480 = vpop.permute.xlu0 %2479
        %2481 = vrot.lane.b32.xlu0 %v2415, 127
        %v2482 = vpop.permute.xlu0 %2481
        %2483 = vrot.lane.b32.xlu0 %v2422, 127
        %v2484 = vpop.permute.xlu0 %2483
        %2485 = vrot.lane.b32.xlu0 %v2429, 127
        %v2486 = vpop.permute.xlu0 %2485
        %2487 = vrot.lane.b32.xlu0 %v2436, 127
        %v2488 = vpop.permute.xlu0 %2487
        %2489 = vrot.lane.b32.xlu0 %v2409, 127
        %v2490 = vpop.permute.xlu0 %2489
        %2491 = vrot.lane.b32.xlu0 %v2416, 127
        %v2492 = vpop.permute.xlu0 %2491
        %2493 = vrot.lane.b32.xlu0 %v2423, 127
        %v2494 = vpop.permute.xlu0 %2493
        %2495 = vrot.lane.b32.xlu0 %v2430, 127
        %v2496 = vpop.permute.xlu0 %2495
        %2497 = vrot.lane.b32.xlu0 %v2437, 127
        %v2498 = vpop.permute.xlu0 %2497
        %2499 = vrot.lane.b32.xlu0 %v2410, 127
        %v2500 = vpop.permute.xlu0 %2499
        %2501 = vrot.lane.b32.xlu0 %v2417, 127
        %v2502 = vpop.permute.xlu0 %2501
        %2503 = vrot.lane.b32.xlu0 %v2424, 127
        %v2504 = vpop.permute.xlu0 %2503
        %2505 = vrot.lane.b32.xlu0 %v2431, 127
        %v2506 = vpop.permute.xlu0 %2505
        %2507 = vrot.lane.b32.xlu0 %v2438, 127
        %v2508 = vpop.permute.xlu0 %2507
        %v2509 = vsel %vm1816, %v2490, %v2500
        %v2510 = vsel %vm1816, %v2492, %v2502
        %v2511 = vsel %vm1816, %v2494, %v2504
        %v2512 = vsel %vm1816, %v2496, %v2506
        %v2513 = vsel %vm1816, %v2498, %v2508
        %v2514 = vsel %vm1816, %v2480, %v2490
        %v2515 = vsel %vm1816, %v2482, %v2492
        %v2516 = vsel %vm1816, %v2484, %v2494
        %v2517 = vsel %vm1816, %v2486, %v2496
        %v2518 = vsel %vm1816, %v2488, %v2498
        %v2519 = vsel %vm1816, %v2470, %v2480
        %v2520 = vsel %vm1816, %v2472, %v2482
        %v2521 = vsel %vm1816, %v2474, %v2484
        %v2522 = vsel %vm1816, %v2476, %v2486
        %v2523 = vsel %vm1816, %v2478, %v2488
        %v2524 = vsel %vm1816, %v2460, %v2470
        %v2525 = vsel %vm1816, %v2462, %v2472
        %v2526 = vsel %vm1816, %v2464, %v2474
        %v2527 = vsel %vm1816, %v2466, %v2476
        %v2528 = vsel %vm1816, %v2468, %v2478
        %v2529 = vsel %vm1816, %v2450, %v2460
        %v2530 = vsel %vm1816, %v2452, %v2462
        %v2531 = vsel %vm1816, %v2454, %v2464
        %v2532 = vsel %vm1816, %v2456, %v2466
        %v2533 = vsel %vm1816, %v2458, %v2468
        %v2534 = vsel %vm1816, %v2440, %v2450
        %v2535 = vsel %vm1816, %v2442, %v2452
        %v2536 = vsel %vm1816, %v2444, %v2454
        %v2537 = vsel %vm1816, %v2446, %v2456
        %v2538 = vsel %vm1816, %v2448, %v2458
        %v2539 = vsel %vm1816, %v2500, %v2440
        %v2540 = vsel %vm1816, %v2502, %v2442
        %v2541 = vsel %vm1816, %v2504, %v2444
        %v2542 = vsel %vm1816, %v2506, %v2446
        %v2543 = vsel %vm1816, %v2508, %v2448
        %v2544 = vmax.f32 %v2404, %v2534
        %v2545 = vmax.f32 %v2405, %v2529
        %v2546 = vmax.f32 %v2406, %v2524
        %v2547 = vmax.f32 %v2407, %v2519
        %v2548 = vmax.f32 %v2408, %v2514
        %v2549 = vmax.f32 %v2409, %v2509
        %v2550 = vmax.f32 %v2410, %v2539
        %v2551 = vmax.f32 %v2411, %v2535
        %v2552 = vmax.f32 %v2412, %v2530
        %v2553 = vmax.f32 %v2413, %v2525
        %v2554 = vmax.f32 %v2414, %v2520
        %v2555 = vmax.f32 %v2415, %v2515
        %v2556 = vmax.f32 %v2416, %v2510
        %v2557 = vmax.f32 %v2417, %v2540
        %v2558 = vmax.f32 %v2418, %v2536
        %v2559 = vmax.f32 %v2419, %v2531
        %v2560 = vmax.f32 %v2420, %v2526
        %v2561 = vmax.f32 %v2421, %v2521
        %v2562 = vmax.f32 %v2422, %v2516
        %v2563 = vmax.f32 %v2423, %v2511
        %v2564 = vmax.f32 %v2424, %v2541
        %v2565 = vmax.f32 %v2425, %v2537
        %v2566 = vmax.f32 %v2426, %v2532
        %v2567 = vmax.f32 %v2427, %v2527
        %v2568 = vmax.f32 %v2428, %v2522
        %v2569 = vmax.f32 %v2429, %v2517
        %v2570 = vmax.f32 %v2430, %v2512
        %v2571 = vmax.f32 %v2431, %v2542
        %v2572 = vmax.f32 %v2432, %v2538
        %v2573 = vmax.f32 %v2433, %v2533
        %v2574 = vmax.f32 %v2434, %v2528
        %v2575 = vmax.f32 %v2435, %v2523
        %v2576 = vmax.f32 %v2436, %v2518
        %v2577 = vmax.f32 %v2437, %v2513
        %v2578 = vmax.f32 %v2438, %v2543
        %2579 = vrot.lane.b32.xlu0 %v2544, 96
        %v2580 = vpop.permute.xlu0 %2579
        %2581 = vrot.lane.b32.xlu0 %v2551, 96
        %v2582 = vpop.permute.xlu0 %2581
        %2583 = vrot.lane.b32.xlu0 %v2558, 96
        %v2584 = vpop.permute.xlu0 %2583
        %2585 = vrot.lane.b32.xlu0 %v2565, 96
        %v2586 = vpop.permute.xlu0 %2585
        %2587 = vrot.lane.b32.xlu0 %v2572, 96
        %v2588 = vpop.permute.xlu0 %2587
        %2589 = vrot.lane.b32.xlu0 %v2545, 96
        %v2590 = vpop.permute.xlu0 %2589
        %2591 = vrot.lane.b32.xlu0 %v2552, 96
        %v2592 = vpop.permute.xlu0 %2591
        %2593 = vrot.lane.b32.xlu0 %v2559, 96
        %v2594 = vpop.permute.xlu0 %2593
        %2595 = vrot.lane.b32.xlu0 %v2566, 96
        %v2596 = vpop.permute.xlu0 %2595
        %2597 = vrot.lane.b32.xlu0 %v2573, 96
        %v2598 = vpop.permute.xlu0 %2597
        %2599 = vrot.lane.b32.xlu0 %v2546, 96
        %v2600 = vpop.permute.xlu0 %2599
        %2601 = vrot.lane.b32.xlu0 %v2553, 96
        %v2602 = vpop.permute.xlu0 %2601
        %2603 = vrot.lane.b32.xlu0 %v2560, 96
        %v2604 = vpop.permute.xlu0 %2603
        %2605 = vrot.lane.b32.xlu0 %v2567, 96
        %v2606 = vpop.permute.xlu0 %2605
        %2607 = vrot.lane.b32.xlu0 %v2574, 96
        %v2608 = vpop.permute.xlu0 %2607
        %2609 = vrot.lane.b32.xlu0 %v2547, 96
        %v2610 = vpop.permute.xlu0 %2609
        %2611 = vrot.lane.b32.xlu0 %v2554, 96
        %v2612 = vpop.permute.xlu0 %2611
        %2613 = vrot.lane.b32.xlu0 %v2561, 96
        %v2614 = vpop.permute.xlu0 %2613
        %2615 = vrot.lane.b32.xlu0 %v2568, 96
        %v2616 = vpop.permute.xlu0 %2615
        %2617 = vrot.lane.b32.xlu0 %v2575, 96
        %v2618 = vpop.permute.xlu0 %2617
        %2619 = vrot.lane.b32.xlu0 %v2548, 96
        %v2620 = vpop.permute.xlu0 %2619
        %2621 = vrot.lane.b32.xlu0 %v2555, 96
        %v2622 = vpop.permute.xlu0 %2621
        %2623 = vrot.lane.b32.xlu0 %v2562, 96
        %v2624 = vpop.permute.xlu0 %2623
        %2625 = vrot.lane.b32.xlu0 %v2569, 96
        %v2626 = vpop.permute.xlu0 %2625
        %2627 = vrot.lane.b32.xlu0 %v2576, 96
        %v2628 = vpop.permute.xlu0 %2627
        %2629 = vrot.lane.b32.xlu0 %v2549, 96
        %v2630 = vpop.permute.xlu0 %2629
        %2631 = vrot.lane.b32.xlu0 %v2556, 96
        %v2632 = vpop.permute.xlu0 %2631
        %2633 = vrot.lane.b32.xlu0 %v2563, 96
        %v2634 = vpop.permute.xlu0 %2633
        %2635 = vrot.lane.b32.xlu0 %v2570, 96
        %v2636 = vpop.permute.xlu0 %2635
        %2637 = vrot.lane.b32.xlu0 %v2577, 96
        %v2638 = vpop.permute.xlu0 %2637
        %2639 = vrot.lane.b32.xlu0 %v2550, 96
        %v2640 = vpop.permute.xlu0 %2639
        %2641 = vrot.lane.b32.xlu0 %v2557, 96
        %v2642 = vpop.permute.xlu0 %2641
        %2643 = vrot.lane.b32.xlu0 %v2564, 96
        %v2644 = vpop.permute.xlu0 %2643
        %2645 = vrot.lane.b32.xlu0 %v2571, 96
        %v2646 = vpop.permute.xlu0 %2645
        %2647 = vrot.lane.b32.xlu0 %v2578, 96
        %v2648 = vpop.permute.xlu0 %2647
        %v2649 = vsel %vm1860, %v2630, %v2640
        %v2650 = vsel %vm1860, %v2632, %v2642
        %v2651 = vsel %vm1860, %v2634, %v2644
        %v2652 = vsel %vm1860, %v2636, %v2646
        %v2653 = vsel %vm1860, %v2638, %v2648
        %v2654 = vsel %vm1860, %v2620, %v2630
        %v2655 = vsel %vm1860, %v2622, %v2632
        %v2656 = vsel %vm1860, %v2624, %v2634
        %v2657 = vsel %vm1860, %v2626, %v2636
        %v2658 = vsel %vm1860, %v2628, %v2638
        %v2659 = vsel %vm1860, %v2610, %v2620
        %v2660 = vsel %vm1860, %v2612, %v2622
        %v2661 = vsel %vm1860, %v2614, %v2624
        %v2662 = vsel %vm1860, %v2616, %v2626
        %v2663 = vsel %vm1860, %v2618, %v2628
        %v2664 = vsel %vm1860, %v2600, %v2610
        %v2665 = vsel %vm1860, %v2602, %v2612
        %v2666 = vsel %vm1860, %v2604, %v2614
        %v2667 = vsel %vm1860, %v2606, %v2616
        %v2668 = vsel %vm1860, %v2608, %v2618
        %v2669 = vsel %vm1860, %v2590, %v2600
        %v2670 = vsel %vm1860, %v2592, %v2602
        %v2671 = vsel %vm1860, %v2594, %v2604
        %v2672 = vsel %vm1860, %v2596, %v2606
        %v2673 = vsel %vm1860, %v2598, %v2608
        %v2674 = vsel %vm1860, %v2580, %v2590
        %v2675 = vsel %vm1860, %v2582, %v2592
        %v2676 = vsel %vm1860, %v2584, %v2594
        %v2677 = vsel %vm1860, %v2586, %v2596
        %v2678 = vsel %vm1860, %v2588, %v2598
        %v2679 = vsel %vm1860, %v2640, %v2580
        %v2680 = vsel %vm1860, %v2642, %v2582
        %v2681 = vsel %vm1860, %v2644, %v2584
        %v2682 = vsel %vm1860, %v2646, %v2586
        %v2683 = vsel %vm1860, %v2648, %v2588
        %v2684 = vmax.f32 %v2544, %v2674
        %v2685 = vmax.f32 %v2545, %v2669
        %v2686 = vmax.f32 %v2546, %v2664
        %v2687 = vmax.f32 %v2547, %v2659
        %v2688 = vmax.f32 %v2548, %v2654
        %v2689 = vmax.f32 %v2549, %v2649
        %v2690 = vmax.f32 %v2550, %v2679
        %v2691 = vmax.f32 %v2551, %v2675
        %v2692 = vmax.f32 %v2552, %v2670
        %v2693 = vmax.f32 %v2553, %v2665
        %v2694 = vmax.f32 %v2554, %v2660
        %v2695 = vmax.f32 %v2555, %v2655
        %v2696 = vmax.f32 %v2556, %v2650
        %v2697 = vmax.f32 %v2557, %v2680
        %v2698 = vmax.f32 %v2558, %v2676
        %v2699 = vmax.f32 %v2559, %v2671
        %v2700 = vmax.f32 %v2560, %v2666
        %v2701 = vmax.f32 %v2561, %v2661
        %v2702 = vmax.f32 %v2562, %v2656
        %v2703 = vmax.f32 %v2563, %v2651
        %v2704 = vmax.f32 %v2564, %v2681
        %v2705 = vmax.f32 %v2565, %v2677
        %v2706 = vmax.f32 %v2566, %v2672
        %v2707 = vmax.f32 %v2567, %v2667
        %v2708 = vmax.f32 %v2568, %v2662
        %v2709 = vmax.f32 %v2569, %v2657
        %v2710 = vmax.f32 %v2570, %v2652
        %v2711 = vmax.f32 %v2571, %v2682
        %v2712 = vmax.f32 %v2572, %v2678
        %v2713 = vmax.f32 %v2573, %v2673
        %v2714 = vmax.f32 %v2574, %v2668
        %v2715 = vmax.f32 %v2575, %v2663
        %v2716 = vmax.f32 %v2576, %v2658
        %v2717 = vmax.f32 %v2577, %v2653
        %v2718 = vmax.f32 %v2578, %v2683
        %v2719 = vlaneseq
        %v2720 = vshrl.u32 %v2719, 7
        %v2721 = vld [vmem:[%s7] sm:$0x1]
        %v2722 = vadd.f32 %v2721, 0.0
        %v2723 = vld [vmem:[%s6] sm:$0xff]
        %v2724 = vld [vmem:[%s6 + $0x8] sm:$0xff]
        %v2725 = vld [vmem:[%s6 + $0x10] sm:$0xff]
        %v2726 = vld [vmem:[%s6 + $0x18] sm:$0xff]
        %v2727 = vld [vmem:[%s6 + $0x20] sm:$0xff]
        %v2728 = vld [vmem:[%s6 + $0x28] sm:$0xff]
        %v2729 = vld [vmem:[%s6 + $0x30] sm:$0xff]
        %v2730 = vld [vmem:[%s6 + $0x38] sm:$0xff]
        %v2731 = vld [vmem:[%s6 + $0x40] sm:$0xff]
        %v2732 = vld [vmem:[%s6 + $0x48] sm:$0xff]
        %v2733 = vld [vmem:[%s6 + $0x50] sm:$0xff]
        %v2734 = vld [vmem:[%s6 + $0x58] sm:$0xff]
        %v2735 = vld [vmem:[%s6 + $0x60] sm:$0xff]
        %v2736 = vld [vmem:[%s6 + $0x68] sm:$0xff]
        %v2737 = vld [vmem:[%s6 + $0x70] sm:$0xff]
        %v2738 = vld [vmem:[%s6 + $0x78] sm:$0xff]
        %v2739 = vld [vmem:[%s6 + $0x80] sm:$0xff]
        %v2740 = vld [vmem:[%s6 + $0x88] sm:$0xff]
        %v2741 = vld [vmem:[%s6 + $0x90] sm:$0xff]
        %v2742 = vld [vmem:[%s6 + $0x98] sm:$0xff]
        %v2743 = vld [vmem:[%s6 + $0xa0] sm:$0xff]
        %v2744 = vld [vmem:[%s6 + $0xa8] sm:$0xff]
        %v2745 = vld [vmem:[%s6 + $0xb0] sm:$0xff]
        %v2746 = vld [vmem:[%s6 + $0xb8] sm:$0xff]
        %v2747 = vld [vmem:[%s6 + $0xc0] sm:$0xff]
        %v2748 = vld [vmem:[%s6 + $0xc8] sm:$0xff]
        %v2749 = vld [vmem:[%s6 + $0xd0] sm:$0xff]
        %v2750 = vld [vmem:[%s6 + $0xd8] sm:$0xff]
        %v2751 = vld [vmem:[%s6 + $0xe0] sm:$0xff]
        %v2752 = vld [vmem:[%s6 + $0xe8] sm:$0xff]
        %v2753 = vld [vmem:[%s6 + $0xf0] sm:$0xff]
        %v2754 = vld [vmem:[%s6 + $0xf8] sm:$0xff]
        %v2755 = vld [vmem:[%s6 + $0x100] sm:$0xff]
        %v2756 = vld [vmem:[%s6 + $0x108] sm:$0xff]
        %v2757 = vld [vmem:[%s6 + $0x110] sm:$0xff]
        %v2758 = vmul.f32 %v2684, %v2723
        %v2759 = vmul.f32 %v2685, %v2724
        %v2760 = vmul.f32 %v2686, %v2725
        %v2761 = vmul.f32 %v2687, %v2726
        %v2762 = vmul.f32 %v2688, %v2727
        %v2763 = vmul.f32 %v2689, %v2728
        %v2764 = vmul.f32 %v2690, %v2729
        %v2765 = vmul.f32 %v2691, %v2730
        %v2766 = vmul.f32 %v2692, %v2731
        %v2767 = vmul.f32 %v2693, %v2732
        %v2768 = vmul.f32 %v2694, %v2733
        %v2769 = vmul.f32 %v2695, %v2734
        %v2770 = vmul.f32 %v2696, %v2735
        %v2771 = vmul.f32 %v2697, %v2736
        %v2772 = vmul.f32 %v2698, %v2737
        %v2773 = vmul.f32 %v2699, %v2738
        %v2774 = vmul.f32 %v2700, %v2739
        %v2775 = vmul.f32 %v2701, %v2740
        %v2776 = vmul.f32 %v2702, %v2741
        %v2777 = vmul.f32 %v2703, %v2742
        %v2778 = vmul.f32 %v2704, %v2743
        %v2779 = vmul.f32 %v2705, %v2744
        %v2780 = vmul.f32 %v2706, %v2745
        %v2781 = vmul.f32 %v2707, %v2746
        %v2782 = vmul.f32 %v2708, %v2747
        %v2783 = vmul.f32 %v2709, %v2748
        %v2784 = vmul.f32 %v2710, %v2749
        %v2785 = vmul.f32 %v2711, %v2750
        %v2786 = vmul.f32 %v2712, %v2751
        %v2787 = vmul.f32 %v2713, %v2752
        %v2788 = vmul.f32 %v2714, %v2753
        %v2789 = vmul.f32 %v2715, %v2754
        %v2790 = vmul.f32 %v2716, %v2755
        %v2791 = vmul.f32 %v2717, %v2756
        %v2792 = vmul.f32 %v2718, %v2757
        %v2793 = vadd.f32 %v2758, %v2759
        %v2794 = vadd.f32 %v2793, %v2760
        %v2795 = vadd.f32 %v2794, %v2761
        %v2796 = vadd.f32 %v2795, %v2762
        %v2797 = vadd.f32 %v2796, %v2763
        %v2798 = vadd.f32 %v2797, %v2764
        %2799 = vadd.xlane.f32.xlu0 %v2798
        %v2800 = vpop.xlane.xlu0 %2799
        %v2801 = vadd.f32 %v2765, %v2766
        %v2802 = vadd.f32 %v2801, %v2767
        %v2803 = vadd.f32 %v2802, %v2768
        %v2804 = vadd.f32 %v2803, %v2769
        %v2805 = vadd.f32 %v2804, %v2770
        %v2806 = vadd.f32 %v2805, %v2771
        %2807 = vadd.xlane.f32.xlu0 %v2806
        %v2808 = vpop.xlane.xlu0 %2807
        %v2809 = vadd.f32 %v2772, %v2773
        %v2810 = vadd.f32 %v2809, %v2774
        %v2811 = vadd.f32 %v2810, %v2775
        %v2812 = vadd.f32 %v2811, %v2776
        %v2813 = vadd.f32 %v2812, %v2777
        %v2814 = vadd.f32 %v2813, %v2778
        %2815 = vadd.xlane.f32.xlu0 %v2814
        %v2816 = vpop.xlane.xlu0 %2815
        %v2817 = vadd.f32 %v2779, %v2780
        %v2818 = vadd.f32 %v2817, %v2781
        %v2819 = vadd.f32 %v2818, %v2782
        %v2820 = vadd.f32 %v2819, %v2783
        %v2821 = vadd.f32 %v2820, %v2784
        %v2822 = vadd.f32 %v2821, %v2785
        %2823 = vadd.xlane.f32.xlu0 %v2822
        %v2824 = vpop.xlane.xlu0 %2823
        %v2825 = vadd.f32 %v2786, %v2787
        %v2826 = vadd.f32 %v2825, %v2788
        %v2827 = vadd.f32 %v2826, %v2789
        %v2828 = vadd.f32 %v2827, %v2790
        %v2829 = vadd.f32 %v2828, %v2791
        %v2830 = vadd.f32 %v2829, %v2792
        %2831 = vadd.xlane.f32.xlu0 %v2830
        %v2832 = vpop.xlane.xlu0 %2831
        %v2833 = vadd.f32 %v2800, %v2808
        %v2834 = vadd.f32 %v2833, %v2816
        %v2835 = vadd.f32 %v2834, %v2824
        %v2836 = vadd.f32 %v2835, %v2832
        %v2837 = vrot.slane %v2836, 4
        %v2838 = vadd.f32 %v2836, %v2837
        %v2839 = vrot.slane %v2838, 2
        %v2840 = vadd.f32 %v2838, %v2839
        %v2841 = vrot.slane %v2840, 1
        %v2842 = vadd.f32 %v2840, %v2841
        %vm2843 = vcmp.eq.s32.totalorder %v2720, 0
        %vm2844 = vcmp.eq.s32.totalorder %v1815, 0
        %vm2845 = vmand %vm2843, %vm2844
        %v2846 = vsel %vm2845, %v2842, 0.0
        %v2847 = vadd.f32 %v2722, %v2846
        %s2848 = scalar_lea.vmem %s6, 280
        %v2849 = vld [vmem:[%s2848] sm:$0xff]
        %v2850 = vld [vmem:[%s2848 + $0x8] sm:$0xff]
        %v2851 = vld [vmem:[%s2848 + $0x10] sm:$0xff]
        %v2852 = vld [vmem:[%s2848 + $0x18] sm:$0xff]
        %v2853 = vld [vmem:[%s2848 + $0x20] sm:$0xff]
        %v2854 = vld [vmem:[%s2848 + $0x28] sm:$0xff]
        %v2855 = vld [vmem:[%s2848 + $0x30] sm:$0xff]
        %v2856 = vld [vmem:[%s2848 + $0x38] sm:$0xff]
        %v2857 = vld [vmem:[%s2848 + $0x40] sm:$0xff]
        %v2858 = vld [vmem:[%s2848 + $0x48] sm:$0xff]
        %v2859 = vld [vmem:[%s2848 + $0x50] sm:$0xff]
        %v2860 = vld [vmem:[%s2848 + $0x58] sm:$0xff]
        %v2861 = vld [vmem:[%s2848 + $0x60] sm:$0xff]
        %v2862 = vld [vmem:[%s2848 + $0x68] sm:$0xff]
        %v2863 = vld [vmem:[%s2848 + $0x70] sm:$0xff]
        %v2864 = vld [vmem:[%s2848 + $0x78] sm:$0xff]
        %v2865 = vld [vmem:[%s2848 + $0x80] sm:$0xff]
        %v2866 = vld [vmem:[%s2848 + $0x88] sm:$0xff]
        %v2867 = vld [vmem:[%s2848 + $0x90] sm:$0xff]
        %v2868 = vld [vmem:[%s2848 + $0x98] sm:$0xff]
        %v2869 = vld [vmem:[%s2848 + $0xa0] sm:$0xff]
        %v2870 = vld [vmem:[%s2848 + $0xa8] sm:$0xff]
        %v2871 = vld [vmem:[%s2848 + $0xb0] sm:$0xff]
        %v2872 = vld [vmem:[%s2848 + $0xb8] sm:$0xff]
        %v2873 = vld [vmem:[%s2848 + $0xc0] sm:$0xff]
        %v2874 = vld [vmem:[%s2848 + $0xc8] sm:$0xff]
        %v2875 = vld [vmem:[%s2848 + $0xd0] sm:$0xff]
        %v2876 = vld [vmem:[%s2848 + $0xd8] sm:$0xff]
        %v2877 = vld [vmem:[%s2848 + $0xe0] sm:$0xff]
        %v2878 = vld [vmem:[%s2848 + $0xe8] sm:$0xff]
        %v2879 = vld [vmem:[%s2848 + $0xf0] sm:$0xff]
        %v2880 = vld [vmem:[%s2848 + $0xf8] sm:$0xff]
        %v2881 = vld [vmem:[%s2848 + $0x100] sm:$0xff]
        %v2882 = vld [vmem:[%s2848 + $0x108] sm:$0xff]
        %v2883 = vld [vmem:[%s2848 + $0x110] sm:$0xff]
        %v2884 = vmul.f32 %v2684, %v2849
        %v2885 = vmul.f32 %v2685, %v2850
        %v2886 = vmul.f32 %v2686, %v2851
        %v2887 = vmul.f32 %v2687, %v2852
        %v2888 = vmul.f32 %v2688, %v2853
        %v2889 = vmul.f32 %v2689, %v2854
        %v2890 = vmul.f32 %v2690, %v2855
        %v2891 = vmul.f32 %v2691, %v2856
        %v2892 = vmul.f32 %v2692, %v2857
        %v2893 = vmul.f32 %v2693, %v2858
        %v2894 = vmul.f32 %v2694, %v2859
        %v2895 = vmul.f32 %v2695, %v2860
        %v2896 = vmul.f32 %v2696, %v2861
        %v2897 = vmul.f32 %v2697, %v2862
        %v2898 = vmul.f32 %v2698, %v2863
        %v2899 = vmul.f32 %v2699, %v2864
        %v2900 = vmul.f32 %v2700, %v2865
        %v2901 = vmul.f32 %v2701, %v2866
        %v2902 = vmul.f32 %v2702, %v2867
        %v2903 = vmul.f32 %v2703, %v2868
        %v2904 = vmul.f32 %v2704, %v2869
        %v2905 = vmul.f32 %v2705, %v2870
        %v2906 = vmul.f32 %v2706, %v2871
        %v2907 = vmul.f32 %v2707, %v2872
        %v2908 = vmul.f32 %v2708, %v2873
        %v2909 = vmul.f32 %v2709, %v2874
        %v2910 = vmul.f32 %v2710, %v2875
        %v2911 = vmul.f32 %v2711, %v2876
        %v2912 = vmul.f32 %v2712, %v2877
        %v2913 = vmul.f32 %v2713, %v2878
        %v2914 = vmul.f32 %v2714, %v2879
        %v2915 = vmul.f32 %v2715, %v2880
        %v2916 = vmul.f32 %v2716, %v2881
        %v2917 = vmul.f32 %v2717, %v2882
        %v2918 = vmul.f32 %v2718, %v2883
        %v2919 = vadd.f32 %v2884, %v2885
        %v2920 = vadd.f32 %v2919, %v2886
        %v2921 = vadd.f32 %v2920, %v2887
        %v2922 = vadd.f32 %v2921, %v2888
        %v2923 = vadd.f32 %v2922, %v2889
        %v2924 = vadd.f32 %v2923, %v2890
        %2925 = vadd.xlane.f32.xlu0 %v2924
        %v2926 = vpop.xlane.xlu0 %2925
        %v2927 = vadd.f32 %v2891, %v2892
        %v2928 = vadd.f32 %v2927, %v2893
        %v2929 = vadd.f32 %v2928, %v2894
        %v2930 = vadd.f32 %v2929, %v2895
        %v2931 = vadd.f32 %v2930, %v2896
        %v2932 = vadd.f32 %v2931, %v2897
        %2933 = vadd.xlane.f32.xlu0 %v2932
        %v2934 = vpop.xlane.xlu0 %2933
        %v2935 = vadd.f32 %v2898, %v2899
        %v2936 = vadd.f32 %v2935, %v2900
        %v2937 = vadd.f32 %v2936, %v2901
        %v2938 = vadd.f32 %v2937, %v2902
        %v2939 = vadd.f32 %v2938, %v2903
        %v2940 = vadd.f32 %v2939, %v2904
        %2941 = vadd.xlane.f32.xlu0 %v2940
        %v2942 = vpop.xlane.xlu0 %2941
        %v2943 = vadd.f32 %v2905, %v2906
        %v2944 = vadd.f32 %v2943, %v2907
        %v2945 = vadd.f32 %v2944, %v2908
        %v2946 = vadd.f32 %v2945, %v2909
        %v2947 = vadd.f32 %v2946, %v2910
        %v2948 = vadd.f32 %v2947, %v2911
        %2949 = vadd.xlane.f32.xlu0 %v2948
        %v2950 = vpop.xlane.xlu0 %2949
        %v2951 = vadd.f32 %v2912, %v2913
        %v2952 = vadd.f32 %v2951, %v2914
        %v2953 = vadd.f32 %v2952, %v2915
        %v2954 = vadd.f32 %v2953, %v2916
        %v2955 = vadd.f32 %v2954, %v2917
        %v2956 = vadd.f32 %v2955, %v2918
        %2957 = vadd.xlane.f32.xlu0 %v2956
        %v2958 = vpop.xlane.xlu0 %2957
        %v2959 = vadd.f32 %v2926, %v2934
        %v2960 = vadd.f32 %v2959, %v2942
        %v2961 = vadd.f32 %v2960, %v2950
        %v2962 = vadd.f32 %v2961, %v2958
        %v2963 = vrot.slane %v2962, 4
        %v2964 = vadd.f32 %v2962, %v2963
        %v2965 = vrot.slane %v2964, 2
        %v2966 = vadd.f32 %v2964, %v2965
        %v2967 = vrot.slane %v2966, 1
        %v2968 = vadd.f32 %v2966, %v2967
        %vm2969 = vcmp.eq.s32.totalorder %v1815, 1
        %vm2970 = vmand %vm2843, %vm2969
        %v2971 = vsel %vm2970, %v2968, 0.0
        %v2972 = vadd.f32 %v2847, %v2971
        %s2973 = scalar_lea.vmem %s6, 560
        %v2974 = vld [vmem:[%s2973] sm:$0xff]
        %v2975 = vld [vmem:[%s2973 + $0x8] sm:$0xff]
        %v2976 = vld [vmem:[%s2973 + $0x10] sm:$0xff]
        %v2977 = vld [vmem:[%s2973 + $0x18] sm:$0xff]
        %v2978 = vld [vmem:[%s2973 + $0x20] sm:$0xff]
        %v2979 = vld [vmem:[%s2973 + $0x28] sm:$0xff]
        %v2980 = vld [vmem:[%s2973 + $0x30] sm:$0xff]
        %v2981 = vld [vmem:[%s2973 + $0x38] sm:$0xff]
        %v2982 = vld [vmem:[%s2973 + $0x40] sm:$0xff]
        %v2983 = vld [vmem:[%s2973 + $0x48] sm:$0xff]
        %v2984 = vld [vmem:[%s2973 + $0x50] sm:$0xff]
        %v2985 = vld [vmem:[%s2973 + $0x58] sm:$0xff]
        %v2986 = vld [vmem:[%s2973 + $0x60] sm:$0xff]
        %v2987 = vld [vmem:[%s2973 + $0x68] sm:$0xff]
        %v2988 = vld [vmem:[%s2973 + $0x70] sm:$0xff]
        %v2989 = vld [vmem:[%s2973 + $0x78] sm:$0xff]
        %v2990 = vld [vmem:[%s2973 + $0x80] sm:$0xff]
        %v2991 = vld [vmem:[%s2973 + $0x88] sm:$0xff]
        %v2992 = vld [vmem:[%s2973 + $0x90] sm:$0xff]
        %v2993 = vld [vmem:[%s2973 + $0x98] sm:$0xff]
        %v2994 = vld [vmem:[%s2973 + $0xa0] sm:$0xff]
        %v2995 = vld [vmem:[%s2973 + $0xa8] sm:$0xff]
        %v2996 = vld [vmem:[%s2973 + $0xb0] sm:$0xff]
        %v2997 = vld [vmem:[%s2973 + $0xb8] sm:$0xff]
        %v2998 = vld [vmem:[%s2973 + $0xc0] sm:$0xff]
        %v2999 = vld [vmem:[%s2973 + $0xc8] sm:$0xff]
        %v3000 = vld [vmem:[%s2973 + $0xd0] sm:$0xff]
        %v3001 = vld [vmem:[%s2973 + $0xd8] sm:$0xff]
        %v3002 = vld [vmem:[%s2973 + $0xe0] sm:$0xff]
        %v3003 = vld [vmem:[%s2973 + $0xe8] sm:$0xff]
        %v3004 = vld [vmem:[%s2973 + $0xf0] sm:$0xff]
        %v3005 = vld [vmem:[%s2973 + $0xf8] sm:$0xff]
        %v3006 = vld [vmem:[%s2973 + $0x100] sm:$0xff]
        %v3007 = vld [vmem:[%s2973 + $0x108] sm:$0xff]
        %v3008 = vld [vmem:[%s2973 + $0x110] sm:$0xff]
        %v3009 = vmul.f32 %v2684, %v2974
        %v3010 = vmul.f32 %v2685, %v2975
        %v3011 = vmul.f32 %v2686, %v2976
        %v3012 = vmul.f32 %v2687, %v2977
        %v3013 = vmul.f32 %v2688, %v2978
        %v3014 = vmul.f32 %v2689, %v2979
        %v3015 = vmul.f32 %v2690, %v2980
        %v3016 = vmul.f32 %v2691, %v2981
        %v3017 = vmul.f32 %v2692, %v2982
        %v3018 = vmul.f32 %v2693, %v2983
        %v3019 = vmul.f32 %v2694, %v2984
        %v3020 = vmul.f32 %v2695, %v2985
        %v3021 = vmul.f32 %v2696, %v2986
        %v3022 = vmul.f32 %v2697, %v2987
        %v3023 = vmul.f32 %v2698, %v2988
        %v3024 = vmul.f32 %v2699, %v2989
        %v3025 = vmul.f32 %v2700, %v2990
        %v3026 = vmul.f32 %v2701, %v2991
        %v3027 = vmul.f32 %v2702, %v2992
        %v3028 = vmul.f32 %v2703, %v2993
        %v3029 = vmul.f32 %v2704, %v2994
        %v3030 = vmul.f32 %v2705, %v2995
        %v3031 = vmul.f32 %v2706, %v2996
        %v3032 = vmul.f32 %v2707, %v2997
        %v3033 = vmul.f32 %v2708, %v2998
        %v3034 = vmul.f32 %v2709, %v2999
        %v3035 = vmul.f32 %v2710, %v3000
        %v3036 = vmul.f32 %v2711, %v3001
        %v3037 = vmul.f32 %v2712, %v3002
        %v3038 = vmul.f32 %v2713, %v3003
        %v3039 = vmul.f32 %v2714, %v3004
        %v3040 = vmul.f32 %v2715, %v3005
        %v3041 = vmul.f32 %v2716, %v3006
        %v3042 = vmul.f32 %v2717, %v3007
        %v3043 = vmul.f32 %v2718, %v3008
        %v3044 = vadd.f32 %v3009, %v3010
        %v3045 = vadd.f32 %v3044, %v3011
        %v3046 = vadd.f32 %v3045, %v3012
        %v3047 = vadd.f32 %v3046, %v3013
        %v3048 = vadd.f32 %v3047, %v3014
        %v3049 = vadd.f32 %v3048, %v3015
        %3050 = vadd.xlane.f32.xlu0 %v3049
        %v3051 = vpop.xlane.xlu0 %3050
        %v3052 = vadd.f32 %v3016, %v3017
        %v3053 = vadd.f32 %v3052, %v3018
        %v3054 = vadd.f32 %v3053, %v3019
        %v3055 = vadd.f32 %v3054, %v3020
        %v3056 = vadd.f32 %v3055, %v3021
        %v3057 = vadd.f32 %v3056, %v3022
        %3058 = vadd.xlane.f32.xlu0 %v3057
        %v3059 = vpop.xlane.xlu0 %3058
        %v3060 = vadd.f32 %v3023, %v3024
        %v3061 = vadd.f32 %v3060, %v3025
        %v3062 = vadd.f32 %v3061, %v3026
        %v3063 = vadd.f32 %v3062, %v3027
        %v3064 = vadd.f32 %v3063, %v3028
        %v3065 = vadd.f32 %v3064, %v3029
        %3066 = vadd.xlane.f32.xlu0 %v3065
        %v3067 = vpop.xlane.xlu0 %3066
        %v3068 = vadd.f32 %v3030, %v3031
        %v3069 = vadd.f32 %v3068, %v3032
        %v3070 = vadd.f32 %v3069, %v3033
        %v3071 = vadd.f32 %v3070, %v3034
        %v3072 = vadd.f32 %v3071, %v3035
        %v3073 = vadd.f32 %v3072, %v3036
        %3074 = vadd.xlane.f32.xlu0 %v3073
        %v3075 = vpop.xlane.xlu0 %3074
        %v3076 = vadd.f32 %v3037, %v3038
        %v3077 = vadd.f32 %v3076, %v3039
        %v3078 = vadd.f32 %v3077, %v3040
        %v3079 = vadd.f32 %v3078, %v3041
        %v3080 = vadd.f32 %v3079, %v3042
        %v3081 = vadd.f32 %v3080, %v3043
        %3082 = vadd.xlane.f32.xlu0 %v3081
        %v3083 = vpop.xlane.xlu0 %3082
        %v3084 = vadd.f32 %v3051, %v3059
        %v3085 = vadd.f32 %v3084, %v3067
        %v3086 = vadd.f32 %v3085, %v3075
        %v3087 = vadd.f32 %v3086, %v3083
        %v3088 = vrot.slane %v3087, 4
        %v3089 = vadd.f32 %v3087, %v3088
        %v3090 = vrot.slane %v3089, 2
        %v3091 = vadd.f32 %v3089, %v3090
        %v3092 = vrot.slane %v3091, 1
        %v3093 = vadd.f32 %v3091, %v3092
        %vm3094 = vcmp.eq.s32.totalorder %v1815, 2
        %vm3095 = vmand %vm2843, %vm3094
        %v3096 = vsel %vm3095, %v3093, 0.0
        %v3097 = vadd.f32 %v2972, %v3096
        %s3098 = scalar_lea.vmem %s6, 840
        %v3099 = vld [vmem:[%s3098] sm:$0xff]
        %v3100 = vld [vmem:[%s3098 + $0x8] sm:$0xff]
        %v3101 = vld [vmem:[%s3098 + $0x10] sm:$0xff]
        %v3102 = vld [vmem:[%s3098 + $0x18] sm:$0xff]
        %v3103 = vld [vmem:[%s3098 + $0x20] sm:$0xff]
        %v3104 = vld [vmem:[%s3098 + $0x28] sm:$0xff]
        %v3105 = vld [vmem:[%s3098 + $0x30] sm:$0xff]
        %v3106 = vld [vmem:[%s3098 + $0x38] sm:$0xff]
        %v3107 = vld [vmem:[%s3098 + $0x40] sm:$0xff]
        %v3108 = vld [vmem:[%s3098 + $0x48] sm:$0xff]
        %v3109 = vld [vmem:[%s3098 + $0x50] sm:$0xff]
        %v3110 = vld [vmem:[%s3098 + $0x58] sm:$0xff]
        %v3111 = vld [vmem:[%s3098 + $0x60] sm:$0xff]
        %v3112 = vld [vmem:[%s3098 + $0x68] sm:$0xff]
        %v3113 = vld [vmem:[%s3098 + $0x70] sm:$0xff]
        %v3114 = vld [vmem:[%s3098 + $0x78] sm:$0xff]
        %v3115 = vld [vmem:[%s3098 + $0x80] sm:$0xff]
        %v3116 = vld [vmem:[%s3098 + $0x88] sm:$0xff]
        %v3117 = vld [vmem:[%s3098 + $0x90] sm:$0xff]
        %v3118 = vld [vmem:[%s3098 + $0x98] sm:$0xff]
        %v3119 = vld [vmem:[%s3098 + $0xa0] sm:$0xff]
        %v3120 = vld [vmem:[%s3098 + $0xa8] sm:$0xff]
        %v3121 = vld [vmem:[%s3098 + $0xb0] sm:$0xff]
        %v3122 = vld [vmem:[%s3098 + $0xb8] sm:$0xff]
        %v3123 = vld [vmem:[%s3098 + $0xc0] sm:$0xff]
        %v3124 = vld [vmem:[%s3098 + $0xc8] sm:$0xff]
        %v3125 = vld [vmem:[%s3098 + $0xd0] sm:$0xff]
        %v3126 = vld [vmem:[%s3098 + $0xd8] sm:$0xff]
        %v3127 = vld [vmem:[%s3098 + $0xe0] sm:$0xff]
        %v3128 = vld [vmem:[%s3098 + $0xe8] sm:$0xff]
        %v3129 = vld [vmem:[%s3098 + $0xf0] sm:$0xff]
        %v3130 = vld [vmem:[%s3098 + $0xf8] sm:$0xff]
        %v3131 = vld [vmem:[%s3098 + $0x100] sm:$0xff]
        %v3132 = vld [vmem:[%s3098 + $0x108] sm:$0xff]
        %v3133 = vld [vmem:[%s3098 + $0x110] sm:$0xff]
        %v3134 = vmul.f32 %v2684, %v3099
        %v3135 = vmul.f32 %v2685, %v3100
        %v3136 = vmul.f32 %v2686, %v3101
        %v3137 = vmul.f32 %v2687, %v3102
        %v3138 = vmul.f32 %v2688, %v3103
        %v3139 = vmul.f32 %v2689, %v3104
        %v3140 = vmul.f32 %v2690, %v3105
        %v3141 = vmul.f32 %v2691, %v3106
        %v3142 = vmul.f32 %v2692, %v3107
        %v3143 = vmul.f32 %v2693, %v3108
        %v3144 = vmul.f32 %v2694, %v3109
        %v3145 = vmul.f32 %v2695, %v3110
        %v3146 = vmul.f32 %v2696, %v3111
        %v3147 = vmul.f32 %v2697, %v3112
        %v3148 = vmul.f32 %v2698, %v3113
        %v3149 = vmul.f32 %v2699, %v3114
        %v3150 = vmul.f32 %v2700, %v3115
        %v3151 = vmul.f32 %v2701, %v3116
        %v3152 = vmul.f32 %v2702, %v3117
        %v3153 = vmul.f32 %v2703, %v3118
        %v3154 = vmul.f32 %v2704, %v3119
        %v3155 = vmul.f32 %v2705, %v3120
        %v3156 = vmul.f32 %v2706, %v3121
        %v3157 = vmul.f32 %v2707, %v3122
        %v3158 = vmul.f32 %v2708, %v3123
        %v3159 = vmul.f32 %v2709, %v3124
        %v3160 = vmul.f32 %v2710, %v3125
        %v3161 = vmul.f32 %v2711, %v3126
        %v3162 = vmul.f32 %v2712, %v3127
        %v3163 = vmul.f32 %v2713, %v3128
        %v3164 = vmul.f32 %v2714, %v3129
        %v3165 = vmul.f32 %v2715, %v3130
        %v3166 = vmul.f32 %v2716, %v3131
        %v3167 = vmul.f32 %v2717, %v3132
        %v3168 = vmul.f32 %v2718, %v3133
        %v3169 = vadd.f32 %v3134, %v3135
        %v3170 = vadd.f32 %v3169, %v3136
        %v3171 = vadd.f32 %v3170, %v3137
        %v3172 = vadd.f32 %v3171, %v3138
        %v3173 = vadd.f32 %v3172, %v3139
        %v3174 = vadd.f32 %v3173, %v3140
        %3175 = vadd.xlane.f32.xlu0 %v3174
        %v3176 = vpop.xlane.xlu0 %3175
        %v3177 = vadd.f32 %v3141, %v3142
        %v3178 = vadd.f32 %v3177, %v3143
        %v3179 = vadd.f32 %v3178, %v3144
        %v3180 = vadd.f32 %v3179, %v3145
        %v3181 = vadd.f32 %v3180, %v3146
        %v3182 = vadd.f32 %v3181, %v3147
        %3183 = vadd.xlane.f32.xlu0 %v3182
        %v3184 = vpop.xlane.xlu0 %3183
        %v3185 = vadd.f32 %v3148, %v3149
        %v3186 = vadd.f32 %v3185, %v3150
        %v3187 = vadd.f32 %v3186, %v3151
        %v3188 = vadd.f32 %v3187, %v3152
        %v3189 = vadd.f32 %v3188, %v3153
        %v3190 = vadd.f32 %v3189, %v3154
        %3191 = vadd.xlane.f32.xlu0 %v3190
        %v3192 = vpop.xlane.xlu0 %3191
        %v3193 = vadd.f32 %v3155, %v3156
        %v3194 = vadd.f32 %v3193, %v3157
        %v3195 = vadd.f32 %v3194, %v3158
        %v3196 = vadd.f32 %v3195, %v3159
        %v3197 = vadd.f32 %v3196, %v3160
        %v3198 = vadd.f32 %v3197, %v3161
        %3199 = vadd.xlane.f32.xlu0 %v3198
        %v3200 = vpop.xlane.xlu0 %3199
        %v3201 = vadd.f32 %v3162, %v3163
        %v3202 = vadd.f32 %v3201, %v3164
        %v3203 = vadd.f32 %v3202, %v3165
        %v3204 = vadd.f32 %v3203, %v3166
        %v3205 = vadd.f32 %v3204, %v3167
        %v3206 = vadd.f32 %v3205, %v3168
        %3207 = vadd.xlane.f32.xlu0 %v3206
        %v3208 = vpop.xlane.xlu0 %3207
        %v3209 = vadd.f32 %v3176, %v3184
        %v3210 = vadd.f32 %v3209, %v3192
        %v3211 = vadd.f32 %v3210, %v3200
        %v3212 = vadd.f32 %v3211, %v3208
        %v3213 = vrot.slane %v3212, 4
        %v3214 = vadd.f32 %v3212, %v3213
        %v3215 = vrot.slane %v3214, 2
        %v3216 = vadd.f32 %v3214, %v3215
        %v3217 = vrot.slane %v3216, 1
        %v3218 = vadd.f32 %v3216, %v3217
        %vm3219 = vcmp.eq.s32.totalorder %v1815, 3
        %vm3220 = vmand %vm2843, %vm3219
        %v3221 = vsel %vm3220, %v3218, 0.0
        %v3222 = vadd.f32 %v3097, %v3221
        %s3223 = scalar_lea.vmem %s6, 1120
        %v3224 = vld [vmem:[%s3223] sm:$0xff]
        %v3225 = vld [vmem:[%s3223 + $0x8] sm:$0xff]
        %v3226 = vld [vmem:[%s3223 + $0x10] sm:$0xff]
        %v3227 = vld [vmem:[%s3223 + $0x18] sm:$0xff]
        %v3228 = vld [vmem:[%s3223 + $0x20] sm:$0xff]
        %v3229 = vld [vmem:[%s3223 + $0x28] sm:$0xff]
        %v3230 = vld [vmem:[%s3223 + $0x30] sm:$0xff]
        %v3231 = vld [vmem:[%s3223 + $0x38] sm:$0xff]
        %v3232 = vld [vmem:[%s3223 + $0x40] sm:$0xff]
        %v3233 = vld [vmem:[%s3223 + $0x48] sm:$0xff]
        %v3234 = vld [vmem:[%s3223 + $0x50] sm:$0xff]
        %v3235 = vld [vmem:[%s3223 + $0x58] sm:$0xff]
        %v3236 = vld [vmem:[%s3223 + $0x60] sm:$0xff]
        %v3237 = vld [vmem:[%s3223 + $0x68] sm:$0xff]
        %v3238 = vld [vmem:[%s3223 + $0x70] sm:$0xff]
        %v3239 = vld [vmem:[%s3223 + $0x78] sm:$0xff]
        %v3240 = vld [vmem:[%s3223 + $0x80] sm:$0xff]
        %v3241 = vld [vmem:[%s3223 + $0x88] sm:$0xff]
        %v3242 = vld [vmem:[%s3223 + $0x90] sm:$0xff]
        %v3243 = vld [vmem:[%s3223 + $0x98] sm:$0xff]
        %v3244 = vld [vmem:[%s3223 + $0xa0] sm:$0xff]
        %v3245 = vld [vmem:[%s3223 + $0xa8] sm:$0xff]
        %v3246 = vld [vmem:[%s3223 + $0xb0] sm:$0xff]
        %v3247 = vld [vmem:[%s3223 + $0xb8] sm:$0xff]
        %v3248 = vld [vmem:[%s3223 + $0xc0] sm:$0xff]
        %v3249 = vld [vmem:[%s3223 + $0xc8] sm:$0xff]
        %v3250 = vld [vmem:[%s3223 + $0xd0] sm:$0xff]
        %v3251 = vld [vmem:[%s3223 + $0xd8] sm:$0xff]
        %v3252 = vld [vmem:[%s3223 + $0xe0] sm:$0xff]
        %v3253 = vld [vmem:[%s3223 + $0xe8] sm:$0xff]
        %v3254 = vld [vmem:[%s3223 + $0xf0] sm:$0xff]
        %v3255 = vld [vmem:[%s3223 + $0xf8] sm:$0xff]
        %v3256 = vld [vmem:[%s3223 + $0x100] sm:$0xff]
        %v3257 = vld [vmem:[%s3223 + $0x108] sm:$0xff]
        %v3258 = vld [vmem:[%s3223 + $0x110] sm:$0xff]
        %v3259 = vmul.f32 %v2684, %v3224
        %v3260 = vmul.f32 %v2685, %v3225
        %v3261 = vmul.f32 %v2686, %v3226
        %v3262 = vmul.f32 %v2687, %v3227
        %v3263 = vmul.f32 %v2688, %v3228
        %v3264 = vmul.f32 %v2689, %v3229
        %v3265 = vmul.f32 %v2690, %v3230
        %v3266 = vmul.f32 %v2691, %v3231
        %v3267 = vmul.f32 %v2692, %v3232
        %v3268 = vmul.f32 %v2693, %v3233
        %v3269 = vmul.f32 %v2694, %v3234
        %v3270 = vmul.f32 %v2695, %v3235
        %v3271 = vmul.f32 %v2696, %v3236
        %v3272 = vmul.f32 %v2697, %v3237
        %v3273 = vmul.f32 %v2698, %v3238
        %v3274 = vmul.f32 %v2699, %v3239
        %v3275 = vmul.f32 %v2700, %v3240
        %v3276 = vmul.f32 %v2701, %v3241
        %v3277 = vmul.f32 %v2702, %v3242
        %v3278 = vmul.f32 %v2703, %v3243
        %v3279 = vmul.f32 %v2704, %v3244
        %v3280 = vmul.f32 %v2705, %v3245
        %v3281 = vmul.f32 %v2706, %v3246
        %v3282 = vmul.f32 %v2707, %v3247
        %v3283 = vmul.f32 %v2708, %v3248
        %v3284 = vmul.f32 %v2709, %v3249
        %v3285 = vmul.f32 %v2710, %v3250
        %v3286 = vmul.f32 %v2711, %v3251
        %v3287 = vmul.f32 %v2712, %v3252
        %v3288 = vmul.f32 %v2713, %v3253
        %v3289 = vmul.f32 %v2714, %v3254
        %v3290 = vmul.f32 %v2715, %v3255
        %v3291 = vmul.f32 %v2716, %v3256
        %v3292 = vmul.f32 %v2717, %v3257
        %v3293 = vmul.f32 %v2718, %v3258
        %v3294 = vadd.f32 %v3259, %v3260
        %v3295 = vadd.f32 %v3294, %v3261
        %v3296 = vadd.f32 %v3295, %v3262
        %v3297 = vadd.f32 %v3296, %v3263
        %v3298 = vadd.f32 %v3297, %v3264
        %v3299 = vadd.f32 %v3298, %v3265
        %3300 = vadd.xlane.f32.xlu0 %v3299
        %v3301 = vpop.xlane.xlu0 %3300
        %v3302 = vadd.f32 %v3266, %v3267
        %v3303 = vadd.f32 %v3302, %v3268
        %v3304 = vadd.f32 %v3303, %v3269
        %v3305 = vadd.f32 %v3304, %v3270
        %v3306 = vadd.f32 %v3305, %v3271
        %v3307 = vadd.f32 %v3306, %v3272
        %3308 = vadd.xlane.f32.xlu0 %v3307
        %v3309 = vpop.xlane.xlu0 %3308
        %v3310 = vadd.f32 %v3273, %v3274
        %v3311 = vadd.f32 %v3310, %v3275
        %v3312 = vadd.f32 %v3311, %v3276
        %v3313 = vadd.f32 %v3312, %v3277
        %v3314 = vadd.f32 %v3313, %v3278
        %v3315 = vadd.f32 %v3314, %v3279
        %3316 = vadd.xlane.f32.xlu0 %v3315
        %v3317 = vpop.xlane.xlu0 %3316
        %v3318 = vadd.f32 %v3280, %v3281
        %v3319 = vadd.f32 %v3318, %v3282
        %v3320 = vadd.f32 %v3319, %v3283
        %v3321 = vadd.f32 %v3320, %v3284
        %v3322 = vadd.f32 %v3321, %v3285
        %v3323 = vadd.f32 %v3322, %v3286
        %3324 = vadd.xlane.f32.xlu0 %v3323
        %v3325 = vpop.xlane.xlu0 %3324
        %v3326 = vadd.f32 %v3287, %v3288
        %v3327 = vadd.f32 %v3326, %v3289
        %v3328 = vadd.f32 %v3327, %v3290
        %v3329 = vadd.f32 %v3328, %v3291
        %v3330 = vadd.f32 %v3329, %v3292
        %v3331 = vadd.f32 %v3330, %v3293
        %3332 = vadd.xlane.f32.xlu0 %v3331
        %v3333 = vpop.xlane.xlu0 %3332
        %v3334 = vadd.f32 %v3301, %v3309
        %v3335 = vadd.f32 %v3334, %v3317
        %v3336 = vadd.f32 %v3335, %v3325
        %v3337 = vadd.f32 %v3336, %v3333
        %v3338 = vrot.slane %v3337, 4
        %v3339 = vadd.f32 %v3337, %v3338
        %v3340 = vrot.slane %v3339, 2
        %v3341 = vadd.f32 %v3339, %v3340
        %v3342 = vrot.slane %v3341, 1
        %v3343 = vadd.f32 %v3341, %v3342
        %vm3344 = vcmp.eq.s32.totalorder %v1815, 4
        %vm3345 = vmand %vm2843, %vm3344
        %v3346 = vsel %vm3345, %v3343, 0.0
        %v3347 = vadd.f32 %v3222, %v3346
        %s3348 = scalar_lea.vmem %s6, 1400
        %v3349 = vld [vmem:[%s3348] sm:$0xff]
        %v3350 = vld [vmem:[%s3348 + $0x8] sm:$0xff]
        %v3351 = vld [vmem:[%s3348 + $0x10] sm:$0xff]
        %v3352 = vld [vmem:[%s3348 + $0x18] sm:$0xff]
        %v3353 = vld [vmem:[%s3348 + $0x20] sm:$0xff]
        %v3354 = vld [vmem:[%s3348 + $0x28] sm:$0xff]
        %v3355 = vld [vmem:[%s3348 + $0x30] sm:$0xff]
        %v3356 = vld [vmem:[%s3348 + $0x38] sm:$0xff]
        %v3357 = vld [vmem:[%s3348 + $0x40] sm:$0xff]
        %v3358 = vld [vmem:[%s3348 + $0x48] sm:$0xff]
        %v3359 = vld [vmem:[%s3348 + $0x50] sm:$0xff]
        %v3360 = vld [vmem:[%s3348 + $0x58] sm:$0xff]
        %v3361 = vld [vmem:[%s3348 + $0x60] sm:$0xff]
        %v3362 = vld [vmem:[%s3348 + $0x68] sm:$0xff]
        %v3363 = vld [vmem:[%s3348 + $0x70] sm:$0xff]
        %v3364 = vld [vmem:[%s3348 + $0x78] sm:$0xff]
        %v3365 = vld [vmem:[%s3348 + $0x80] sm:$0xff]
        %v3366 = vld [vmem:[%s3348 + $0x88] sm:$0xff]
        %v3367 = vld [vmem:[%s3348 + $0x90] sm:$0xff]
        %v3368 = vld [vmem:[%s3348 + $0x98] sm:$0xff]
        %v3369 = vld [vmem:[%s3348 + $0xa0] sm:$0xff]
        %v3370 = vld [vmem:[%s3348 + $0xa8] sm:$0xff]
        %v3371 = vld [vmem:[%s3348 + $0xb0] sm:$0xff]
        %v3372 = vld [vmem:[%s3348 + $0xb8] sm:$0xff]
        %v3373 = vld [vmem:[%s3348 + $0xc0] sm:$0xff]
        %v3374 = vld [vmem:[%s3348 + $0xc8] sm:$0xff]
        %v3375 = vld [vmem:[%s3348 + $0xd0] sm:$0xff]
        %v3376 = vld [vmem:[%s3348 + $0xd8] sm:$0xff]
        %v3377 = vld [vmem:[%s3348 + $0xe0] sm:$0xff]
        %v3378 = vld [vmem:[%s3348 + $0xe8] sm:$0xff]
        %v3379 = vld [vmem:[%s3348 + $0xf0] sm:$0xff]
        %v3380 = vld [vmem:[%s3348 + $0xf8] sm:$0xff]
        %v3381 = vld [vmem:[%s3348 + $0x100] sm:$0xff]
        %v3382 = vld [vmem:[%s3348 + $0x108] sm:$0xff]
        %v3383 = vld [vmem:[%s3348 + $0x110] sm:$0xff]
        %v3384 = vmul.f32 %v2684, %v3349
        %v3385 = vmul.f32 %v2685, %v3350
        %v3386 = vmul.f32 %v2686, %v3351
        %v3387 = vmul.f32 %v2687, %v3352
        %v3388 = vmul.f32 %v2688, %v3353
        %v3389 = vmul.f32 %v2689, %v3354
        %v3390 = vmul.f32 %v2690, %v3355
        %v3391 = vmul.f32 %v2691, %v3356
        %v3392 = vmul.f32 %v2692, %v3357
        %v3393 = vmul.f32 %v2693, %v3358
        %v3394 = vmul.f32 %v2694, %v3359
        %v3395 = vmul.f32 %v2695, %v3360
        %v3396 = vmul.f32 %v2696, %v3361
        %v3397 = vmul.f32 %v2697, %v3362
        %v3398 = vmul.f32 %v2698, %v3363
        %v3399 = vmul.f32 %v2699, %v3364
        %v3400 = vmul.f32 %v2700, %v3365
        %v3401 = vmul.f32 %v2701, %v3366
        %v3402 = vmul.f32 %v2702, %v3367
        %v3403 = vmul.f32 %v2703, %v3368
        %v3404 = vmul.f32 %v2704, %v3369
        %v3405 = vmul.f32 %v2705, %v3370
        %v3406 = vmul.f32 %v2706, %v3371
        %v3407 = vmul.f32 %v2707, %v3372
        %v3408 = vmul.f32 %v2708, %v3373
        %v3409 = vmul.f32 %v2709, %v3374
        %v3410 = vmul.f32 %v2710, %v3375
        %v3411 = vmul.f32 %v2711, %v3376
        %v3412 = vmul.f32 %v2712, %v3377
        %v3413 = vmul.f32 %v2713, %v3378
        %v3414 = vmul.f32 %v2714, %v3379
        %v3415 = vmul.f32 %v2715, %v3380
        %v3416 = vmul.f32 %v2716, %v3381
        %v3417 = vmul.f32 %v2717, %v3382
        %v3418 = vmul.f32 %v2718, %v3383
        %v3419 = vadd.f32 %v3384, %v3385
        %v3420 = vadd.f32 %v3419, %v3386
        %v3421 = vadd.f32 %v3420, %v3387
        %v3422 = vadd.f32 %v3421, %v3388
        %v3423 = vadd.f32 %v3422, %v3389
        %v3424 = vadd.f32 %v3423, %v3390
        %3425 = vadd.xlane.f32.xlu0 %v3424
        %v3426 = vpop.xlane.xlu0 %3425
        %v3427 = vadd.f32 %v3391, %v3392
        %v3428 = vadd.f32 %v3427, %v3393
        %v3429 = vadd.f32 %v3428, %v3394
        %v3430 = vadd.f32 %v3429, %v3395
        %v3431 = vadd.f32 %v3430, %v3396
        %v3432 = vadd.f32 %v3431, %v3397
        %3433 = vadd.xlane.f32.xlu0 %v3432
        %v3434 = vpop.xlane.xlu0 %3433
        %v3435 = vadd.f32 %v3398, %v3399
        %v3436 = vadd.f32 %v3435, %v3400
        %v3437 = vadd.f32 %v3436, %v3401
        %v3438 = vadd.f32 %v3437, %v3402
        %v3439 = vadd.f32 %v3438, %v3403
        %v3440 = vadd.f32 %v3439, %v3404
        %3441 = vadd.xlane.f32.xlu0 %v3440
        %v3442 = vpop.xlane.xlu0 %3441
        %v3443 = vadd.f32 %v3405, %v3406
        %v3444 = vadd.f32 %v3443, %v3407
        %v3445 = vadd.f32 %v3444, %v3408
        %v3446 = vadd.f32 %v3445, %v3409
        %v3447 = vadd.f32 %v3446, %v3410
        %v3448 = vadd.f32 %v3447, %v3411
        %3449 = vadd.xlane.f32.xlu0 %v3448
        %v3450 = vpop.xlane.xlu0 %3449
        %v3451 = vadd.f32 %v3412, %v3413
        %v3452 = vadd.f32 %v3451, %v3414
        %v3453 = vadd.f32 %v3452, %v3415
        %v3454 = vadd.f32 %v3453, %v3416
        %v3455 = vadd.f32 %v3454, %v3417
        %v3456 = vadd.f32 %v3455, %v3418
        %3457 = vadd.xlane.f32.xlu0 %v3456
        %v3458 = vpop.xlane.xlu0 %3457
        %v3459 = vadd.f32 %v3426, %v3434
        %v3460 = vadd.f32 %v3459, %v3442
        %v3461 = vadd.f32 %v3460, %v3450
        %v3462 = vadd.f32 %v3461, %v3458
        %v3463 = vrot.slane %v3462, 4
        %v3464 = vadd.f32 %v3462, %v3463
        %v3465 = vrot.slane %v3464, 2
        %v3466 = vadd.f32 %v3464, %v3465
        %v3467 = vrot.slane %v3466, 1
        %v3468 = vadd.f32 %v3466, %v3467
        %vm3469 = vcmp.eq.s32.totalorder %v1815, 5
        %vm3470 = vmand %vm2843, %vm3469
        %v3471 = vsel %vm3470, %v3468, 0.0
        %v3472 = vadd.f32 %v3347, %v3471
        %s3473 = scalar_lea.vmem %s6, 1680
        %v3474 = vld [vmem:[%s3473] sm:$0xff]
        %v3475 = vld [vmem:[%s3473 + $0x8] sm:$0xff]
        %v3476 = vld [vmem:[%s3473 + $0x10] sm:$0xff]
        %v3477 = vld [vmem:[%s3473 + $0x18] sm:$0xff]
        %v3478 = vld [vmem:[%s3473 + $0x20] sm:$0xff]
        %v3479 = vld [vmem:[%s3473 + $0x28] sm:$0xff]
        %v3480 = vld [vmem:[%s3473 + $0x30] sm:$0xff]
        %v3481 = vld [vmem:[%s3473 + $0x38] sm:$0xff]
        %v3482 = vld [vmem:[%s3473 + $0x40] sm:$0xff]
        %v3483 = vld [vmem:[%s3473 + $0x48] sm:$0xff]
        %v3484 = vld [vmem:[%s3473 + $0x50] sm:$0xff]
        %v3485 = vld [vmem:[%s3473 + $0x58] sm:$0xff]
        %v3486 = vld [vmem:[%s3473 + $0x60] sm:$0xff]
        %v3487 = vld [vmem:[%s3473 + $0x68] sm:$0xff]
        %v3488 = vld [vmem:[%s3473 + $0x70] sm:$0xff]
        %v3489 = vld [vmem:[%s3473 + $0x78] sm:$0xff]
        %v3490 = vld [vmem:[%s3473 + $0x80] sm:$0xff]
        %v3491 = vld [vmem:[%s3473 + $0x88] sm:$0xff]
        %v3492 = vld [vmem:[%s3473 + $0x90] sm:$0xff]
        %v3493 = vld [vmem:[%s3473 + $0x98] sm:$0xff]
        %v3494 = vld [vmem:[%s3473 + $0xa0] sm:$0xff]
        %v3495 = vld [vmem:[%s3473 + $0xa8] sm:$0xff]
        %v3496 = vld [vmem:[%s3473 + $0xb0] sm:$0xff]
        %v3497 = vld [vmem:[%s3473 + $0xb8] sm:$0xff]
        %v3498 = vld [vmem:[%s3473 + $0xc0] sm:$0xff]
        %v3499 = vld [vmem:[%s3473 + $0xc8] sm:$0xff]
        %v3500 = vld [vmem:[%s3473 + $0xd0] sm:$0xff]
        %v3501 = vld [vmem:[%s3473 + $0xd8] sm:$0xff]
        %v3502 = vld [vmem:[%s3473 + $0xe0] sm:$0xff]
        %v3503 = vld [vmem:[%s3473 + $0xe8] sm:$0xff]
        %v3504 = vld [vmem:[%s3473 + $0xf0] sm:$0xff]
        %v3505 = vld [vmem:[%s3473 + $0xf8] sm:$0xff]
        %v3506 = vld [vmem:[%s3473 + $0x100] sm:$0xff]
        %v3507 = vld [vmem:[%s3473 + $0x108] sm:$0xff]
        %v3508 = vld [vmem:[%s3473 + $0x110] sm:$0xff]
        %v3509 = vmul.f32 %v2684, %v3474
        %v3510 = vmul.f32 %v2685, %v3475
        %v3511 = vmul.f32 %v2686, %v3476
        %v3512 = vmul.f32 %v2687, %v3477
        %v3513 = vmul.f32 %v2688, %v3478
        %v3514 = vmul.f32 %v2689, %v3479
        %v3515 = vmul.f32 %v2690, %v3480
        %v3516 = vmul.f32 %v2691, %v3481
        %v3517 = vmul.f32 %v2692, %v3482
        %v3518 = vmul.f32 %v2693, %v3483
        %v3519 = vmul.f32 %v2694, %v3484
        %v3520 = vmul.f32 %v2695, %v3485
        %v3521 = vmul.f32 %v2696, %v3486
        %v3522 = vmul.f32 %v2697, %v3487
        %v3523 = vmul.f32 %v2698, %v3488
        %v3524 = vmul.f32 %v2699, %v3489
        %v3525 = vmul.f32 %v2700, %v3490
        %v3526 = vmul.f32 %v2701, %v3491
        %v3527 = vmul.f32 %v2702, %v3492
        %v3528 = vmul.f32 %v2703, %v3493
        %v3529 = vmul.f32 %v2704, %v3494
        %v3530 = vmul.f32 %v2705, %v3495
        %v3531 = vmul.f32 %v2706, %v3496
        %v3532 = vmul.f32 %v2707, %v3497
        %v3533 = vmul.f32 %v2708, %v3498
        %v3534 = vmul.f32 %v2709, %v3499
        %v3535 = vmul.f32 %v2710, %v3500
        %v3536 = vmul.f32 %v2711, %v3501
        %v3537 = vmul.f32 %v2712, %v3502
        %v3538 = vmul.f32 %v2713, %v3503
        %v3539 = vmul.f32 %v2714, %v3504
        %v3540 = vmul.f32 %v2715, %v3505
        %v3541 = vmul.f32 %v2716, %v3506
        %v3542 = vmul.f32 %v2717, %v3507
        %v3543 = vmul.f32 %v2718, %v3508
        %v3544 = vadd.f32 %v3509, %v3510
        %v3545 = vadd.f32 %v3544, %v3511
        %v3546 = vadd.f32 %v3545, %v3512
        %v3547 = vadd.f32 %v3546, %v3513
        %v3548 = vadd.f32 %v3547, %v3514
        %v3549 = vadd.f32 %v3548, %v3515
        %3550 = vadd.xlane.f32.xlu0 %v3549
        %v3551 = vpop.xlane.xlu0 %3550
        %v3552 = vadd.f32 %v3516, %v3517
        %v3553 = vadd.f32 %v3552, %v3518
        %v3554 = vadd.f32 %v3553, %v3519
        %v3555 = vadd.f32 %v3554, %v3520
        %v3556 = vadd.f32 %v3555, %v3521
        %v3557 = vadd.f32 %v3556, %v3522
        %3558 = vadd.xlane.f32.xlu0 %v3557
        %v3559 = vpop.xlane.xlu0 %3558
        %v3560 = vadd.f32 %v3523, %v3524
        %v3561 = vadd.f32 %v3560, %v3525
        %v3562 = vadd.f32 %v3561, %v3526
        %v3563 = vadd.f32 %v3562, %v3527
        %v3564 = vadd.f32 %v3563, %v3528
        %v3565 = vadd.f32 %v3564, %v3529
        %3566 = vadd.xlane.f32.xlu0 %v3565
        %v3567 = vpop.xlane.xlu0 %3566
        %v3568 = vadd.f32 %v3530, %v3531
        %v3569 = vadd.f32 %v3568, %v3532
        %v3570 = vadd.f32 %v3569, %v3533
        %v3571 = vadd.f32 %v3570, %v3534
        %v3572 = vadd.f32 %v3571, %v3535
        %v3573 = vadd.f32 %v3572, %v3536
        %3574 = vadd.xlane.f32.xlu0 %v3573
        %v3575 = vpop.xlane.xlu0 %3574
        %v3576 = vadd.f32 %v3537, %v3538
        %v3577 = vadd.f32 %v3576, %v3539
        %v3578 = vadd.f32 %v3577, %v3540
        %v3579 = vadd.f32 %v3578, %v3541
        %v3580 = vadd.f32 %v3579, %v3542
        %v3581 = vadd.f32 %v3580, %v3543
        %3582 = vadd.xlane.f32.xlu0 %v3581
        %v3583 = vpop.xlane.xlu0 %3582
        %v3584 = vadd.f32 %v3551, %v3559
        %v3585 = vadd.f32 %v3584, %v3567
        %v3586 = vadd.f32 %v3585, %v3575
        %v3587 = vadd.f32 %v3586, %v3583
        %v3588 = vrot.slane %v3587, 4
        %v3589 = vadd.f32 %v3587, %v3588
        %v3590 = vrot.slane %v3589, 2
        %v3591 = vadd.f32 %v3589, %v3590
        %v3592 = vrot.slane %v3591, 1
        %v3593 = vadd.f32 %v3591, %v3592
        %vm3594 = vcmp.eq.s32.totalorder %v1815, 6
        %vm3595 = vmand %vm2843, %vm3594
        %v3596 = vsel %vm3595, %v3593, 0.0
        %v3597 = vadd.f32 %v3472, %v3596
        %v3598 = vsel %vm453, %v3597, -inf
        %3599 = vmax.xlane.f32.xlu0 %v3598
        %v3600 = vpop.xlane.xlu0 %3599
        %v3601 = vsub.f32 %v3597, %v3600
        %v3602 = vmul.f32 %v3601, 1.442695
        %v3603 = vpow.pop %v3602
        %v3604 = vsel %vm453, %v3603, 0.0
        %3605 = vadd.xlane.f32.xlu0 %v3604
        %v3606 = vpop.xlane.xlu0 %3605
        %v3607 = vlog2.pop %v3606
        %v3608 = vmul.f32 %v3607, 0.6931472
        %v3609 = vsub.f32 %v3601, %v3608
        %3610 = vst [vmem:[%s432] sm:$0x1] %v3609
        %s3611 = sand.u32 %s203, 1
        %s3612 = scalar_lea.sflag [#allocation4], %s3611
        %s3613 = sand.u32 %s203, 1
        %s3614 = scalar_lea.vmem [#allocation3], %s3613
        // Predicated region
        $region76: #{net_forward.1} parent=70 // pred_check
          %p3615 = pneg %p213
        $region77: #{net_forward.1} parent=70 // pred_check_branch
          %3617 = sbr.rel (%p3615) target = $region79
        $region78: #{net_forward.1} parent=70 // pred_region
          %s3619 = ssub.s32 16, 16
          %3620 = vsyncadd %s3612, %s3619
          %s3621 = smul.addr %s22, 16
          %s3622 = scalar_lea.hbm %s8, %s3621
          %s3624 = sshll.u32 %s3614, 4
          %s3625 = int_to_ptr.vmem [resolvable:$true] %s3624
          %3627 = dma.vmem_to_hbm [thread:$0]  %s3625, 16, %s3622, %s3612
        $region79: #{net_forward.1} parent=70 // pred_fallthru
          _
      $region71: #{net_forward.1} parent=5 // pred_fallthru
        _
      %p3628 = scmp.le.s32.totalorder 2, %s17
      // Predicated region
      $region80: #{net_forward.1} parent=5 // pred_check
        %p3629 = pneg %p3628
      $region81: #{net_forward.1} parent=5 // pred_check_branch
        %3631 = sbr.rel (%p3629) target = $region83
      $region82: #{net_forward.1} parent=5 // pred_region
        %s3632 = ssub.s32 %s17, 2
        // Predicated region
        $region84: #{net_forward.1} parent=82 // pred_check
          %p3633 = pneg %p219
        $region85: #{net_forward.1} parent=82 // pred_check_branch
          %3635 = sbr.rel (%p3633) target = $region87
        $region86: #{net_forward.1} parent=82 // pred_region
          %s3636 = sand.u32 %s204, 1
          %s3637 = scalar_lea.sflag [#allocation4], %s3636
          %s3638 = sand.u32 %s204, 1
          %s3639 = scalar_lea.vmem [#allocation3], %s3638
          %3640 = dma.done %s3637, 16
        $region87: #{net_forward.1} parent=82 // pred_fallthru
          _
      $region83: #{net_forward.1} parent=5 // pred_fallthru
        _
    $region6: #{net_forward.1} parent=1 // loop_footer
      %s21 = sadd.s32 1, %s17
    $region7: #{net_forward.1} parent=1 // loop_footer_branch
      %16 = sbr.rel target = $region3
    $region8: #{net_forward.1} parent=1 // loop_exit
      _
    %3641 = vsyncpa [#allocation4], 1
    %s3642 = scalar_lea.sflag [#allocation4], 1
    %3643 = vsyncpa %s3642, 1

</llo_original>
